<compile_context>
chip_gen: v7x
topology: tpu7x:2x2x1
jax: 0.10.0
libtpu: 0.0.40
codegen_flags: <defaults>
</compile_context>

<pallas_src>
import jax
import jax.numpy as jnp
from jax import lax
from jax.experimental import pallas as pl
from jax.experimental.pallas import tpu as pltpu

PHASES = ((0, 0), (0, 1), (1, 0), (1, 1))   # (row parity, col parity)
BN_EPS = 1e-5
COMPUTE_DTYPE = jnp.bfloat16


def _pick_tile(dim, preferred, quantum):
    """Largest multiple of `quantum` <= preferred that divides dim, else dim."""
    if dim <= preferred:
        return dim
    t = (preferred // quantum) * quantum
    while t >= quantum:
        if dim % t == 0:
            return t
        t -= quantum
    return dim


# ---------------------------------------------------------------------------
# Pallas kernels
# ---------------------------------------------------------------------------
def _gemm_stats_kernel(a_ref, b_ref, o_ref, s_ref, q_ref):
    # a: (TM, K) bf16, b: (K, TN) bf16 -> fp32 MXU accumulation.
    acc = jnp.dot(a_ref[...], b_ref[...], preferred_element_type=jnp.float32)
    o_ref[...] = acc

    # Per-column sum / sum-of-squares accumulated across the phase and M grid
    # axes (both "arbitrary") -> BatchNorm batch stats for free in the epilogue.
    @pl.when((pl.program_id(1) == 0) & (pl.program_id(2) == 0))
    def _init():
        s_ref[...] = jnp.zeros_like(s_ref)
        q_ref[...] = jnp.zeros_like(q_ref)

    s_ref[...] += jnp.sum(acc, axis=0, keepdims=True)
    q_ref[...] += jnp.sum(acc * acc, axis=0, keepdims=True)


def gemm_with_stats(a, b, *, tm_pref=256, tn_pref=256):
    """Phase-batched GEMM.  a: (P, M, K), b: (P, K, C) ->
       (out (P,M,C) fp32, colsum (1,C) fp32, colsumsq (1,C) fp32),
       stats summed over both P and M."""
    P, M, K = a.shape
    Pb, Kb, C = b.shape
    assert P == Pb and K == Kb
    tm = _pick_tile(M, tm_pref, 8)
    tn = _pick_tile(C, tn_pref, 128)
    grid = (C // tn, P, M // tm)   # column tiles outer (parallel), stats reduction innermost
    return pl.pallas_call(
        _gemm_stats_kernel,
        out_shape=(
            jax.ShapeDtypeStruct((P, M, C), jnp.float32),
            jax.ShapeDtypeStruct((1, C), jnp.float32),
            jax.ShapeDtypeStruct((1, C), jnp.float32),
        ),
        grid=grid,
        in_specs=[
            pl.BlockSpec((None, tm, K), lambda j, p, i: (p, i, 0)),
            pl.BlockSpec((None, K, tn), lambda j, p, i: (p, 0, j)),
        ],
        out_specs=(
            pl.BlockSpec((None, tm, tn), lambda j, p, i: (p, i, j)),
            pl.BlockSpec((1, tn), lambda j, p, i: (0, j)),
            pl.BlockSpec((1, tn), lambda j, p, i: (0, j)),
        ),
        compiler_params=pltpu.CompilerParams(
            dimension_semantics=("parallel", "arbitrary", "arbitrary")),
    )(a, b)


def _bn_relu_apply_kernel(x_ref, scale_ref, shift_ref, o_ref):
    y = x_ref[...] * scale_ref[...] + shift_ref[...]
    o_ref[...] = jnp.maximum(y, 0.0).astype(o_ref.dtype)


def bn_relu_apply(x, scale, shift, out_dtype=COMPUTE_DTYPE):
    """y = relu(x * scale + shift) with per-channel scale/shift; tiled over rows."""
    M, C = x.shape
    tm = _pick_tile(M, 512, 8)
    return pl.pallas_call(
        _bn_relu_apply_kernel,
        out_shape=jax.ShapeDtypeStruct((M, C), out_dtype),
        grid=(M // tm,),
        in_specs=[
            pl.BlockSpec((tm, C), lambda i: (i, 0)),
            pl.BlockSpec((1, C), lambda i: (0, 0)),
            pl.BlockSpec((1, C), lambda i: (0, 0)),
        ],
        out_specs=pl.BlockSpec((tm, C), lambda i: (i, 0)),
        compiler_params=pltpu.CompilerParams(dimension_semantics=("parallel",)),
    )(x, scale.reshape(1, C).astype(jnp.float32),
      shift.reshape(1, C).astype(jnp.float32))


def _tanh_kernel(x_ref, o_ref):
    o_ref[...] = jnp.tanh(x_ref[...]).astype(o_ref.dtype)


def tanh_pallas(x):
    R, C = x.shape
    tr = _pick_tile(R, 512, 8)
    return pl.pallas_call(
        _tanh_kernel,
        out_shape=jax.ShapeDtypeStruct((R, C), jnp.float32),
        grid=(R // tr,),
        in_specs=[pl.BlockSpec((tr, C), lambda i: (i, 0))],
        out_specs=pl.BlockSpec((tr, C), lambda i: (i, 0)),
        compiler_params=pltpu.CompilerParams(dimension_semantics=("parallel",)),
    )(x)


# ---------------------------------------------------------------------------
# Sub-pixel ConvTranspose2d(k=4, s=2, p=1) helpers (plain-JAX layout glue)
# ---------------------------------------------------------------------------
def _bn_scale_shift(colsum, colsumsq, count, gamma, beta, eps=BN_EPS):
    mean = colsum / count
    var = jnp.maximum(colsumsq / count - mean * mean, 0.0)   # biased var (PyTorch training BN)
    scale = gamma * lax.rsqrt(var + eps)
    shift = beta - mean * scale
    return scale, shift


def _subpixel_weights(w):
    """w: (Cin, Cout, 4, 4) -> (4, 4*Cin, Cout), PHASES order, tap order (dh, dw, ci)."""
    Cin, Cout = w.shape[0], w.shape[1]
    mats = []
    for ph, pw in PHASES:
        taps = []
        for dh in range(2):
            for dw in range(2):
                taps.append(w[:, :, 3 - ph - 2 * dh, 3 - pw - 2 * dw])   # (Cin, Cout)
        mats.append(jnp.stack(taps, axis=0).reshape(4 * Cin, Cout))
    return jnp.stack(mats, axis=0)


def _subpixel_patches(x):
    """x: (N, H, W, Cin) -> (4, N*H*W, 4*Cin), PHASES order, tap order (dh, dw, ci)."""
    N, H, W, Cin = x.shape
    xp = jnp.pad(x, ((0, 0), (1, 1), (1, 1), (0, 0)))
    mats = []
    for ph, pw in PHASES:
        taps = []
        for dh in range(2):
            for dw in range(2):
                taps.append(xp[:, ph + dh:ph + dh + H, pw + dw:pw + dw + W, :])
        mats.append(jnp.stack(taps, axis=3).reshape(N * H * W, 4 * Cin))
    return jnp.stack(mats, axis=0)


def _interleave_phases(y):
    """y: (4, N, H, W, C) in PHASES order -> (N, 2H, 2W, C)."""
    _, N, H, W, C = y.shape
    even = jnp.stack([y[0], y[1]], axis=3)   # column parity for even rows
    odd = jnp.stack([y[2], y[3]], axis=3)    # column parity for odd rows
    full = jnp.stack([even, odd], axis=2)    # (N, H, 2, W, 2, C)
    return full.reshape(N, 2 * H, 2 * W, C)


def _convt_s2_bn_relu(x, w, gamma, beta):
    """ConvTranspose2d(Cin->Cout, 4, 2, 1, bias=False) + BatchNorm + ReLU."""
    N, H, W, Cin = x.shape
    Cout = w.shape[1]
    a = _subpixel_patches(x)                          # (4, N*H*W, 4*Cin) bf16
    b = _subpixel_weights(w).astype(x.dtype)          # (4, 4*Cin, Cout) bf16
    out, csum, csumsq = gemm_with_stats(a, b)         # out fp32
    count = 4 * N * H * W                             # == N * (2H) * (2W)
    scale, shift = _bn_scale_shift(csum.reshape(-1), csumsq.reshape(-1),
                                   count, gamma, beta)
    act = bn_relu_apply(out.reshape(4 * N * H * W, Cout), scale, shift)
    return _interleave_phases(act.reshape(4, N, H, W, Cout))   # (N, 2H, 2W, Cout)


def _convt_s2_tail_tanh(x, w):
    """Final ConvTranspose2d(Cin->1, 4, 2, 1) + Tanh via the 'input GEMM' form:
       (N*H*W, Cin) @ (Cin, 16 taps), then col2im overlap-add + Pallas tanh."""
    N, H, W, Cin = x.shape
    a = x.reshape(1, N * H * W, Cin)
    b = w.reshape(1, Cin, 16).astype(x.dtype)         # (Cin,1,4,4) -> taps t = 4*kh+kw
    taps, _, _ = gemm_with_stats(a, b)                # (1, N*H*W, 16) fp32
    tp = jnp.pad(taps.reshape(N, H, W, 16), ((0, 0), (1, 1), (1, 1), (0, 0)))
    phase_imgs = []
    for ph, pw in PHASES:
        acc = jnp.zeros((N, H, W), jnp.float32)
        for dh in range(2):
            for dw in range(2):
                t = (3 - ph - 2 * dh) * 4 + (3 - pw - 2 * dw)
                acc = acc + tp[:, ph + dh:ph + dh + H, pw + dw:pw + dw + W, t]
        phase_imgs.append(acc[..., None])
    pre = _interleave_phases(jnp.stack(phase_imgs, axis=0))[..., 0]   # (N, 2H, 2W)
    total = N * (2 * H) * (2 * W)
    assert total % 128 == 0
    img = tanh_pallas(pre.reshape(total // 128, 128))
    return img.reshape(N, 2 * H, 2 * W)


# ---------------------------------------------------------------------------
# Full Generator forward (PyTorch-facing NCHW in / NCHW out)
# ---------------------------------------------------------------------------
def generator_forward(x_nchw, params):
    N, latent = x_nchw.shape[0], x_nchw.shape[1]

    # Layer 1: 1x1 input, stride 1, pad 0  ==  plain GEMM (N, latent) @ (latent, 4*4*256)
    x = x_nchw.reshape(N, latent).astype(COMPUTE_DTYPE)
    w1 = params["w1"]
    c1 = w1.shape[1]
    w1g = jnp.transpose(w1, (0, 2, 3, 1)).reshape(latent, 16 * c1).astype(COMPUTE_DTYPE)
    out1, s1, q1 = gemm_with_stats(x[None], w1g[None])
    # GEMM columns are (h, w, c): fold the 16 spatial positions into per-channel stats.
    scale, shift = _bn_scale_shift(s1.reshape(16, c1).sum(0), q1.reshape(16, c1).sum(0),
                                   N * 16, params["g1"], params["b1"])
    act = bn_relu_apply(out1.reshape(N * 16, c1), scale, shift).reshape(N, 4, 4, c1)

    # Layers 2-3: sub-pixel transposed conv + BN + ReLU
    act = _convt_s2_bn_relu(act, params["w2"], params["g2"], params["b2"])   # (N, 8, 8, 128)
    act = _convt_s2_bn_relu(act, params["w3"], params["g3"], params["b3"])   # (N,16,16, 64)

    # Layer 4: transposed conv to 1 channel + Tanh
    img = _convt_s2_tail_tanh(act, params["w4"])                             # (N, 32, 32)
    return img.reshape(N, 1, 32, 32)


# ---------------------------------------------------------------------------
# Pure-JAX reference (fp32) for correctness checking
# ---------------------------------------------------------------------------
def reference_forward(x, params, eps=BN_EPS):
    def convt(h, w, stride, padding):
        k = w.shape[2]
        rhs = jnp.transpose(w[:, :, ::-1, ::-1], (1, 0, 2, 3))   # (Cout, Cin, k, k)
        pad = k - 1 - padding
        return lax.conv_general_dilated(
            h, rhs, window_strides=(1, 1), padding=[(pad, pad), (pad, pad)],
            lhs_dilation=(stride, stride),
            dimension_numbers=("NCHW", "OIHW", "NCHW"))

    def bn_relu(h, g, b):
        mean = h.mean(axis=(0, 2, 3), keepdims=True)
        var = ((h - mean) ** 2).mean(axis=(0, 2, 3), keepdims=True)
        y = (h - mean) * lax.rsqrt(var + eps) * g.reshape(1, -1, 1, 1) + b.reshape(1, -1, 1, 1)
        return jnp.maximum(y, 0.0)

    h = bn_relu(convt(x, params["w1"], 1, 0), params["g1"], params["b1"])
    h = bn_relu(convt(h, params["w2"], 2, 1), params["g2"], params["b2"])
    h = bn_relu(convt(h, params["w3"], 2, 1), params["g3"], params["b3"])
    return jnp.tanh(convt(h, params["w4"], 2, 1))


def init_params(key, latent_size=100):
    k1, k2, k3, k4 = jax.random.split(key, 4)
    std = 0.02  # DCGAN-style synthetic init
    return {
        "w1": std * jax.random.normal(k1, (latent_size, 256, 4, 4), jnp.float32),
        "g1": jnp.ones((256,), jnp.float32), "b1": jnp.zeros((256,), jnp.float32),
        "w2": std * jax.random.normal(k2, (256, 128, 4, 4), jnp.float32),
        "g2": jnp.ones((128,), jnp.float32), "b2": jnp.zeros((128,), jnp.float32),
        "w3": std * jax.random.normal(k3, (128, 64, 4, 4), jnp.float32),
        "g3": jnp.ones((64,), jnp.float32), "b3": jnp.zeros((64,), jnp.float32),
        "w4": std * jax.random.normal(k4, (64, 1, 4, 4), jnp.float32),
    }


if __name__ == "__main__":
    key = jax.random.PRNGKey(0)
    pkey, xkey = jax.random.split(key)
    params = init_params(pkey, latent_size=100)

    # Latent input, NCHW as in PyTorch: (batch=2, latent=100, 1, 1)
    x = jax.random.normal(xkey, (2, 100, 1, 1), jnp.float32)

    fwd = jax.jit(generator_forward)
    out = jax.block_until_ready(fwd(x, params))

    assert out.shape == (2, 1, 32, 32), out.shape
    assert bool(jnp.all(jnp.isfinite(out)))
    assert bool(jnp.all(jnp.abs(out) <= 1.0 + 1e-6))   # tanh range

    ref = jax.block_until_ready(jax.jit(reference_forward)(x, params))
    max_err = float(jnp.max(jnp.abs(out - ref)))
    assert max_err < 5e-2, f"max abs error vs reference = {max_err}"

    print("KERNEL_OK")
</pallas_src>

<mosaic_0001>
module attributes {stable_mosaic.version = 11 : i64} {
  func.func @_gemm_stats_kernel(%arg0: i32, %arg1: i32, %arg2: i32, %arg3: memref<1x2x100xbf16, #tpu.memory_space<vmem>>, %arg4: memref<1x100x256xbf16, #tpu.memory_space<vmem>>, %arg5: memref<1x2x256xf32, #tpu.memory_space<vmem>>, %arg6: memref<1x256xf32, #tpu.memory_space<vmem>>, %arg7: memref<1x256xf32, #tpu.memory_space<vmem>>) attributes {dimension_semantics = [#tpu.dimension_semantics<parallel>, #tpu.dimension_semantics<arbitrary>, #tpu.dimension_semantics<arbitrary>], iteration_bounds = array<i64: 16, 1, 1>, scalar_prefetch = 0 : i64, scratch_operands = 0 : i64, tpu.core_type = #tpu.core_type<tc>, window_params = [{transform_indices = @transform_0, window_bounds = array<i64: 1, 2, 100>}, {transform_indices = @transform_1, window_bounds = array<i64: 1, 100, 256>}, {transform_indices = @transform_2, window_bounds = array<i64: 1, 2, 256>}, {transform_indices = @transform_3, window_bounds = array<i64: 1, 256>}, {transform_indices = @transform_4, window_bounds = array<i64: 1, 256>}]} {
    %c0 = arith.constant 0 : index
    %c0_0 = arith.constant 0 : index
    %c0_1 = arith.constant 0 : index
    %0 = vector.load %arg3[%c0, %c0_0, %c0_1] : memref<1x2x100xbf16, #tpu.memory_space<vmem>>, vector<1x2x100xbf16>
    %1 = vector.shape_cast %0 : vector<1x2x100xbf16> to vector<2x100xbf16>
    %c0_2 = arith.constant 0 : index
    %c0_3 = arith.constant 0 : index
    %c0_4 = arith.constant 0 : index
    %2 = vector.load %arg4[%c0_2, %c0_3, %c0_4] : memref<1x100x256xbf16, #tpu.memory_space<vmem>>, vector<1x100x256xbf16>
    %3 = vector.shape_cast %2 : vector<1x100x256xbf16> to vector<100x256xbf16>
    %cst = arith.constant dense<0.000000e+00> : vector<2x256xf32>
    %4 = tpu.matmul %1, %3, %cst {dimension_numbers = #tpu.dot_dimension_numbers<[1], [0], [0], [1], [0, 0, 1, 1], [], []>} : vector<2x100xbf16>, vector<100x256xbf16>, vector<2x256xf32> -> vector<2x256xf32>
    %c0_5 = arith.constant 0 : index
    %c0_6 = arith.constant 0 : index
    %c0_7 = arith.constant 0 : index
    %5 = vector.load %arg5[%c0_5, %c0_6, %c0_7] : memref<1x2x256xf32, #tpu.memory_space<vmem>>, vector<1x2x256xf32>
    %6 = vector.shape_cast %5 : vector<1x2x256xf32> to vector<2x256xf32>
    %7 = vector.shape_cast %4 : vector<2x256xf32> to vector<1x2x256xf32>
    tpu.vector_store %arg5[%c0_5, %c0_6, %c0_7], %7 {strides = array<i32>} : memref<1x2x256xf32, #tpu.memory_space<vmem>>, vector<1x2x256xf32>,
    %c0_i32 = arith.constant 0 : i32
    %8 = arith.cmpi eq, %arg1, %c0_i32 : i32
    %c0_i32_8 = arith.constant 0 : i32
    %9 = arith.cmpi eq, %arg2, %c0_i32_8 : i32
    %10 = arith.andi %8, %9 : i1
    %11 = arith.extui %10 : i1 to i32
    %c0_i32_9 = arith.constant 0 : i32
    %12 = arith.cmpi ne, %11, %c0_i32_9 : i32
    scf.if %12 {
      %cst_20 = arith.constant 0.000000e+00 : f32
      %24 = vector.broadcast %cst_20 : f32 to vector<1x256xf32>
      %c0_21 = arith.constant 0 : index
      %c0_22 = arith.constant 0 : index
      %25 = vector.load %arg6[%c0_21, %c0_22] : memref<1x256xf32, #tpu.memory_space<vmem>>, vector<1x256xf32>
      tpu.vector_store %arg6[%c0_21, %c0_22], %24 {strides = array<i32>} : memref<1x256xf32, #tpu.memory_space<vmem>>, vector<1x256xf32>,
      %cst_23 = arith.constant 0.000000e+00 : f32
      %26 = vector.broadcast %cst_23 : f32 to vector<1x256xf32>
      %c0_24 = arith.constant 0 : index
      %c0_25 = arith.constant 0 : index
      %27 = vector.load %arg7[%c0_24, %c0_25] : memref<1x256xf32, #tpu.memory_space<vmem>>, vector<1x256xf32>
      tpu.vector_store %arg7[%c0_24, %c0_25], %26 {strides = array<i32>} : memref<1x256xf32, #tpu.memory_space<vmem>>, vector<1x256xf32>,
    } else {
    }
    %c0_10 = arith.constant 0 : index
    %c0_11 = arith.constant 0 : index
    %13 = vector.load %arg6[%c0_10, %c0_11] : memref<1x256xf32, #tpu.memory_space<vmem>>, vector<1x256xf32>
    %cst_12 = arith.constant dense<0.000000e+00> : vector<256xf32>
    %14 = vector.multi_reduction <add>, %4, %cst_12 [0] : vector<2x256xf32> to vector<256xf32>
    %15 = vector.shape_cast %14 : vector<256xf32> to vector<1x256xf32>
    %16 = arith.addf %13, %15 : vector<1x256xf32>
    %c0_13 = arith.constant 0 : index
    %c0_14 = arith.constant 0 : index
    %17 = vector.load %arg6[%c0_13, %c0_14] : memref<1x256xf32, #tpu.memory_space<vmem>>, vector<1x256xf32>
    tpu.vector_store %arg6[%c0_13, %c0_14], %16 {strides = array<i32>} : memref<1x256xf32, #tpu.memory_space<vmem>>, vector<1x256xf32>,
    %c0_15 = arith.constant 0 : index
    %c0_16 = arith.constant 0 : index
    %18 = vector.load %arg7[%c0_15, %c0_16] : memref<1x256xf32, #tpu.memory_space<vmem>>, vector<1x256xf32>
    %19 = arith.mulf %4, %4 : vector<2x256xf32>
    %cst_17 = arith.constant dense<0.000000e+00> : vector<256xf32>
    %20 = vector.multi_reduction <add>, %19, %cst_17 [0] : vector<2x256xf32> to vector<256xf32>
    %21 = vector.shape_cast %20 : vector<256xf32> to vector<1x256xf32>
    %22 = arith.addf %18, %21 : vector<1x256xf32>
    %c0_18 = arith.constant 0 : index
    %c0_19 = arith.constant 0 : index
    %23 = vector.load %arg7[%c0_18, %c0_19] : memref<1x256xf32, #tpu.memory_space<vmem>>, vector<1x256xf32>
    tpu.vector_store %arg7[%c0_18, %c0_19], %22 {strides = array<i32>} : memref<1x256xf32, #tpu.memory_space<vmem>>, vector<1x256xf32>,
    return
  }
  func.func @transform_0(%arg0: i32, %arg1: i32, %arg2: i32) -> (i32, i32, i32) {
    %c0_i32 = arith.constant 0 : i32
    %c0_i32_0 = arith.constant 0 : i32
    return %arg1, %arg2, %c0_i32 : i32, i32, i32
  }
  func.func @transform_1(%arg0: i32, %arg1: i32, %arg2: i32) -> (i32, i32, i32) {
    %c0_i32 = arith.constant 0 : i32
    %c0_i32_0 = arith.constant 0 : i32
    return %arg1, %c0_i32, %arg0 : i32, i32, i32
  }
  func.func @transform_2(%arg0: i32, %arg1: i32, %arg2: i32) -> (i32, i32, i32) {
    %c0_i32 = arith.constant 0 : i32
    return %arg1, %arg2, %arg0 : i32, i32, i32
  }
  func.func @transform_3(%arg0: i32, %arg1: i32, %arg2: i32) -> (i32, i32) {
    %c0_i32 = arith.constant 0 : i32
    %c0_i32_0 = arith.constant 0 : i32
    return %c0_i32, %arg0 : i32, i32
  }
  func.func @transform_4(%arg0: i32, %arg1: i32, %arg2: i32) -> (i32, i32) {
    %c0_i32 = arith.constant 0 : i32
    %c0_i32_0 = arith.constant 0 : i32
    return %c0_i32, %arg0 : i32, i32
  }
}

module attributes {stable_mosaic.version = 11 : i64} {
  func.func @_bn_relu_apply_kernel(%arg0: i32, %arg1: memref<32x256xf32, #tpu.memory_space<vmem>>, %arg2: memref<1x256xf32, #tpu.memory_space<vmem>>, %arg3: memref<1x256xf32, #tpu.memory_space<vmem>>, %arg4: memref<32x256xbf16, #tpu.memory_space<vmem>>) attributes {dimension_semantics = [#tpu.dimension_semantics<parallel>], iteration_bounds = array<i64: 1>, scalar_prefetch = 0 : i64, scratch_operands = 0 : i64, tpu.core_type = #tpu.core_type<tc>, window_params = [{transform_indices = @transform_0, window_bounds = array<i64: 32, 256>}, {pipeline_mode = #tpu.pipeline_mode<synchronous>, transform_indices = @transform_1, window_bounds = array<i64: 1, 256>}, {pipeline_mode = #tpu.pipeline_mode<synchronous>, transform_indices = @transform_2, window_bounds = array<i64: 1, 256>}, {transform_indices = @transform_3, window_bounds = array<i64: 32, 256>}]} {
    %c0 = arith.constant 0 : index
    %c0_0 = arith.constant 0 : index
    %0 = vector.load %arg1[%c0, %c0_0] : memref<32x256xf32, #tpu.memory_space<vmem>>, vector<32x256xf32>
    %c0_1 = arith.constant 0 : index
    %c0_2 = arith.constant 0 : index
    %1 = vector.load %arg2[%c0_1, %c0_2] : memref<1x256xf32, #tpu.memory_space<vmem>>, vector<1x256xf32>
    %2 = vector.broadcast %1 : vector<1x256xf32> to vector<32x256xf32>
    %3 = arith.mulf %0, %2 : vector<32x256xf32>
    %c0_3 = arith.constant 0 : index
    %c0_4 = arith.constant 0 : index
    %4 = vector.load %arg3[%c0_3, %c0_4] : memref<1x256xf32, #tpu.memory_space<vmem>>, vector<1x256xf32>
    %5 = vector.broadcast %4 : vector<1x256xf32> to vector<32x256xf32>
    %6 = arith.addf %3, %5 : vector<32x256xf32>
    %cst = arith.constant 0.000000e+00 : f32
    %7 = vector.broadcast %cst : f32 to vector<32x256xf32>
    %8 = arith.maximumf %6, %7 : vector<32x256xf32>
    %9 = arith.truncf %8 : vector<32x256xf32> to vector<32x256xbf16>
    %c0_5 = arith.constant 0 : index
    %c0_6 = arith.constant 0 : index
    %10 = vector.load %arg4[%c0_5, %c0_6] : memref<32x256xbf16, #tpu.memory_space<vmem>>, vector<32x256xbf16>
    tpu.vector_store %arg4[%c0_5, %c0_6], %9 {strides = array<i32>} : memref<32x256xbf16, #tpu.memory_space<vmem>>, vector<32x256xbf16>,
    return
  }
  func.func @transform_0(%arg0: i32) -> (i32, i32) {
    %c0_i32 = arith.constant 0 : i32
    %c0_i32_0 = arith.constant 0 : i32
    return %arg0, %c0_i32 : i32, i32
  }
  func.func @transform_1(%arg0: i32) -> (i32, i32) {
    %c0_i32 = arith.constant 0 : i32
    %c0_i32_0 = arith.constant 0 : i32
    %c0_i32_1 = arith.constant 0 : i32
    return %c0_i32, %c0_i32_0 : i32, i32
  }
  func.func @transform_2(%arg0: i32) -> (i32, i32) {
    %c0_i32 = arith.constant 0 : i32
    %c0_i32_0 = arith.constant 0 : i32
    %c0_i32_1 = arith.constant 0 : i32
    return %c0_i32, %c0_i32_0 : i32, i32
  }
  func.func @transform_3(%arg0: i32) -> (i32, i32) {
    %c0_i32 = arith.constant 0 : i32
    %c0_i32_0 = arith.constant 0 : i32
    return %arg0, %c0_i32 : i32, i32
  }
}

module attributes {stable_mosaic.version = 11 : i64} {
  func.func @_gemm_stats_kernel(%arg0: i32, %arg1: i32, %arg2: i32, %arg3: memref<1x32x1024xbf16, #tpu.memory_space<vmem>>, %arg4: memref<1x1024x128xbf16, #tpu.memory_space<vmem>>, %arg5: memref<1x32x128xf32, #tpu.memory_space<vmem>>, %arg6: memref<1x128xf32, #tpu.memory_space<vmem>>, %arg7: memref<1x128xf32, #tpu.memory_space<vmem>>) attributes {dimension_semantics = [#tpu.dimension_semantics<parallel>, #tpu.dimension_semantics<arbitrary>, #tpu.dimension_semantics<arbitrary>], iteration_bounds = array<i64: 1, 4, 1>, scalar_prefetch = 0 : i64, scratch_operands = 0 : i64, tpu.core_type = #tpu.core_type<tc>, window_params = [{transform_indices = @transform_0, window_bounds = array<i64: 1, 32, 1024>}, {transform_indices = @transform_1, window_bounds = array<i64: 1, 1024, 128>}, {transform_indices = @transform_2, window_bounds = array<i64: 1, 32, 128>}, {transform_indices = @transform_3, window_bounds = array<i64: 1, 128>}, {transform_indices = @transform_4, window_bounds = array<i64: 1, 128>}]} {
    %c0 = arith.constant 0 : index
    %c0_0 = arith.constant 0 : index
    %c0_1 = arith.constant 0 : index
    %0 = vector.load %arg3[%c0, %c0_0, %c0_1] : memref<1x32x1024xbf16, #tpu.memory_space<vmem>>, vector<1x32x1024xbf16>
    %1 = vector.shape_cast %0 : vector<1x32x1024xbf16> to vector<32x1024xbf16>
    %c0_2 = arith.constant 0 : index
    %c0_3 = arith.constant 0 : index
    %c0_4 = arith.constant 0 : index
    %2 = vector.load %arg4[%c0_2, %c0_3, %c0_4] : memref<1x1024x128xbf16, #tpu.memory_space<vmem>>, vector<1x1024x128xbf16>
    %3 = vector.shape_cast %2 : vector<1x1024x128xbf16> to vector<1024x128xbf16>
    %cst = arith.constant dense<0.000000e+00> : vector<32x128xf32>
    %4 = tpu.matmul %1, %3, %cst {dimension_numbers = #tpu.dot_dimension_numbers<[1], [0], [0], [1], [0, 0, 1, 1], [], []>} : vector<32x1024xbf16>, vector<1024x128xbf16>, vector<32x128xf32> -> vector<32x128xf32>
    %c0_5 = arith.constant 0 : index
    %c0_6 = arith.constant 0 : index
    %c0_7 = arith.constant 0 : index
    %5 = vector.load %arg5[%c0_5, %c0_6, %c0_7] : memref<1x32x128xf32, #tpu.memory_space<vmem>>, vector<1x32x128xf32>
    %6 = vector.shape_cast %5 : vector<1x32x128xf32> to vector<32x128xf32>
    %7 = vector.shape_cast %4 : vector<32x128xf32> to vector<1x32x128xf32>
    tpu.vector_store %arg5[%c0_5, %c0_6, %c0_7], %7 {strides = array<i32>} : memref<1x32x128xf32, #tpu.memory_space<vmem>>, vector<1x32x128xf32>,
    %c0_i32 = arith.constant 0 : i32
    %8 = arith.cmpi eq, %arg1, %c0_i32 : i32
    %c0_i32_8 = arith.constant 0 : i32
    %9 = arith.cmpi eq, %arg2, %c0_i32_8 : i32
    %10 = arith.andi %8, %9 : i1
    %11 = arith.extui %10 : i1 to i32
    %c0_i32_9 = arith.constant 0 : i32
    %12 = arith.cmpi ne, %11, %c0_i32_9 : i32
    scf.if %12 {
      %cst_20 = arith.constant 0.000000e+00 : f32
      %24 = vector.broadcast %cst_20 : f32 to vector<1x128xf32>
      %c0_21 = arith.constant 0 : index
      %c0_22 = arith.constant 0 : index
      %25 = vector.load %arg6[%c0_21, %c0_22] : memref<1x128xf32, #tpu.memory_space<vmem>>, vector<1x128xf32>
      tpu.vector_store %arg6[%c0_21, %c0_22], %24 {strides = array<i32>} : memref<1x128xf32, #tpu.memory_space<vmem>>, vector<1x128xf32>,
      %cst_23 = arith.constant 0.000000e+00 : f32
      %26 = vector.broadcast %cst_23 : f32 to vector<1x128xf32>
      %c0_24 = arith.constant 0 : index
      %c0_25 = arith.constant 0 : index
      %27 = vector.load %arg7[%c0_24, %c0_25] : memref<1x128xf32, #tpu.memory_space<vmem>>, vector<1x128xf32>
      tpu.vector_store %arg7[%c0_24, %c0_25], %26 {strides = array<i32>} : memref<1x128xf32, #tpu.memory_space<vmem>>, vector<1x128xf32>,
    } else {
    }
    %c0_10 = arith.constant 0 : index
    %c0_11 = arith.constant 0 : index
    %13 = vector.load %arg6[%c0_10, %c0_11] : memref<1x128xf32, #tpu.memory_space<vmem>>, vector<1x128xf32>
    %cst_12 = arith.constant dense<0.000000e+00> : vector<128xf32>
    %14 = vector.multi_reduction <add>, %4, %cst_12 [0] : vector<32x128xf32> to vector<128xf32>
    %15 = vector.shape_cast %14 : vector<128xf32> to vector<1x128xf32>
    %16 = arith.addf %13, %15 : vector<1x128xf32>
    %c0_13 = arith.constant 0 : index
    %c0_14 = arith.constant 0 : index
    %17 = vector.load %arg6[%c0_13, %c0_14] : memref<1x128xf32, #tpu.memory_space<vmem>>, vector<1x128xf32>
    tpu.vector_store %arg6[%c0_13, %c0_14], %16 {strides = array<i32>} : memref<1x128xf32, #tpu.memory_space<vmem>>, vector<1x128xf32>,
    %c0_15 = arith.constant 0 : index
    %c0_16 = arith.constant 0 : index
    %18 = vector.load %arg7[%c0_15, %c0_16] : memref<1x128xf32, #tpu.memory_space<vmem>>, vector<1x128xf32>
    %19 = arith.mulf %4, %4 : vector<32x128xf32>
    %cst_17 = arith.constant dense<0.000000e+00> : vector<128xf32>
    %20 = vector.multi_reduction <add>, %19, %cst_17 [0] : vector<32x128xf32> to vector<128xf32>
    %21 = vector.shape_cast %20 : vector<128xf32> to vector<1x128xf32>
    %22 = arith.addf %18, %21 : vector<1x128xf32>
    %c0_18 = arith.constant 0 : index
    %c0_19 = arith.constant 0 : index
    %23 = vector.load %arg7[%c0_18, %c0_19] : memref<1x128xf32, #tpu.memory_space<vmem>>, vector<1x128xf32>
    tpu.vector_store %arg7[%c0_18, %c0_19], %22 {strides = array<i32>} : memref<1x128xf32, #tpu.memory_space<vmem>>, vector<1x128xf32>,
    return
  }
  func.func @transform_0(%arg0: i32, %arg1: i32, %arg2: i32) -> (i32, i32, i32) {
    %c0_i32 = arith.constant 0 : i32
    %c0_i32_0 = arith.constant 0 : i32
    return %arg1, %arg2, %c0_i32 : i32, i32, i32
  }
  func.func @transform_1(%arg0: i32, %arg1: i32, %arg2: i32) -> (i32, i32, i32) {
    %c0_i32 = arith.constant 0 : i32
    %c0_i32_0 = arith.constant 0 : i32
    return %arg1, %c0_i32, %arg0 : i32, i32, i32
  }
  func.func @transform_2(%arg0: i32, %arg1: i32, %arg2: i32) -> (i32, i32, i32) {
    %c0_i32 = arith.constant 0 : i32
    return %arg1, %arg2, %arg0 : i32, i32, i32
  }
  func.func @transform_3(%arg0: i32, %arg1: i32, %arg2: i32) -> (i32, i32) {
    %c0_i32 = arith.constant 0 : i32
    %c0_i32_0 = arith.constant 0 : i32
    return %c0_i32, %arg0 : i32, i32
  }
  func.func @transform_4(%arg0: i32, %arg1: i32, %arg2: i32) -> (i32, i32) {
    %c0_i32 = arith.constant 0 : i32
    %c0_i32_0 = arith.constant 0 : i32
    return %c0_i32, %arg0 : i32, i32
  }
}

module attributes {stable_mosaic.version = 11 : i64} {
  func.func @_bn_relu_apply_kernel(%arg0: i32, %arg1: memref<128x128xf32, #tpu.memory_space<vmem>>, %arg2: memref<1x128xf32, #tpu.memory_space<vmem>>, %arg3: memref<1x128xf32, #tpu.memory_space<vmem>>, %arg4: memref<128x128xbf16, #tpu.memory_space<vmem>>) attributes {dimension_semantics = [#tpu.dimension_semantics<parallel>], iteration_bounds = array<i64: 1>, scalar_prefetch = 0 : i64, scratch_operands = 0 : i64, tpu.core_type = #tpu.core_type<tc>, window_params = [{transform_indices = @transform_0, window_bounds = array<i64: 128, 128>}, {pipeline_mode = #tpu.pipeline_mode<synchronous>, transform_indices = @transform_1, window_bounds = array<i64: 1, 128>}, {pipeline_mode = #tpu.pipeline_mode<synchronous>, transform_indices = @transform_2, window_bounds = array<i64: 1, 128>}, {transform_indices = @transform_3, window_bounds = array<i64: 128, 128>}]} {
    %c0 = arith.constant 0 : index
    %c0_0 = arith.constant 0 : index
    %0 = vector.load %arg1[%c0, %c0_0] : memref<128x128xf32, #tpu.memory_space<vmem>>, vector<128x128xf32>
    %c0_1 = arith.constant 0 : index
    %c0_2 = arith.constant 0 : index
    %1 = vector.load %arg2[%c0_1, %c0_2] : memref<1x128xf32, #tpu.memory_space<vmem>>, vector<1x128xf32>
    %2 = vector.broadcast %1 : vector<1x128xf32> to vector<128x128xf32>
    %3 = arith.mulf %0, %2 : vector<128x128xf32>
    %c0_3 = arith.constant 0 : index
    %c0_4 = arith.constant 0 : index
    %4 = vector.load %arg3[%c0_3, %c0_4] : memref<1x128xf32, #tpu.memory_space<vmem>>, vector<1x128xf32>
    %5 = vector.broadcast %4 : vector<1x128xf32> to vector<128x128xf32>
    %6 = arith.addf %3, %5 : vector<128x128xf32>
    %cst = arith.constant 0.000000e+00 : f32
    %7 = vector.broadcast %cst : f32 to vector<128x128xf32>
    %8 = arith.maximumf %6, %7 : vector<128x128xf32>
    %9 = arith.truncf %8 : vector<128x128xf32> to vector<128x128xbf16>
    %c0_5 = arith.constant 0 : index
    %c0_6 = arith.constant 0 : index
    %10 = vector.load %arg4[%c0_5, %c0_6] : memref<128x128xbf16, #tpu.memory_space<vmem>>, vector<128x128xbf16>
    tpu.vector_store %arg4[%c0_5, %c0_6], %9 {strides = array<i32>} : memref<128x128xbf16, #tpu.memory_space<vmem>>, vector<128x128xbf16>,
    return
  }
  func.func @transform_0(%arg0: i32) -> (i32, i32) {
    %c0_i32 = arith.constant 0 : i32
    %c0_i32_0 = arith.constant 0 : i32
    return %arg0, %c0_i32 : i32, i32
  }
  func.func @transform_1(%arg0: i32) -> (i32, i32) {
    %c0_i32 = arith.constant 0 : i32
    %c0_i32_0 = arith.constant 0 : i32
    %c0_i32_1 = arith.constant 0 : i32
    return %c0_i32, %c0_i32_0 : i32, i32
  }
  func.func @transform_2(%arg0: i32) -> (i32, i32) {
    %c0_i32 = arith.constant 0 : i32
    %c0_i32_0 = arith.constant 0 : i32
    %c0_i32_1 = arith.constant 0 : i32
    return %c0_i32, %c0_i32_0 : i32, i32
  }
  func.func @transform_3(%arg0: i32) -> (i32, i32) {
    %c0_i32 = arith.constant 0 : i32
    %c0_i32_0 = arith.constant 0 : i32
    return %arg0, %c0_i32 : i32, i32
  }
}

module attributes {stable_mosaic.version = 11 : i64} {
  func.func @_gemm_stats_kernel(%arg0: i32, %arg1: i32, %arg2: i32, %arg3: memref<1x128x512xbf16, #tpu.memory_space<vmem>>, %arg4: memref<1x512x64xbf16, #tpu.memory_space<vmem>>, %arg5: memref<1x128x64xf32, #tpu.memory_space<vmem>>, %arg6: memref<1x64xf32, #tpu.memory_space<vmem>>, %arg7: memref<1x64xf32, #tpu.memory_space<vmem>>) attributes {dimension_semantics = [#tpu.dimension_semantics<parallel>, #tpu.dimension_semantics<arbitrary>, #tpu.dimension_semantics<arbitrary>], iteration_bounds = array<i64: 1, 4, 1>, scalar_prefetch = 0 : i64, scratch_operands = 0 : i64, tpu.core_type = #tpu.core_type<tc>, window_params = [{transform_indices = @transform_0, window_bounds = array<i64: 1, 128, 512>}, {transform_indices = @transform_1, window_bounds = array<i64: 1, 512, 64>}, {transform_indices = @transform_2, window_bounds = array<i64: 1, 128, 64>}, {transform_indices = @transform_3, window_bounds = array<i64: 1, 64>}, {transform_indices = @transform_4, window_bounds = array<i64: 1, 64>}]} {
    %c0 = arith.constant 0 : index
    %c0_0 = arith.constant 0 : index
    %c0_1 = arith.constant 0 : index
    %0 = vector.load %arg3[%c0, %c0_0, %c0_1] : memref<1x128x512xbf16, #tpu.memory_space<vmem>>, vector<1x128x512xbf16>
    %1 = vector.shape_cast %0 : vector<1x128x512xbf16> to vector<128x512xbf16>
    %c0_2 = arith.constant 0 : index
    %c0_3 = arith.constant 0 : index
    %c0_4 = arith.constant 0 : index
    %2 = vector.load %arg4[%c0_2, %c0_3, %c0_4] : memref<1x512x64xbf16, #tpu.memory_space<vmem>>, vector<1x512x64xbf16>
    %3 = vector.shape_cast %2 : vector<1x512x64xbf16> to vector<512x64xbf16>
    %cst = arith.constant dense<0.000000e+00> : vector<128x64xf32>
    %4 = tpu.matmul %1, %3, %cst {dimension_numbers = #tpu.dot_dimension_numbers<[1], [0], [0], [1], [0, 0, 1, 1], [], []>} : vector<128x512xbf16>, vector<512x64xbf16>, vector<128x64xf32> -> vector<128x64xf32>
    %c0_5 = arith.constant 0 : index
    %c0_6 = arith.constant 0 : index
    %c0_7 = arith.constant 0 : index
    %5 = vector.load %arg5[%c0_5, %c0_6, %c0_7] : memref<1x128x64xf32, #tpu.memory_space<vmem>>, vector<1x128x64xf32>
    %6 = vector.shape_cast %5 : vector<1x128x64xf32> to vector<128x64xf32>
    %7 = vector.shape_cast %4 : vector<128x64xf32> to vector<1x128x64xf32>
    tpu.vector_store %arg5[%c0_5, %c0_6, %c0_7], %7 {strides = array<i32>} : memref<1x128x64xf32, #tpu.memory_space<vmem>>, vector<1x128x64xf32>,
    %c0_i32 = arith.constant 0 : i32
    %8 = arith.cmpi eq, %arg1, %c0_i32 : i32
    %c0_i32_8 = arith.constant 0 : i32
    %9 = arith.cmpi eq, %arg2, %c0_i32_8 : i32
    %10 = arith.andi %8, %9 : i1
    %11 = arith.extui %10 : i1 to i32
    %c0_i32_9 = arith.constant 0 : i32
    %12 = arith.cmpi ne, %11, %c0_i32_9 : i32
    scf.if %12 {
      %cst_20 = arith.constant 0.000000e+00 : f32
      %24 = vector.broadcast %cst_20 : f32 to vector<1x64xf32>
      %c0_21 = arith.constant 0 : index
      %c0_22 = arith.constant 0 : index
      %25 = vector.load %arg6[%c0_21, %c0_22] : memref<1x64xf32, #tpu.memory_space<vmem>>, vector<1x64xf32>
      tpu.vector_store %arg6[%c0_21, %c0_22], %24 {strides = array<i32>} : memref<1x64xf32, #tpu.memory_space<vmem>>, vector<1x64xf32>,
      %cst_23 = arith.constant 0.000000e+00 : f32
      %26 = vector.broadcast %cst_23 : f32 to vector<1x64xf32>
      %c0_24 = arith.constant 0 : index
      %c0_25 = arith.constant 0 : index
      %27 = vector.load %arg7[%c0_24, %c0_25] : memref<1x64xf32, #tpu.memory_space<vmem>>, vector<1x64xf32>
      tpu.vector_store %arg7[%c0_24, %c0_25], %26 {strides = array<i32>} : memref<1x64xf32, #tpu.memory_space<vmem>>, vector<1x64xf32>,
    } else {
    }
    %c0_10 = arith.constant 0 : index
    %c0_11 = arith.constant 0 : index
    %13 = vector.load %arg6[%c0_10, %c0_11] : memref<1x64xf32, #tpu.memory_space<vmem>>, vector<1x64xf32>
    %cst_12 = arith.constant dense<0.000000e+00> : vector<64xf32>
    %14 = vector.multi_reduction <add>, %4, %cst_12 [0] : vector<128x64xf32> to vector<64xf32>
    %15 = vector.shape_cast %14 : vector<64xf32> to vector<1x64xf32>
    %16 = arith.addf %13, %15 : vector<1x64xf32>
    %c0_13 = arith.constant 0 : index
    %c0_14 = arith.constant 0 : index
    %17 = vector.load %arg6[%c0_13, %c0_14] : memref<1x64xf32, #tpu.memory_space<vmem>>, vector<1x64xf32>
    tpu.vector_store %arg6[%c0_13, %c0_14], %16 {strides = array<i32>} : memref<1x64xf32, #tpu.memory_space<vmem>>, vector<1x64xf32>,
    %c0_15 = arith.constant 0 : index
    %c0_16 = arith.constant 0 : index
    %18 = vector.load %arg7[%c0_15, %c0_16] : memref<1x64xf32, #tpu.memory_space<vmem>>, vector<1x64xf32>
    %19 = arith.mulf %4, %4 : vector<128x64xf32>
    %cst_17 = arith.constant dense<0.000000e+00> : vector<64xf32>
    %20 = vector.multi_reduction <add>, %19, %cst_17 [0] : vector<128x64xf32> to vector<64xf32>
    %21 = vector.shape_cast %20 : vector<64xf32> to vector<1x64xf32>
    %22 = arith.addf %18, %21 : vector<1x64xf32>
    %c0_18 = arith.constant 0 : index
    %c0_19 = arith.constant 0 : index
    %23 = vector.load %arg7[%c0_18, %c0_19] : memref<1x64xf32, #tpu.memory_space<vmem>>, vector<1x64xf32>
    tpu.vector_store %arg7[%c0_18, %c0_19], %22 {strides = array<i32>} : memref<1x64xf32, #tpu.memory_space<vmem>>, vector<1x64xf32>,
    return
  }
  func.func @transform_0(%arg0: i32, %arg1: i32, %arg2: i32) -> (i32, i32, i32) {
    %c0_i32 = arith.constant 0 : i32
    %c0_i32_0 = arith.constant 0 : i32
    return %arg1, %arg2, %c0_i32 : i32, i32, i32
  }
  func.func @transform_1(%arg0: i32, %arg1: i32, %arg2: i32) -> (i32, i32, i32) {
    %c0_i32 = arith.constant 0 : i32
    %c0_i32_0 = arith.constant 0 : i32
    return %arg1, %c0_i32, %arg0 : i32, i32, i32
  }
  func.func @transform_2(%arg0: i32, %arg1: i32, %arg2: i32) -> (i32, i32, i32) {
    %c0_i32 = arith.constant 0 : i32
    return %arg1, %arg2, %arg0 : i32, i32, i32
  }
  func.func @transform_3(%arg0: i32, %arg1: i32, %arg2: i32) -> (i32, i32) {
    %c0_i32 = arith.constant 0 : i32
    %c0_i32_0 = arith.constant 0 : i32
    return %c0_i32, %arg0 : i32, i32
  }
  func.func @transform_4(%arg0: i32, %arg1: i32, %arg2: i32) -> (i32, i32) {
    %c0_i32 = arith.constant 0 : i32
    %c0_i32_0 = arith.constant 0 : i32
    return %c0_i32, %arg0 : i32, i32
  }
}

module attributes {stable_mosaic.version = 11 : i64} {
  func.func @_bn_relu_apply_kernel(%arg0: i32, %arg1: memref<512x64xf32, #tpu.memory_space<vmem>>, %arg2: memref<1x64xf32, #tpu.memory_space<vmem>>, %arg3: memref<1x64xf32, #tpu.memory_space<vmem>>, %arg4: memref<512x64xbf16, #tpu.memory_space<vmem>>) attributes {dimension_semantics = [#tpu.dimension_semantics<parallel>], iteration_bounds = array<i64: 1>, scalar_prefetch = 0 : i64, scratch_operands = 0 : i64, tpu.core_type = #tpu.core_type<tc>, window_params = [{transform_indices = @transform_0, window_bounds = array<i64: 512, 64>}, {pipeline_mode = #tpu.pipeline_mode<synchronous>, transform_indices = @transform_1, window_bounds = array<i64: 1, 64>}, {pipeline_mode = #tpu.pipeline_mode<synchronous>, transform_indices = @transform_2, window_bounds = array<i64: 1, 64>}, {transform_indices = @transform_3, window_bounds = array<i64: 512, 64>}]} {
    %c0 = arith.constant 0 : index
    %c0_0 = arith.constant 0 : index
    %0 = vector.load %arg1[%c0, %c0_0] : memref<512x64xf32, #tpu.memory_space<vmem>>, vector<512x64xf32>
    %c0_1 = arith.constant 0 : index
    %c0_2 = arith.constant 0 : index
    %1 = vector.load %arg2[%c0_1, %c0_2] : memref<1x64xf32, #tpu.memory_space<vmem>>, vector<1x64xf32>
    %2 = vector.broadcast %1 : vector<1x64xf32> to vector<512x64xf32>
    %3 = arith.mulf %0, %2 : vector<512x64xf32>
    %c0_3 = arith.constant 0 : index
    %c0_4 = arith.constant 0 : index
    %4 = vector.load %arg3[%c0_3, %c0_4] : memref<1x64xf32, #tpu.memory_space<vmem>>, vector<1x64xf32>
    %5 = vector.broadcast %4 : vector<1x64xf32> to vector<512x64xf32>
    %6 = arith.addf %3, %5 : vector<512x64xf32>
    %cst = arith.constant 0.000000e+00 : f32
    %7 = vector.broadcast %cst : f32 to vector<512x64xf32>
    %8 = arith.maximumf %6, %7 : vector<512x64xf32>
    %9 = arith.truncf %8 : vector<512x64xf32> to vector<512x64xbf16>
    %c0_5 = arith.constant 0 : index
    %c0_6 = arith.constant 0 : index
    %10 = vector.load %arg4[%c0_5, %c0_6] : memref<512x64xbf16, #tpu.memory_space<vmem>>, vector<512x64xbf16>
    tpu.vector_store %arg4[%c0_5, %c0_6], %9 {strides = array<i32>} : memref<512x64xbf16, #tpu.memory_space<vmem>>, vector<512x64xbf16>,
    return
  }
  func.func @transform_0(%arg0: i32) -> (i32, i32) {
    %c0_i32 = arith.constant 0 : i32
    %c0_i32_0 = arith.constant 0 : i32
    return %arg0, %c0_i32 : i32, i32
  }
  func.func @transform_1(%arg0: i32) -> (i32, i32) {
    %c0_i32 = arith.constant 0 : i32
    %c0_i32_0 = arith.constant 0 : i32
    %c0_i32_1 = arith.constant 0 : i32
    return %c0_i32, %c0_i32_0 : i32, i32
  }
  func.func @transform_2(%arg0: i32) -> (i32, i32) {
    %c0_i32 = arith.constant 0 : i32
    %c0_i32_0 = arith.constant 0 : i32
    %c0_i32_1 = arith.constant 0 : i32
    return %c0_i32, %c0_i32_0 : i32, i32
  }
  func.func @transform_3(%arg0: i32) -> (i32, i32) {
    %c0_i32 = arith.constant 0 : i32
    %c0_i32_0 = arith.constant 0 : i32
    return %arg0, %c0_i32 : i32, i32
  }
}

module attributes {stable_mosaic.version = 11 : i64} {
  func.func @_gemm_stats_kernel(%arg0: i32, %arg1: i32, %arg2: i32, %arg3: memref<1x256x64xbf16, #tpu.memory_space<vmem>>, %arg4: memref<1x64x16xbf16, #tpu.memory_space<vmem>>, %arg5: memref<1x256x16xf32, #tpu.memory_space<vmem>>, %arg6: memref<1x16xf32, #tpu.memory_space<vmem>>, %arg7: memref<1x16xf32, #tpu.memory_space<vmem>>) attributes {dimension_semantics = [#tpu.dimension_semantics<parallel>, #tpu.dimension_semantics<arbitrary>, #tpu.dimension_semantics<arbitrary>], iteration_bounds = array<i64: 1, 1, 2>, scalar_prefetch = 0 : i64, scratch_operands = 0 : i64, tpu.core_type = #tpu.core_type<tc>, window_params = [{transform_indices = @transform_0, window_bounds = array<i64: 1, 256, 64>}, {transform_indices = @transform_1, window_bounds = array<i64: 1, 64, 16>}, {transform_indices = @transform_2, window_bounds = array<i64: 1, 256, 16>}, {transform_indices = @transform_3, window_bounds = array<i64: 1, 16>}, {transform_indices = @transform_4, window_bounds = array<i64: 1, 16>}]} {
    %c0 = arith.constant 0 : index
    %c0_0 = arith.constant 0 : index
    %c0_1 = arith.constant 0 : index
    %0 = vector.load %arg3[%c0, %c0_0, %c0_1] : memref<1x256x64xbf16, #tpu.memory_space<vmem>>, vector<1x256x64xbf16>
    %1 = vector.shape_cast %0 : vector<1x256x64xbf16> to vector<256x64xbf16>
    %c0_2 = arith.constant 0 : index
    %c0_3 = arith.constant 0 : index
    %c0_4 = arith.constant 0 : index
    %2 = vector.load %arg4[%c0_2, %c0_3, %c0_4] : memref<1x64x16xbf16, #tpu.memory_space<vmem>>, vector<1x64x16xbf16>
    %3 = vector.shape_cast %2 : vector<1x64x16xbf16> to vector<64x16xbf16>
    %cst = arith.constant dense<0.000000e+00> : vector<256x16xf32>
    %4 = tpu.matmul %1, %3, %cst {dimension_numbers = #tpu.dot_dimension_numbers<[1], [0], [0], [1], [0, 0, 1, 1], [], []>} : vector<256x64xbf16>, vector<64x16xbf16>, vector<256x16xf32> -> vector<256x16xf32>
    %c0_5 = arith.constant 0 : index
    %c0_6 = arith.constant 0 : index
    %c0_7 = arith.constant 0 : index
    %5 = vector.load %arg5[%c0_5, %c0_6, %c0_7] : memref<1x256x16xf32, #tpu.memory_space<vmem>>, vector<1x256x16xf32>
    %6 = vector.shape_cast %5 : vector<1x256x16xf32> to vector<256x16xf32>
    %7 = vector.shape_cast %4 : vector<256x16xf32> to vector<1x256x16xf32>
    tpu.vector_store %arg5[%c0_5, %c0_6, %c0_7], %7 {strides = array<i32>} : memref<1x256x16xf32, #tpu.memory_space<vmem>>, vector<1x256x16xf32>,
    %c0_i32 = arith.constant 0 : i32
    %8 = arith.cmpi eq, %arg1, %c0_i32 : i32
    %c0_i32_8 = arith.constant 0 : i32
    %9 = arith.cmpi eq, %arg2, %c0_i32_8 : i32
    %10 = arith.andi %8, %9 : i1
    %11 = arith.extui %10 : i1 to i32
    %c0_i32_9 = arith.constant 0 : i32
    %12 = arith.cmpi ne, %11, %c0_i32_9 : i32
    scf.if %12 {
      %cst_20 = arith.constant 0.000000e+00 : f32
      %24 = vector.broadcast %cst_20 : f32 to vector<1x16xf32>
      %c0_21 = arith.constant 0 : index
      %c0_22 = arith.constant 0 : index
      %25 = vector.load %arg6[%c0_21, %c0_22] : memref<1x16xf32, #tpu.memory_space<vmem>>, vector<1x16xf32>
      tpu.vector_store %arg6[%c0_21, %c0_22], %24 {strides = array<i32>} : memref<1x16xf32, #tpu.memory_space<vmem>>, vector<1x16xf32>,
      %cst_23 = arith.constant 0.000000e+00 : f32
      %26 = vector.broadcast %cst_23 : f32 to vector<1x16xf32>
      %c0_24 = arith.constant 0 : index
      %c0_25 = arith.constant 0 : index
      %27 = vector.load %arg7[%c0_24, %c0_25] : memref<1x16xf32, #tpu.memory_space<vmem>>, vector<1x16xf32>
      tpu.vector_store %arg7[%c0_24, %c0_25], %26 {strides = array<i32>} : memref<1x16xf32, #tpu.memory_space<vmem>>, vector<1x16xf32>,
    } else {
    }
    %c0_10 = arith.constant 0 : index
    %c0_11 = arith.constant 0 : index
    %13 = vector.load %arg6[%c0_10, %c0_11] : memref<1x16xf32, #tpu.memory_space<vmem>>, vector<1x16xf32>
    %cst_12 = arith.constant dense<0.000000e+00> : vector<16xf32>
    %14 = vector.multi_reduction <add>, %4, %cst_12 [0] : vector<256x16xf32> to vector<16xf32>
    %15 = vector.shape_cast %14 : vector<16xf32> to vector<1x16xf32>
    %16 = arith.addf %13, %15 : vector<1x16xf32>
    %c0_13 = arith.constant 0 : index
    %c0_14 = arith.constant 0 : index
    %17 = vector.load %arg6[%c0_13, %c0_14] : memref<1x16xf32, #tpu.memory_space<vmem>>, vector<1x16xf32>
    tpu.vector_store %arg6[%c0_13, %c0_14], %16 {strides = array<i32>} : memref<1x16xf32, #tpu.memory_space<vmem>>, vector<1x16xf32>,
    %c0_15 = arith.constant 0 : index
    %c0_16 = arith.constant 0 : index
    %18 = vector.load %arg7[%c0_15, %c0_16] : memref<1x16xf32, #tpu.memory_space<vmem>>, vector<1x16xf32>
    %19 = arith.mulf %4, %4 : vector<256x16xf32>
    %cst_17 = arith.constant dense<0.000000e+00> : vector<16xf32>
    %20 = vector.multi_reduction <add>, %19, %cst_17 [0] : vector<256x16xf32> to vector<16xf32>
    %21 = vector.shape_cast %20 : vector<16xf32> to vector<1x16xf32>
    %22 = arith.addf %18, %21 : vector<1x16xf32>
    %c0_18 = arith.constant 0 : index
    %c0_19 = arith.constant 0 : index
    %23 = vector.load %arg7[%c0_18, %c0_19] : memref<1x16xf32, #tpu.memory_space<vmem>>, vector<1x16xf32>
    tpu.vector_store %arg7[%c0_18, %c0_19], %22 {strides = array<i32>} : memref<1x16xf32, #tpu.memory_space<vmem>>, vector<1x16xf32>,
    return
  }
  func.func @transform_0(%arg0: i32, %arg1: i32, %arg2: i32) -> (i32, i32, i32) {
    %c0_i32 = arith.constant 0 : i32
    %c0_i32_0 = arith.constant 0 : i32
    return %arg1, %arg2, %c0_i32 : i32, i32, i32
  }
  func.func @transform_1(%arg0: i32, %arg1: i32, %arg2: i32) -> (i32, i32, i32) {
    %c0_i32 = arith.constant 0 : i32
    %c0_i32_0 = arith.constant 0 : i32
    return %arg1, %c0_i32, %arg0 : i32, i32, i32
  }
  func.func @transform_2(%arg0: i32, %arg1: i32, %arg2: i32) -> (i32, i32, i32) {
    %c0_i32 = arith.constant 0 : i32
    return %arg1, %arg2, %arg0 : i32, i32, i32
  }
  func.func @transform_3(%arg0: i32, %arg1: i32, %arg2: i32) -> (i32, i32) {
    %c0_i32 = arith.constant 0 : i32
    %c0_i32_0 = arith.constant 0 : i32
    return %c0_i32, %arg0 : i32, i32
  }
  func.func @transform_4(%arg0: i32, %arg1: i32, %arg2: i32) -> (i32, i32) {
    %c0_i32 = arith.constant 0 : i32
    %c0_i32_0 = arith.constant 0 : i32
    return %c0_i32, %arg0 : i32, i32
  }
}

module attributes {stable_mosaic.version = 11 : i64} {
  func.func @_tanh_kernel(%arg0: i32, %arg1: memref<16x128xf32, #tpu.memory_space<vmem>>, %arg2: memref<16x128xf32, #tpu.memory_space<vmem>>) attributes {dimension_semantics = [#tpu.dimension_semantics<parallel>], iteration_bounds = array<i64: 1>, scalar_prefetch = 0 : i64, scratch_operands = 0 : i64, tpu.core_type = #tpu.core_type<tc>, window_params = [{transform_indices = @transform_0, window_bounds = array<i64: 16, 128>}, {transform_indices = @transform_1, window_bounds = array<i64: 16, 128>}]} {
    %c0 = arith.constant 0 : index
    %c0_0 = arith.constant 0 : index
    %0 = vector.load %arg1[%c0, %c0_0] : memref<16x128xf32, #tpu.memory_space<vmem>>, vector<16x128xf32>
    %1 = math.tanh %0 : vector<16x128xf32>
    %c0_1 = arith.constant 0 : index
    %c0_2 = arith.constant 0 : index
    %2 = vector.load %arg2[%c0_1, %c0_2] : memref<16x128xf32, #tpu.memory_space<vmem>>, vector<16x128xf32>
    tpu.vector_store %arg2[%c0_1, %c0_2], %1 {strides = array<i32>} : memref<16x128xf32, #tpu.memory_space<vmem>>, vector<16x128xf32>,
    return
  }
  func.func @transform_0(%arg0: i32) -> (i32, i32) {
    %c0_i32 = arith.constant 0 : i32
    %c0_i32_0 = arith.constant 0 : i32
    return %arg0, %c0_i32 : i32, i32
  }
  func.func @transform_1(%arg0: i32) -> (i32, i32) {
    %c0_i32 = arith.constant 0 : i32
    %c0_i32_0 = arith.constant 0 : i32
    return %arg0, %c0_i32 : i32, i32
  }
}

</mosaic_0001>

<llo_original>
// kernel: generator_forward.8
$region0: #{generator_forward.8}
  #allocation0 [shape = 'u32[]', space=smem, size = 0x4, offset = 0x4, fixed_abs, tag = 'smem constant byte address 0x4 - core index']
  #allocation1 [shape = 'u32[144,128]{1,0:T(1,128)}', space=vmem, size = 0x12000, scoped, tag = 'internal scratch']
  %s0 = inlined_call_operand.vmem [shape: bf16[1,2,100], index: 0, kind: input, shape index: {}]
  %s1 = inlined_call_operand.vmem [shape: bf16[1,100,4096], index: 1, kind: input, shape index: {}]
  %s2 = inlined_call_operand.vmem [shape: f32[1,2,4096], index: 2, kind: output, shape index: {0}]
  %s3 = inlined_call_operand.vmem [shape: f32[1,4096], index: 3, kind: output, shape index: {1}]
  %s4 = inlined_call_operand.vmem [shape: f32[1,4096], index: 4, kind: output, shape index: {2}]
  %5 = xla_tuple %s2, %s3, %s4
  %s6 = sld [smem:[#allocation0]]
  $region99: #{generator_forward.8} parent=0
    _
  %s8 = ssub.s32 1, %s6
  %s9 = scalar_select 0, %s8, %s6
  $region1: #{generator_forward.8} parent=0
    #allocation2 [shape = 'u8[106496]{0}', space=vmem, size = 0x1a000, scoped, tag = 'input window, operand 1']
    loop: start=0, step=1, limit=18
    $region2: #{generator_forward.8} parent=1 // loop_pre_header
      _
    $region3: #{generator_forward.8} parent=1 // loop_header
      %s11 = sphi 0, %s15
      %p12 = scmp.ge.s32.totalorder %s11, 18
      %s18 = sphi 0, %s37
      %s19 = sphi 0, %s33
      %s20 = sphi 0, %s29
      %s21 = sphi 0, %s18
      %s22 = sphi 0, %s19
      %s23 = sphi 0, %s20
      %s24 = sphi 0, %s21
      %s25 = sphi 0, %s22
      %s26 = sphi 0, %s23
      %s42 = sphi 0, %s44
      %s45 = sphi 0, %s42
      %s46 = sphi 0, %s45
      %s62 = sphi 0, %s46
      %s70 = sphi 0, %s72
      %s73 = sphi 0, %s70
      %s74 = sphi 0, %s73
      %s90 = sphi 0, %s74
      %s100 = sphi 0, %s102
      %s103 = sphi 0, %s100
      %s104 = sphi 0, %s103
      %s120 = sphi 0, %s104
      %s126 = sphi 0, %s128
      %s129 = sphi 0, %s126
      %s130 = sphi 0, %s129
      %s146 = sphi 0, %s130
      %s152 = sphi 0, %s154
      %s155 = sphi 0, %s152
      %s156 = sphi 0, %s155
      %s172 = sphi 0, %s156
    $region4: #{generator_forward.8} parent=1 // loop_header_branch
      %14 = sbr.rel (%p12) target = $region8
    $region5: #{generator_forward.8} parent=1 // loop_body
      %s16 = ssub.s32 %s11, 1
      %s17 = ssub.s32 %s11, 2
      %s27 = sadd.s32 1, %s20
      %p28 = scmp.ge.s32.totalorder %s27, 1
      %s29 = scalar_select %p28, 0, %s27
      %s30 = sadd.s32 1, %s19
      %s31 = scalar_select %p28, %s30, %s19
      %p32 = scmp.ge.s32.totalorder %s31, 1
      %s33 = scalar_select %p32, 0, %s31
      %s34 = sadd.s32 1, %s18
      %s35 = scalar_select %p32, %s34, %s18
      %p36 = scmp.ge.s32.totalorder %s35, 16
      %s37 = scalar_select %p36, 0, %s35
      %s38 = ssub.s32 %s19, %s33
      %s39 = ssub.s32 %s20, %s29
      %s40 = sor.u32 %s38, %s39
      %p41 = scmp.eq.s32.totalorder %s40, 0
      %s43 = sadd.s32 %s42, 1
      %s44 = scalar_select %p41, %s42, %s43
      %p47 = pneg %p41
      %p48 = scmp.eq.s32.totalorder %s11, 15
      %p49 = por %p47, %p48
      %p50 = scmp.ne.s32.totalorder %s42, %s45
      %p51 = scmp.eq.s32.totalorder %s11, 0
      %p52 = por %p50, %p51
      %p53 = scmp.ne.s32.totalorder %s42, %s45
      %p54 = scmp.eq.s32.totalorder %s16, 15
      %p55 = por %p53, %p54
      %p56 = scmp.ne.s32.totalorder %s45, %s46
      %p57 = scmp.eq.s32.totalorder %s16, 0
      %p58 = por %p56, %p57
      %p59 = scmp.ne.s32.totalorder %s45, %s46
      %p60 = scmp.eq.s32.totalorder %s17, 15
      %p61 = por %p59, %p60
      %p63 = scmp.ne.s32.totalorder %s46, %s62
      %p64 = scmp.eq.s32.totalorder %s17, 0
      %p65 = por %p63, %p64
      %s66 = ssub.s32 %s19, %s33
      %s67 = ssub.s32 %s18, %s37
      %s68 = sor.u32 %s66, %s67
      %p69 = scmp.eq.s32.totalorder %s68, 0
      %s71 = sadd.s32 %s70, 1
      %s72 = scalar_select %p69, %s70, %s71
      %p75 = pneg %p69
      %p76 = scmp.eq.s32.totalorder %s11, 15
      %p77 = por %p75, %p76
      %p78 = scmp.ne.s32.totalorder %s70, %s73
      %p79 = scmp.eq.s32.totalorder %s11, 0
      %p80 = por %p78, %p79
      %p81 = scmp.ne.s32.totalorder %s70, %s73
      %p82 = scmp.eq.s32.totalorder %s16, 15
      %p83 = por %p81, %p82
      %p84 = scmp.ne.s32.totalorder %s73, %s74
      %p85 = scmp.eq.s32.totalorder %s16, 0
      %p86 = por %p84, %p85
      %p87 = scmp.ne.s32.totalorder %s73, %s74
      %p88 = scmp.eq.s32.totalorder %s17, 15
      %p89 = por %p87, %p88
      %p91 = scmp.ne.s32.totalorder %s74, %s90
      %p92 = scmp.eq.s32.totalorder %s17, 0
      %p93 = por %p91, %p92
      %s94 = ssub.s32 %s19, %s33
      %s95 = ssub.s32 %s20, %s29
      %s96 = sor.u32 %s94, %s95
      %s97 = ssub.s32 %s18, %s37
      %s98 = sor.u32 %s96, %s97
      %p99 = scmp.eq.s32.totalorder %s98, 0
      %s101 = sadd.s32 %s100, 1
      %s102 = scalar_select %p99, %s100, %s101
      %p105 = pneg %p99
      %p106 = scmp.eq.s32.totalorder %s11, 15
      %p107 = por %p105, %p106
      %p108 = scmp.ne.s32.totalorder %s100, %s103
      %p109 = scmp.eq.s32.totalorder %s11, 0
      %p110 = por %p108, %p109
      %p111 = scmp.ne.s32.totalorder %s100, %s103
      %p112 = scmp.eq.s32.totalorder %s16, 15
      %p113 = por %p111, %p112
      %p114 = scmp.ne.s32.totalorder %s103, %s104
      %p115 = scmp.eq.s32.totalorder %s16, 0
      %p116 = por %p114, %p115
      %p117 = scmp.ne.s32.totalorder %s103, %s104
      %p118 = scmp.eq.s32.totalorder %s17, 15
      %p119 = por %p117, %p118
      %p121 = scmp.ne.s32.totalorder %s104, %s120
      %p122 = scmp.eq.s32.totalorder %s17, 0
      %p123 = por %p121, %p122
      %s124 = ssub.s32 %s18, %s37
      %p125 = scmp.eq.s32.totalorder %s124, 0
      %s127 = sadd.s32 %s126, 1
      %s128 = scalar_select %p125, %s126, %s127
      %p131 = pneg %p125
      %p132 = scmp.eq.s32.totalorder %s11, 15
      %p133 = por %p131, %p132
      %p134 = scmp.ne.s32.totalorder %s126, %s129
      %p135 = scmp.eq.s32.totalorder %s11, 0
      %p136 = por %p134, %p135
      %p137 = scmp.ne.s32.totalorder %s126, %s129
      %p138 = scmp.eq.s32.totalorder %s16, 15
      %p139 = por %p137, %p138
      %p140 = scmp.ne.s32.totalorder %s129, %s130
      %p141 = scmp.eq.s32.totalorder %s16, 0
      %p142 = por %p140, %p141
      %p143 = scmp.ne.s32.totalorder %s129, %s130
      %p144 = scmp.eq.s32.totalorder %s17, 15
      %p145 = por %p143, %p144
      %p147 = scmp.ne.s32.totalorder %s130, %s146
      %p148 = scmp.eq.s32.totalorder %s17, 0
      %p149 = por %p147, %p148
      %s150 = ssub.s32 %s18, %s37
      %p151 = scmp.eq.s32.totalorder %s150, 0
      %s153 = sadd.s32 %s152, 1
      %s154 = scalar_select %p151, %s152, %s153
      %p157 = pneg %p151
      %p158 = scmp.eq.s32.totalorder %s11, 15
      %p159 = por %p157, %p158
      %p160 = scmp.ne.s32.totalorder %s152, %s155
      %p161 = scmp.eq.s32.totalorder %s11, 0
      %p162 = por %p160, %p161
      %p163 = scmp.ne.s32.totalorder %s152, %s155
      %p164 = scmp.eq.s32.totalorder %s16, 15
      %p165 = por %p163, %p164
      %p166 = scmp.ne.s32.totalorder %s155, %s156
      %p167 = scmp.eq.s32.totalorder %s16, 0
      %p168 = por %p166, %p167
      %p169 = scmp.ne.s32.totalorder %s155, %s156
      %p170 = scmp.eq.s32.totalorder %s17, 15
      %p171 = por %p169, %p170
      %p173 = scmp.ne.s32.totalorder %s156, %s172
      %p174 = scmp.eq.s32.totalorder %s17, 0
      %p175 = por %p173, %p174
      %p176 = scmp.le.s32.totalorder 1, %s11
      %p177 = scmp.lt.s32.totalorder %s11, 17
      %p178 = pnand %p176, %p177
      %p179 = pneg %p178
      // Predicated region
      $region9: #{generator_forward.8} parent=5 // pred_check
        _
      $region10: #{generator_forward.8} parent=5 // pred_check_branch
        %181 = sbr.rel (%p178) target = $region12
      $region11: #{generator_forward.8} parent=5 // pred_region
        %s182 = ssub.s32 %s11, 1
        // Predicated region
        $region13: #{generator_forward.8} parent=11 // pred_check
          %p183 = pneg %p58
        $region14: #{generator_forward.8} parent=11 // pred_check_branch
          %185 = sbr.rel (%p183) target = $region16
        $region15: #{generator_forward.8} parent=11 // pred_region
          %p186 = scmp.lt.s32.totalorder %s22, 0
          %s187 = scalar_select %p186, %s22, 0
          %p188 = scmp.lt.s32.totalorder %s23, 0
          %s189 = scalar_select %p188, %s23, 0
          %s190 = sadd.s32 %s189, %s187
          %s191 = scalar_lea.vmem %s0, %s190
        $region16: #{generator_forward.8} parent=11 // pred_fallthru
          _
      $region12: #{generator_forward.8} parent=5 // pred_fallthru
        _
      %p192 = scmp.lt.s32.totalorder %s11, 16
      // Predicated region
      $region17: #{generator_forward.8} parent=5 // pred_check
        %p193 = pneg %p192
      $region18: #{generator_forward.8} parent=5 // pred_check_branch
        %195 = sbr.rel (%p193) target = $region20
      $region19: #{generator_forward.8} parent=5 // pred_region
        // Predicated region
        $region21: #{generator_forward.8} parent=19 // pred_check
          %p196 = pneg %p80
        $region22: #{generator_forward.8} parent=19 // pred_check_branch
          %198 = sbr.rel (%p196) target = $region24
        $region23: #{generator_forward.8} parent=19 // pred_region
          %s199 = sand.u32 %s70, 1
          %s200 = sand.u32 %s70, 1
          %s201 = smul.addr %s200, 104
          %s202 = scalar_lea.vmem [#allocation2], %s201
          %s203 = smul.u32 2, %s18
          %s204 = smul.addr %s19, 416
          %s205 = sadd.s32 %s203, %s204
          %s206 = smul.addr %s205, 4
          %s207 = scalar_lea.vmem %s1, %s206
          // Predicated region
          $region25: #{generator_forward.8} parent=23 // pred_check
            _
          $region26: #{generator_forward.8} parent=23 // pred_check_branch
            %209 = sbr.rel (0) target = $region28
          $region27: #{generator_forward.8} parent=23 // pred_region
            // Predicated region
            $region29: #{generator_forward.8} parent=27 // pred_check
              _
            $region30: #{generator_forward.8} parent=27 // pred_check_branch
              %211 = sbr.rel (0) target = $region32
            $region31: #{generator_forward.8} parent=27 // pred_region
              // Predicated region
              $region44: #{generator_forward.8} parent=31 // pred_check
                _
              $region45: #{generator_forward.8} parent=31 // pred_check_branch
                %250 = sbr.rel (0) target = $region47
              $region46: #{generator_forward.8} parent=31 // pred_region
                loop: start=0, step=1, limit=1
                $region48: #{generator_forward.8} parent=46 // loop_pre_header
                  _
                $region49: #{generator_forward.8} parent=46 // loop_header
                  %s252 = sphi 0, %s256
                  %p253 = scmp.ge.s32.totalorder %s252, 1
                  %s257 = sphi %s207, %s207
                  %s258 = sphi %s202, %s202
                $region50: #{generator_forward.8} parent=46 // loop_header_branch
                  %255 = sbr.rel (%p253) target = $region54
                $region51: #{generator_forward.8} parent=46 // loop_body
                  %v259 = vld [vmem:[%s257] sm:$0xff]
                  %260 = vst [vmem:[%s258] sm:$0xff] %v259
                  %v261 = vld [vmem:[%s257 + $0x80] sm:$0xff]
                  %262 = vst [vmem:[%s258 + $0x8] sm:$0xff] %v261
                  %v263 = vld [vmem:[%s257 + $0x100] sm:$0xff]
                  %264 = vst [vmem:[%s258 + $0x10] sm:$0xff] %v263
                  %v265 = vld [vmem:[%s257 + $0x180] sm:$0xff]
                  %266 = vst [vmem:[%s258 + $0x18] sm:$0xff] %v265
                  %v267 = vld [vmem:[%s257 + $0x200] sm:$0xff]
                  %268 = vst [vmem:[%s258 + $0x20] sm:$0xff] %v267
                  %v269 = vld [vmem:[%s257 + $0x280] sm:$0xff]
                  %270 = vst [vmem:[%s258 + $0x28] sm:$0xff] %v269
                  %v271 = vld [vmem:[%s257 + $0x300] sm:$0xff]
                  %272 = vst [vmem:[%s258 + $0x30] sm:$0xff] %v271
                  %v273 = vld [vmem:[%s257 + $0x380] sm:$0xff]
                  %274 = vst [vmem:[%s258 + $0x38] sm:$0xff] %v273
                  %v275 = vld [vmem:[%s257 + $0x400] sm:$0xff]
                  %276 = vst [vmem:[%s258 + $0x40] sm:$0xff] %v275
                  %v277 = vld [vmem:[%s257 + $0x480] sm:$0xff]
                  %278 = vst [vmem:[%s258 + $0x48] sm:$0xff] %v277
                  %v279 = vld [vmem:[%s257 + $0x500] sm:$0xff]
                  %280 = vst [vmem:[%s258 + $0x50] sm:$0xff] %v279
                  %v281 = vld [vmem:[%s257 + $0x580] sm:$0xff]
                  %282 = vst [vmem:[%s258 + $0x58] sm:$0xff] %v281
                  %v283 = vld [vmem:[%s257 + $0x600] sm:$0xff]
                  %284 = vst [vmem:[%s258 + $0x60] sm:$0xff] %v283
                $region52: #{generator_forward.8} parent=46 // loop_footer
                  %s256 = sadd.s32 1, %s252
                $region53: #{generator_forward.8} parent=46 // loop_footer_branch
                  %251 = sbr.rel target = $region49
                $region54: #{generator_forward.8} parent=46 // loop_exit
                  _
              $region47: #{generator_forward.8} parent=31 // pred_fallthru
                _
              // Predicated region
              $region55: #{generator_forward.8} parent=31 // pred_check
                _
              $region56: #{generator_forward.8} parent=31 // pred_check_branch
                %286 = sbr.rel target = $region58
              $region57: #{generator_forward.8} parent=31 // pred_region
                _
              $region58: #{generator_forward.8} parent=31 // pred_fallthru
                _
            $region32: #{generator_forward.8} parent=27 // pred_fallthru
              _
            // Predicated region
            $region33: #{generator_forward.8} parent=27 // pred_check
              _
            $region34: #{generator_forward.8} parent=27 // pred_check_branch
              %213 = sbr.rel target = $region36
            $region35: #{generator_forward.8} parent=27 // pred_region
              loop: start=0, step=1, limit=1
              $region37: #{generator_forward.8} parent=35 // loop_pre_header
                _
              $region38: #{generator_forward.8} parent=35 // loop_header
                %s216 = sphi 0, %s220
                %p217 = scmp.ge.s32.totalorder %s216, 1
                %s221 = sphi %s207, %s207
                %s222 = sphi %s202, %s202
              $region39: #{generator_forward.8} parent=35 // loop_header_branch
                %219 = sbr.rel (%p217) target = $region43
              $region40: #{generator_forward.8} parent=35 // loop_body
                %v223 = vld [vmem:[%s221] sm:$0xff]
                %224 = vst [vmem:[%s222] sm:$0xff] %v223
                %v225 = vld [vmem:[%s221 + $0x80] sm:$0xff]
                %226 = vst [vmem:[%s222 + $0x8] sm:$0xff] %v225
                %v227 = vld [vmem:[%s221 + $0x100] sm:$0xff]
                %228 = vst [vmem:[%s222 + $0x10] sm:$0xff] %v227
                %v229 = vld [vmem:[%s221 + $0x180] sm:$0xff]
                %230 = vst [vmem:[%s222 + $0x18] sm:$0xff] %v229
                %v231 = vld [vmem:[%s221 + $0x200] sm:$0xff]
                %232 = vst [vmem:[%s222 + $0x20] sm:$0xff] %v231
                %v233 = vld [vmem:[%s221 + $0x280] sm:$0xff]
                %234 = vst [vmem:[%s222 + $0x28] sm:$0xff] %v233
                %v235 = vld [vmem:[%s221 + $0x300] sm:$0xff]
                %236 = vst [vmem:[%s222 + $0x30] sm:$0xff] %v235
                %v237 = vld [vmem:[%s221 + $0x380] sm:$0xff]
                %238 = vst [vmem:[%s222 + $0x38] sm:$0xff] %v237
                %v239 = vld [vmem:[%s221 + $0x400] sm:$0xff]
                %240 = vst [vmem:[%s222 + $0x40] sm:$0xff] %v239
                %v241 = vld [vmem:[%s221 + $0x480] sm:$0xff]
                %242 = vst [vmem:[%s222 + $0x48] sm:$0xff] %v241
                %v243 = vld [vmem:[%s221 + $0x500] sm:$0xff]
                %244 = vst [vmem:[%s222 + $0x50] sm:$0xff] %v243
                %v245 = vld [vmem:[%s221 + $0x580] sm:$0xff]
                %246 = vst [vmem:[%s222 + $0x58] sm:$0xff] %v245
                %v247 = vld [vmem:[%s221 + $0x600] sm:$0xff]
                %248 = vst [vmem:[%s222 + $0x60] sm:$0xff] %v247
              $region41: #{generator_forward.8} parent=35 // loop_footer
                %s220 = sadd.s32 1, %s216
              $region42: #{generator_forward.8} parent=35 // loop_footer_branch
                %215 = sbr.rel target = $region38
              $region43: #{generator_forward.8} parent=35 // loop_exit
                _
            $region36: #{generator_forward.8} parent=27 // pred_fallthru
              _
          $region28: #{generator_forward.8} parent=23 // pred_fallthru
            _
          %287 = vnop
        $region24: #{generator_forward.8} parent=19 // pred_fallthru
          _
      $region20: #{generator_forward.8} parent=5 // pred_fallthru
        _
      %p288 = scmp.le.s32.totalorder 1, %s11
      %p289 = scmp.lt.s32.totalorder %s11, 17
      %p290 = pnand %p288, %p289
      %p291 = pneg %p290
      // Predicated region
      $region59: #{generator_forward.8} parent=5 // pred_check
        _
      $region60: #{generator_forward.8} parent=5 // pred_check_branch
        %293 = sbr.rel (%p290) target = $region62
      $region61: #{generator_forward.8} parent=5 // pred_region
        %s294 = ssub.s32 %s11, 1
        %s295 = sand.u32 %s73, 1
        %s296 = sand.u32 %s73, 1
        %s297 = smul.addr %s296, 104
        %s298 = scalar_lea.vmem [#allocation2], %s297
        // Predicated region
        $region63: #{generator_forward.8} parent=61 // pred_check
          %p299 = pneg %p86
        $region64: #{generator_forward.8} parent=61 // pred_check_branch
          %301 = sbr.rel (%p299) target = $region66
        $region65: #{generator_forward.8} parent=61 // pred_region
          _
        $region66: #{generator_forward.8} parent=61 // pred_fallthru
          _
        %p302 = scmp.lt.s32.totalorder %s22, 0
        %s303 = scalar_select %p302, %s22, 0
        %p304 = scmp.lt.s32.totalorder %s23, 0
        %s305 = scalar_select %p304, %s23, 0
        %s306 = sadd.s32 %s305, %s303
        %s307 = scalar_lea.vmem %s0, %s306
        %p308 = pneg %p58
        %p309 = pneg %p55
        %s310 = sand.u32 %s73, 1
        %s311 = sand.u32 %s73, 1
        %s312 = smul.addr %s311, 104
        %s313 = scalar_lea.vmem [#allocation2], %s312
        %p314 = pneg %p86
        %p315 = pneg %p83
        %p316 = pneg %p116
        %p317 = pneg %p113
        %s318 = smul.u32 2, %s21
        %p319 = scmp.lt.s32.totalorder %s22, 0
        %s320 = scalar_select %p319, %s22, 0
        %p321 = scmp.lt.s32.totalorder %s23, 0
        %s322 = scalar_select %p321, %s23, 0
        %p323 = scmp.lt.s32.totalorder %s318, 31
        %s324 = scalar_select %p323, %s318, 31
        %s325 = smul.addr %s322, 32
        %s326 = sadd.s32 %s324, %s325
        %s327 = smul.addr %s320, 32
        %s328 = sadd.s32 %s326, %s327
        %s329 = smul.addr %s328, 2
        %s330 = scalar_lea.vmem %s2, %s329
        %p331 = pneg %p142
        %p332 = pneg %p139
        %s333 = smul.u32 2, %s21
        %p334 = scmp.lt.s32.totalorder %s333, 31
        %s335 = scalar_select %p334, %s333, 31
        %s336 = scalar_lea.vmem %s3, %s335
        %p337 = pneg %p168
        %p338 = pneg %p165
        %s339 = smul.u32 2, %s21
        %p340 = scmp.lt.s32.totalorder %s339, 31
        %s341 = scalar_select %p340, %s339, 31
        %s342 = scalar_lea.vmem %s4, %s341
        %p343 = scmp.lt.s32.totalorder %s22, 0
        %s344 = scalar_select %p343, %s22, 0
        %p345 = scmp.lt.s32.totalorder %s23, 0
        %s346 = scalar_select %p345, %s23, 0
        %s347 = sadd.s32 %s346, %s344
        %s348 = scalar_lea.vmem %s0, %s347
        %s349 = smul.u32 2, %s21
        %s350 = smul.u32 2, %s21
        %p351 = scmp.lt.s32.totalorder %s22, 0
        %s352 = scalar_select %p351, %s22, 0
        %p353 = scmp.lt.s32.totalorder %s23, 0
        %s354 = scalar_select %p353, %s23, 0
        %p355 = scmp.lt.s32.totalorder %s350, 31
        %s356 = scalar_select %p355, %s350, 31
        %s357 = smul.addr %s354, 32
        %s358 = sadd.s32 %s356, %s357
        %s359 = smul.addr %s352, 32
        %s360 = sadd.s32 %s358, %s359
        %s361 = smul.addr %s360, 2
        %s362 = scalar_lea.vmem %s2, %s361
        %s363 = smul.u32 2, %s21
        %s364 = smul.u32 2, %s21
        %p365 = scmp.lt.s32.totalorder %s364, 31
        %s366 = scalar_select %p365, %s364, 31
        %s367 = scalar_lea.vmem %s3, %s366
        %s368 = smul.u32 2, %s21
        %s369 = smul.u32 2, %s21
        %p370 = scmp.lt.s32.totalorder %s369, 31
        %s371 = scalar_select %p370, %s369, 31
        %s372 = scalar_lea.vmem %s4, %s371
        %s373 = smul.u32 2, %s21
        %v375 = vld [vmem:[%s348] sm:$0x1]
        %v376 = vld [vmem:[%s298] sm:$0xff]
        %v377 = vld [vmem:[%s298 + $0x8] sm:$0xff]
        %v378 = vld [vmem:[%s298 + $0x10] sm:$0xff]
        %v379 = vld [vmem:[%s298 + $0x18] sm:$0xff]
        %v380 = vld [vmem:[%s298 + $0x20] sm:$0xff]
        %v381 = vld [vmem:[%s298 + $0x28] sm:$0xff]
        %v382 = vld [vmem:[%s298 + $0x30] sm:$0xff]
        %v383 = vld [vmem:[%s298 + $0x38] sm:$0xff]
        %v384 = vld [vmem:[%s298 + $0x40] sm:$0xff]
        %v385 = vld [vmem:[%s298 + $0x48] sm:$0xff]
        %v386 = vld [vmem:[%s298 + $0x50] sm:$0xff]
        %v387 = vld [vmem:[%s298 + $0x58] sm:$0xff]
        %v388 = vld [vmem:[%s298 + $0x60] sm:$0x33]
        %v402 = vunpack.c.l.b16 %v376
        %v403 = vunpack.c.h.b16 %v376
        %v404 = vunpack.c.l.b16 %v377
        %v405 = vunpack.c.h.b16 %v377
        %v406 = vunpack.c.l.b16 %v378
        %v407 = vunpack.c.h.b16 %v378
        %v408 = vunpack.c.l.b16 %v379
        %v409 = vunpack.c.h.b16 %v379
        %v410 = vunpack.c.l.b16 %v380
        %v411 = vunpack.c.h.b16 %v380
        %v412 = vunpack.c.l.b16 %v381
        %v413 = vunpack.c.h.b16 %v381
        %v414 = vunpack.c.l.b16 %v382
        %v415 = vunpack.c.h.b16 %v382
        %v416 = vunpack.c.l.b16 %v383
        %v417 = vunpack.c.h.b16 %v383
        %v418 = vunpack.c.l.b16 %v384
        %v419 = vunpack.c.h.b16 %v384
        %v420 = vunpack.c.l.b16 %v385
        %v421 = vunpack.c.h.b16 %v385
        %v422 = vunpack.c.l.b16 %v386
        %v423 = vunpack.c.h.b16 %v386
        %v424 = vunpack.c.l.b16 %v387
        %v425 = vunpack.c.h.b16 %v387
        %v426 = vunpack.c.l.b16 %v388
        %v427 = vunpack.c.h.b16 %v388
        %v428 = vpack.c.b16 %v404, %v402
        %v429 = vpack.c.b16 %v405, %v403
        %v430 = vpack.c.b16 %v408, %v406
        %v431 = vpack.c.b16 %v409, %v407
        %v432 = vpack.c.b16 %v412, %v410
        %v433 = vpack.c.b16 %v413, %v411
        %v434 = vpack.c.b16 %v416, %v414
        %v435 = vpack.c.b16 %v417, %v415
        %v436 = vpack.c.b16 %v420, %v418
        %v437 = vpack.c.b16 %v421, %v419
        %v438 = vpack.c.b16 %v424, %v422
        %v439 = vpack.c.b16 %v425, %v423
        %v440 = vpack.c.b16 %v426, %v426
        %v441 = vpack.c.b16 %v427, %v427
        %vm454 = vcmask 818176
        %v456 = vsel %vm454, %v375, 0
        %vm458 = vcmask 1041408
        %v460 = vsel %vm458, %v440, 0
        %v463 = vsel %vm458, %v441, 0
        %465 = vmatprep.subr.bf16.mxu0 %v429
        %466 = vmatpush1.bf16.msra.mxu0 %v428
        %467 = vmatprep.subr.bf16.mxu0 %v431
        %468 = vmatpush1.bf16.msra.mxu0 %v430
        %469 = vmatprep.subr.bf16.mxu0 %v433
        %470 = vmatpush1.bf16.msra.mxu0 %v432
        %471 = vmatprep.subr.bf16.mxu0 %v435
        %472 = vmatpush1.bf16.msra.mxu0 %v434
        %473 = vmatprep.subr.bf16.mxu0 %v437
        %474 = vmatpush1.bf16.msra.mxu0 %v436
        %475 = vmatprep.subr.bf16.mxu0 %v439
        %476 = vmatpush1.bf16.msra.mxu0 %v438
        %477 = vmatprep.subr.bf16.mxu0 %v463
        %478 = vmatpush1.bf16.msra.mxu0 %v460
        %479 = vmatprep.subr.bf16.mxu0 0
        %480 = vmatpush1.bf16.msra.mxu0 0
        %481 = vmatprep.subr.bf16.mxu0 0
        %482 = vmatpush1.bf16.msra.mxu0 0
        %483 = vmatprep.subr.bf16.mxu0 0
        %484 = vmatpush1.bf16.msra.mxu0 0
        %485 = vmatprep.subr.bf16.mxu0 0
        %486 = vmatpush1.bf16.msra.mxu0 0
        %487 = vmatprep.subr.bf16.mxu0 0
        %488 = vmatpush1.bf16.msra.mxu0 0
        %489 = vmatprep.subr.bf16.mxu0 0
        %490 = vmatpush1.bf16.msra.mxu0 0
        %491 = vmatprep.subr.bf16.mxu0 0
        %492 = vmatpush1.bf16.msra.mxu0 0
        %493 = vmatprep.subr.bf16.mxu0 0
        %494 = vmatpush1.bf16.msra.mxu0 0
        %495 = vmatprep.subr.bf16.mxu0 0
        %496 = vmatpush1.bf16.msra.mxu0 0
        %497 = vmatprep.mubr.bf16.mxu0 0
        %498 = vmatmul.mubr.bf16.gmra.mrb[0].mxu0 %v456
        %v499 = vpop.f32.mrb[0].mxu0
        %v500 = vadd.f32 0.0, %v499
        %v501 = vpop.f32.mrb[0].mxu0
        %v502 = vadd.f32 0.0, %v501
        %v503 = vpop.f32.mrb[0].mxu0
        %v504 = vpop.f32.mrb[0].mxu0
        %505 = vdwg.mxu0
        %v508 = vcombine.low %v500, %v502
        %v510 = vunpack.c.l.s4 1983009808
        %v511 = vunpack.c.0.s8 %v510
        %v512 = vlaneseq
        %v513 = vshrl.u32 %v512, 7
        %v514 = vsub.s32 %v511, %v513
        %v515 = vrot.slane %v508, %v514
        %517 = vst [vmem:[%s362] sm:$0xf] %v515
        %p518 = scmp.eq.s32.totalorder %s22, 0
        %p519 = scmp.eq.s32.totalorder %s23, 0
        %p520 = pnand %p518, %p519
        %p521 = pneg %p520
        // Predicated region
        $region67: #{generator_forward.8} parent=61 // pred_check
          _
        $region68: #{generator_forward.8} parent=61 // pred_check_branch
          %523 = sbr.rel (%p520) target = $region70
        $region69: #{generator_forward.8} parent=61 // pred_region
          %v524 = vlaneseq
          %vm525 = vcmp.ge.s32.totalorder %v524, 0
          %vm526 = vcmp.lt.s32.totalorder %v524, 256
          %vm527 = vmand %vm525, %vm526
          %528 = vst.msk [vmem:[%s367] sm:$0x3] %vm527, 0.0
          %529 = vst.msk [vmem:[%s372] sm:$0x3] %vm527, 0.0
        $region70: #{generator_forward.8} parent=61 // pred_fallthru
          _
        %v530 = vld [vmem:[%s367] sm:$0x3]
        %v531 = vsel %vm458, %v500, 0.0
        %v532 = vrot.slane %v531, 4
        %v533 = vadd.f32 %v531, %v532
        %v534 = vrot.slane %v533, 2
        %v535 = vadd.f32 %v533, %v534
        %v536 = vrot.slane %v535, 1
        %v537 = vadd.f32 %v535, %v536
        %v538 = vsel %vm458, %v502, 0.0
        %v539 = vrot.slane %v538, 4
        %v540 = vadd.f32 %v538, %v539
        %v541 = vrot.slane %v540, 2
        %v542 = vadd.f32 %v540, %v541
        %v543 = vrot.slane %v542, 1
        %v544 = vadd.f32 %v542, %v543
        %v547 = vcombine.low %v537, %v544
        %v549 = vunpack.c.l.s4 1966171168
        %v550 = vunpack.c.0.s8 %v549
        %v551 = vlaneseq
        %v552 = vshrl.u32 %v551, 7
        %v553 = vsub.s32 %v550, %v552
        %v554 = vrot.slane %v547, %v553
        %v556 = vunpack.c.l.s4 1966171168
        %v557 = vunpack.c.0.s8 %v556
        %v558 = vlaneseq
        %v559 = vshrl.u32 %v558, 7
        %v560 = vsub.s32 %v557, %v559
        %v561 = vrot.slane %v554, %v560
        %v563 = vadd.f32 %v530, %v561
        %v564 = vlaneseq
        %vm565 = vcmp.ge.s32.totalorder %v564, 0
        %vm566 = vcmp.lt.s32.totalorder %v564, 256
        %vm567 = vmand %vm565, %vm566
        %568 = vst.msk [vmem:[%s367] sm:$0x3] %vm567, %v563
        %v569 = vld [vmem:[%s372] sm:$0x3]
        %v570 = vmul.f32 %v500, %v500
        %v571 = vmul.f32 %v502, %v502
        %v572 = vsel %vm458, %v570, 0.0
        %v573 = vrot.slane %v572, 4
        %v574 = vadd.f32 %v572, %v573
        %v575 = vrot.slane %v574, 2
        %v576 = vadd.f32 %v574, %v575
        %v577 = vrot.slane %v576, 1
        %v578 = vadd.f32 %v576, %v577
        %v579 = vsel %vm458, %v571, 0.0
        %v580 = vrot.slane %v579, 4
        %v581 = vadd.f32 %v579, %v580
        %v582 = vrot.slane %v581, 2
        %v583 = vadd.f32 %v581, %v582
        %v584 = vrot.slane %v583, 1
        %v585 = vadd.f32 %v583, %v584
        %v588 = vcombine.low %v578, %v585
        %v590 = vunpack.c.l.s4 1966171168
        %v591 = vunpack.c.0.s8 %v590
        %v592 = vlaneseq
        %v593 = vshrl.u32 %v592, 7
        %v594 = vsub.s32 %v591, %v593
        %v595 = vrot.slane %v588, %v594
        %v597 = vunpack.c.l.s4 1966171168
        %v598 = vunpack.c.0.s8 %v597
        %v599 = vlaneseq
        %v600 = vshrl.u32 %v599, 7
        %v601 = vsub.s32 %v598, %v600
        %v602 = vrot.slane %v595, %v601
        %v604 = vadd.f32 %v569, %v602
        %605 = vst.msk [vmem:[%s372] sm:$0x3] %vm567, %v604
        %s606 = smul.u32 2, %s21
        %p607 = scmp.lt.s32.totalorder %s22, 0
        %s608 = scalar_select %p607, %s22, 0
        %p609 = scmp.lt.s32.totalorder %s23, 0
        %s610 = scalar_select %p609, %s23, 0
        %p611 = scmp.lt.s32.totalorder %s606, 31
        %s612 = scalar_select %p611, %s606, 31
        %s613 = smul.addr %s610, 32
        %s614 = sadd.s32 %s612, %s613
        %s615 = smul.addr %s608, 32
        %s616 = sadd.s32 %s614, %s615
        %s617 = smul.addr %s616, 2
        %s618 = scalar_lea.vmem %s2, %s617
        %s619 = smul.u32 2, %s21
        %p620 = scmp.lt.s32.totalorder %s619, 31
        %s621 = scalar_select %p620, %s619, 31
        %s622 = scalar_lea.vmem %s3, %s621
        %s623 = smul.u32 2, %s21
        %p624 = scmp.lt.s32.totalorder %s623, 31
        %s625 = scalar_select %p624, %s623, 31
        %s626 = scalar_lea.vmem %s4, %s625
        // Predicated region
        $region71: #{generator_forward.8} parent=61 // pred_check
          %p627 = pneg %p113
        $region72: #{generator_forward.8} parent=61 // pred_check_branch
          %629 = sbr.rel (%p627) target = $region74
        $region73: #{generator_forward.8} parent=61 // pred_region
          %s630 = smul.u32 2, %s21
        $region74: #{generator_forward.8} parent=61 // pred_fallthru
          _
        // Predicated region
        $region75: #{generator_forward.8} parent=61 // pred_check
          %p631 = pneg %p139
        $region76: #{generator_forward.8} parent=61 // pred_check_branch
          %633 = sbr.rel (%p631) target = $region78
        $region77: #{generator_forward.8} parent=61 // pred_region
          %s634 = smul.u32 2, %s21
        $region78: #{generator_forward.8} parent=61 // pred_fallthru
          _
        // Predicated region
        $region79: #{generator_forward.8} parent=61 // pred_check
          %p635 = pneg %p165
        $region80: #{generator_forward.8} parent=61 // pred_check_branch
          %637 = sbr.rel (%p635) target = $region82
        $region81: #{generator_forward.8} parent=61 // pred_region
          %s638 = smul.u32 2, %s21
        $region82: #{generator_forward.8} parent=61 // pred_fallthru
          _
      $region62: #{generator_forward.8} parent=5 // pred_fallthru
        _
      %p639 = scmp.le.s32.totalorder 2, %s11
      // Predicated region
      $region83: #{generator_forward.8} parent=5 // pred_check
        %p640 = pneg %p639
      $region84: #{generator_forward.8} parent=5 // pred_check_branch
        %642 = sbr.rel (%p640) target = $region86
      $region85: #{generator_forward.8} parent=5 // pred_region
        %s643 = ssub.s32 %s11, 2
        // Predicated region
        $region87: #{generator_forward.8} parent=85 // pred_check
          %p644 = pneg %p119
        $region88: #{generator_forward.8} parent=85 // pred_check_branch
          %646 = sbr.rel (%p644) target = $region90
        $region89: #{generator_forward.8} parent=85 // pred_region
          %s647 = smul.u32 2, %s24
          %p648 = scmp.lt.s32.totalorder %s25, 0
          %s649 = scalar_select %p648, %s25, 0
          %p650 = scmp.lt.s32.totalorder %s26, 0
          %s651 = scalar_select %p650, %s26, 0
          %p652 = scmp.lt.s32.totalorder %s647, 31
          %s653 = scalar_select %p652, %s647, 31
          %s654 = smul.addr %s651, 32
          %s655 = sadd.s32 %s653, %s654
          %s656 = smul.addr %s649, 32
          %s657 = sadd.s32 %s655, %s656
          %s658 = smul.addr %s657, 2
          %s659 = scalar_lea.vmem %s2, %s658
        $region90: #{generator_forward.8} parent=85 // pred_fallthru
          _
        // Predicated region
        $region91: #{generator_forward.8} parent=85 // pred_check
          %p660 = pneg %p145
        $region92: #{generator_forward.8} parent=85 // pred_check_branch
          %662 = sbr.rel (%p660) target = $region94
        $region93: #{generator_forward.8} parent=85 // pred_region
          %s663 = smul.u32 2, %s24
          %p664 = scmp.lt.s32.totalorder %s663, 31
          %s665 = scalar_select %p664, %s663, 31
          %s666 = scalar_lea.vmem %s3, %s665
        $region94: #{generator_forward.8} parent=85 // pred_fallthru
          _
        // Predicated region
        $region95: #{generator_forward.8} parent=85 // pred_check
          %p667 = pneg %p171
        $region96: #{generator_forward.8} parent=85 // pred_check_branch
          %669 = sbr.rel (%p667) target = $region98
        $region97: #{generator_forward.8} parent=85 // pred_region
          %s670 = smul.u32 2, %s24
          %p671 = scmp.lt.s32.totalorder %s670, 31
          %s672 = scalar_select %p671, %s670, 31
          %s673 = scalar_lea.vmem %s4, %s672
        $region98: #{generator_forward.8} parent=85 // pred_fallthru
          _
      $region86: #{generator_forward.8} parent=5 // pred_fallthru
        _
    $region6: #{generator_forward.8} parent=1 // loop_footer
      %s15 = sadd.s32 1, %s11
    $region7: #{generator_forward.8} parent=1 // loop_footer_branch
      %10 = sbr.rel target = $region3
    $region8: #{generator_forward.8} parent=1 // loop_exit
      _

// kernel: generator_forward.9
$region0: #{generator_forward.9}
  #allocation0 [shape = 'u32[]', space=smem, size = 0x4, offset = 0x4, fixed_abs, tag = 'smem constant byte address 0x4 - core index']
  #allocation1 [shape = 'u32[144,128]{1,0:T(1,128)}', space=vmem, size = 0x12000, scoped, tag = 'internal scratch']
  %s0 = inlined_call_operand.vmem [shape: f32[32,256], index: 0, kind: input, shape index: {}]
  %s1 = inlined_call_operand.vmem [shape: f32[1,256], index: 1, kind: input, shape index: {}]
  %s2 = inlined_call_operand.vmem [shape: f32[1,256], index: 2, kind: input, shape index: {}]
  %s3 = inlined_call_operand.vmem [shape: bf16[32,256], index: 3, kind: output, shape index: {}]
  %s4 = sld [smem:[#allocation0]]
  $region22: #{generator_forward.9} parent=0
    _
  %s6 = ssub.s32 1, %s4
  %s7 = scalar_select 0, %s6, %s4
  // Predicated region
  $region2: #{generator_forward.9} parent=0 // pred_check
    _
  $region3: #{generator_forward.9} parent=0 // pred_check_branch
    %9 = sbr.rel (0) target = $region5
  $region4: #{generator_forward.9} parent=0 // pred_region
    _
  $region5: #{generator_forward.9} parent=0 // pred_fallthru
    _
  // Predicated region
  $region6: #{generator_forward.9} parent=0 // pred_check
    _
  $region7: #{generator_forward.9} parent=0 // pred_check_branch
    %11 = sbr.rel (0) target = $region9
  $region8: #{generator_forward.9} parent=0 // pred_region
    _
  $region9: #{generator_forward.9} parent=0 // pred_fallthru
    _
  // Predicated region
  $region10: #{generator_forward.9} parent=0 // pred_check
    _
  $region11: #{generator_forward.9} parent=0 // pred_check_branch
    %13 = sbr.rel (0) target = $region13
  $region12: #{generator_forward.9} parent=0 // pred_region
    _
  $region13: #{generator_forward.9} parent=0 // pred_fallthru
    _
  %v14 = vld [vmem:[%s0] sm:$0xff]
  %v15 = vld [vmem:[%s0 + $0x8] sm:$0xff]
  %v16 = vld [vmem:[%s0 + $0x10] sm:$0xff]
  %v17 = vld [vmem:[%s0 + $0x18] sm:$0xff]
  %v18 = vld [vmem:[%s0 + $0x20] sm:$0xff]
  %v19 = vld [vmem:[%s0 + $0x28] sm:$0xff]
  %v20 = vld [vmem:[%s0 + $0x30] sm:$0xff]
  %v21 = vld [vmem:[%s0 + $0x38] sm:$0xff]
  %v22 = vld [vmem:[%s1] sm:$0x3]
  %v24 = vlaneseq
  %v25 = vshrl.u32 %v24, 7
  %v26 = vsub.s32 0, %v25
  %v27 = vrot.slane %v22, %v26
  %v28 = vlaneseq
  %v29 = vshrl.u32 %v28, 7
  %v30 = vsub.s32 1, %v29
  %v31 = vrot.slane %v22, %v30
  %v34 = vmul.f32 %v14, %v27
  %v35 = vmul.f32 %v15, %v31
  %v36 = vmul.f32 %v16, %v27
  %v37 = vmul.f32 %v17, %v31
  %v38 = vmul.f32 %v18, %v27
  %v39 = vmul.f32 %v19, %v31
  %v40 = vmul.f32 %v20, %v27
  %v41 = vmul.f32 %v21, %v31
  %v42 = vld [vmem:[%s2] sm:$0x3]
  %v44 = vlaneseq
  %v45 = vshrl.u32 %v44, 7
  %v46 = vsub.s32 0, %v45
  %v47 = vrot.slane %v42, %v46
  %v48 = vlaneseq
  %v49 = vshrl.u32 %v48, 7
  %v50 = vsub.s32 1, %v49
  %v51 = vrot.slane %v42, %v50
  %v54 = vadd.f32 %v34, %v47
  %v55 = vadd.f32 %v35, %v51
  %v56 = vadd.f32 %v36, %v47
  %v57 = vadd.f32 %v37, %v51
  %v58 = vadd.f32 %v38, %v47
  %v59 = vadd.f32 %v39, %v51
  %v60 = vadd.f32 %v40, %v47
  %v61 = vadd.f32 %v41, %v51
  %v62 = vmax.f32 %v54, 0.0
  %v63 = vmax.f32 %v55, 0.0
  %v64 = vmax.f32 %v56, 0.0
  %v65 = vmax.f32 %v57, 0.0
  %v66 = vmax.f32 %v58, 0.0
  %v67 = vmax.f32 %v59, 0.0
  %v68 = vmax.f32 %v60, 0.0
  %v69 = vmax.f32 %v61, 0.0
  %v70 = vpack.c.bf16 %v64, %v62
  %v71 = vpack.c.bf16 %v65, %v63
  %v72 = vpack.c.bf16 %v68, %v66
  %v73 = vpack.c.bf16 %v69, %v67
  %v78 = vunpack.c.l.b16 %v70
  %v79 = vunpack.c.l.b16 %v71
  %v80 = vunpack.c.h.b16 %v70
  %v81 = vunpack.c.h.b16 %v71
  %v82 = vunpack.c.l.b16 %v72
  %v83 = vunpack.c.l.b16 %v73
  %v84 = vunpack.c.h.b16 %v72
  %v85 = vunpack.c.h.b16 %v73
  %v86 = vpack.c.b16 %v79, %v78
  %v87 = vpack.c.b16 %v81, %v80
  %v88 = vpack.c.b16 %v83, %v82
  %v89 = vpack.c.b16 %v85, %v84
  %94 = vst [vmem:[%s3] sm:$0xff] %v86
  %95 = vst [vmem:[%s3 + $0x8] sm:$0xff] %v87
  %96 = vst [vmem:[%s3 + $0x10] sm:$0xff] %v88
  %97 = vst [vmem:[%s3 + $0x18] sm:$0xff] %v89
  // Predicated region
  $region14: #{generator_forward.9} parent=0 // pred_check
    _
  $region15: #{generator_forward.9} parent=0 // pred_check_branch
    %99 = sbr.rel (0) target = $region17
  $region16: #{generator_forward.9} parent=0 // pred_region
    _
  $region17: #{generator_forward.9} parent=0 // pred_fallthru
    _
  // Predicated region
  $region18: #{generator_forward.9} parent=0 // pred_check
    _
  $region19: #{generator_forward.9} parent=0 // pred_check_branch
    %101 = sbr.rel (0) target = $region21
  $region20: #{generator_forward.9} parent=0 // pred_region
    _
  $region21: #{generator_forward.9} parent=0 // pred_fallthru
    _

// kernel: generator_forward.10
$region0: #{generator_forward.10}
  #allocation0 [shape = 'u32[]', space=smem, size = 0x4, offset = 0x4, fixed_abs, tag = 'smem constant byte address 0x4 - core index']
  #allocation1 [shape = 'u32[144,128]{1,0:T(1,128)}', space=vmem, size = 0x12000, scoped, tag = 'internal scratch']
  %s0 = inlined_call_operand.vmem [shape: bf16[4,32,1024], index: 0, kind: input, shape index: {}]
  %s1 = inlined_call_operand.vmem [shape: bf16[4,1024,128], index: 1, kind: input, shape index: {}]
  %s2 = inlined_call_operand.vmem [shape: f32[4,32,128], index: 2, kind: output, shape index: {0}]
  %s3 = inlined_call_operand.vmem [shape: f32[1,128], index: 3, kind: output, shape index: {1}]
  %s4 = inlined_call_operand.vmem [shape: f32[1,128], index: 4, kind: output, shape index: {2}]
  %5 = xla_tuple %s2, %s3, %s4
  %s6 = sld [smem:[#allocation0]]
  $region61: #{generator_forward.10} parent=0
    _
  %s8 = ssub.s32 1, %s6
  %s9 = scalar_select 0, %s8, %s6
  loop: start=0, step=1, limit=6
  $region2: #{generator_forward.10} parent=0 // loop_pre_header
    _
  $region3: #{generator_forward.10} parent=0 // loop_header
    %s11 = sphi 0, %s15
    %p12 = scmp.ge.s32.totalorder %s11, 6
    %s18 = sphi 0, %s37
    %s19 = sphi 0, %s33
    %s20 = sphi 0, %s29
    %s21 = sphi 0, %s18
    %s22 = sphi 0, %s19
    %s23 = sphi 0, %s20
    %s24 = sphi 0, %s21
    %s25 = sphi 0, %s22
    %s26 = sphi 0, %s23
    %s42 = sphi 0, %s44
    %s45 = sphi 0, %s42
    %s46 = sphi 0, %s45
    %s62 = sphi 0, %s46
    %s70 = sphi 0, %s72
    %s73 = sphi 0, %s70
    %s74 = sphi 0, %s73
    %s90 = sphi 0, %s74
    %s100 = sphi 0, %s102
    %s103 = sphi 0, %s100
    %s104 = sphi 0, %s103
    %s120 = sphi 0, %s104
    %s126 = sphi 0, %s128
    %s129 = sphi 0, %s126
    %s130 = sphi 0, %s129
    %s146 = sphi 0, %s130
    %s152 = sphi 0, %s154
    %s155 = sphi 0, %s152
    %s156 = sphi 0, %s155
    %s172 = sphi 0, %s156
  $region4: #{generator_forward.10} parent=0 // loop_header_branch
    %14 = sbr.rel (%p12) target = $region8
  $region5: #{generator_forward.10} parent=0 // loop_body
    %s16 = ssub.s32 %s11, 1
    %s17 = ssub.s32 %s11, 2
    %s27 = sadd.s32 1, %s20
    %p28 = scmp.ge.s32.totalorder %s27, 1
    %s29 = scalar_select %p28, 0, %s27
    %s30 = sadd.s32 1, %s19
    %s31 = scalar_select %p28, %s30, %s19
    %p32 = scmp.ge.s32.totalorder %s31, 4
    %s33 = scalar_select %p32, 0, %s31
    %s34 = sadd.s32 1, %s18
    %s35 = scalar_select %p32, %s34, %s18
    %p36 = scmp.ge.s32.totalorder %s35, 1
    %s37 = scalar_select %p36, 0, %s35
    %s38 = ssub.s32 %s19, %s33
    %s39 = ssub.s32 %s20, %s29
    %s40 = sor.u32 %s38, %s39
    %p41 = scmp.eq.s32.totalorder %s40, 0
    %s43 = sadd.s32 %s42, 1
    %s44 = scalar_select %p41, %s42, %s43
    %p47 = pneg %p41
    %p48 = scmp.eq.s32.totalorder %s11, 3
    %p49 = por %p47, %p48
    %p50 = scmp.ne.s32.totalorder %s42, %s45
    %p51 = scmp.eq.s32.totalorder %s11, 0
    %p52 = por %p50, %p51
    %p53 = scmp.ne.s32.totalorder %s42, %s45
    %p54 = scmp.eq.s32.totalorder %s16, 3
    %p55 = por %p53, %p54
    %p56 = scmp.ne.s32.totalorder %s45, %s46
    %p57 = scmp.eq.s32.totalorder %s16, 0
    %p58 = por %p56, %p57
    %p59 = scmp.ne.s32.totalorder %s45, %s46
    %p60 = scmp.eq.s32.totalorder %s17, 3
    %p61 = por %p59, %p60
    %p63 = scmp.ne.s32.totalorder %s46, %s62
    %p64 = scmp.eq.s32.totalorder %s17, 0
    %p65 = por %p63, %p64
    %s66 = ssub.s32 %s19, %s33
    %s67 = ssub.s32 %s18, %s37
    %s68 = sor.u32 %s66, %s67
    %p69 = scmp.eq.s32.totalorder %s68, 0
    %s71 = sadd.s32 %s70, 1
    %s72 = scalar_select %p69, %s70, %s71
    %p75 = pneg %p69
    %p76 = scmp.eq.s32.totalorder %s11, 3
    %p77 = por %p75, %p76
    %p78 = scmp.ne.s32.totalorder %s70, %s73
    %p79 = scmp.eq.s32.totalorder %s11, 0
    %p80 = por %p78, %p79
    %p81 = scmp.ne.s32.totalorder %s70, %s73
    %p82 = scmp.eq.s32.totalorder %s16, 3
    %p83 = por %p81, %p82
    %p84 = scmp.ne.s32.totalorder %s73, %s74
    %p85 = scmp.eq.s32.totalorder %s16, 0
    %p86 = por %p84, %p85
    %p87 = scmp.ne.s32.totalorder %s73, %s74
    %p88 = scmp.eq.s32.totalorder %s17, 3
    %p89 = por %p87, %p88
    %p91 = scmp.ne.s32.totalorder %s74, %s90
    %p92 = scmp.eq.s32.totalorder %s17, 0
    %p93 = por %p91, %p92
    %s94 = ssub.s32 %s19, %s33
    %s95 = ssub.s32 %s20, %s29
    %s96 = sor.u32 %s94, %s95
    %s97 = ssub.s32 %s18, %s37
    %s98 = sor.u32 %s96, %s97
    %p99 = scmp.eq.s32.totalorder %s98, 0
    %s101 = sadd.s32 %s100, 1
    %s102 = scalar_select %p99, %s100, %s101
    %p105 = pneg %p99
    %p106 = scmp.eq.s32.totalorder %s11, 3
    %p107 = por %p105, %p106
    %p108 = scmp.ne.s32.totalorder %s100, %s103
    %p109 = scmp.eq.s32.totalorder %s11, 0
    %p110 = por %p108, %p109
    %p111 = scmp.ne.s32.totalorder %s100, %s103
    %p112 = scmp.eq.s32.totalorder %s16, 3
    %p113 = por %p111, %p112
    %p114 = scmp.ne.s32.totalorder %s103, %s104
    %p115 = scmp.eq.s32.totalorder %s16, 0
    %p116 = por %p114, %p115
    %p117 = scmp.ne.s32.totalorder %s103, %s104
    %p118 = scmp.eq.s32.totalorder %s17, 3
    %p119 = por %p117, %p118
    %p121 = scmp.ne.s32.totalorder %s104, %s120
    %p122 = scmp.eq.s32.totalorder %s17, 0
    %p123 = por %p121, %p122
    %s124 = ssub.s32 %s18, %s37
    %p125 = scmp.eq.s32.totalorder %s124, 0
    %s127 = sadd.s32 %s126, 1
    %s128 = scalar_select %p125, %s126, %s127
    %p131 = pneg %p125
    %p132 = scmp.eq.s32.totalorder %s11, 3
    %p133 = por %p131, %p132
    %p134 = scmp.ne.s32.totalorder %s126, %s129
    %p135 = scmp.eq.s32.totalorder %s11, 0
    %p136 = por %p134, %p135
    %p137 = scmp.ne.s32.totalorder %s126, %s129
    %p138 = scmp.eq.s32.totalorder %s16, 3
    %p139 = por %p137, %p138
    %p140 = scmp.ne.s32.totalorder %s129, %s130
    %p141 = scmp.eq.s32.totalorder %s16, 0
    %p142 = por %p140, %p141
    %p143 = scmp.ne.s32.totalorder %s129, %s130
    %p144 = scmp.eq.s32.totalorder %s17, 3
    %p145 = por %p143, %p144
    %p147 = scmp.ne.s32.totalorder %s130, %s146
    %p148 = scmp.eq.s32.totalorder %s17, 0
    %p149 = por %p147, %p148
    %s150 = ssub.s32 %s18, %s37
    %p151 = scmp.eq.s32.totalorder %s150, 0
    %s153 = sadd.s32 %s152, 1
    %s154 = scalar_select %p151, %s152, %s153
    %p157 = pneg %p151
    %p158 = scmp.eq.s32.totalorder %s11, 3
    %p159 = por %p157, %p158
    %p160 = scmp.ne.s32.totalorder %s152, %s155
    %p161 = scmp.eq.s32.totalorder %s11, 0
    %p162 = por %p160, %p161
    %p163 = scmp.ne.s32.totalorder %s152, %s155
    %p164 = scmp.eq.s32.totalorder %s16, 3
    %p165 = por %p163, %p164
    %p166 = scmp.ne.s32.totalorder %s155, %s156
    %p167 = scmp.eq.s32.totalorder %s16, 0
    %p168 = por %p166, %p167
    %p169 = scmp.ne.s32.totalorder %s155, %s156
    %p170 = scmp.eq.s32.totalorder %s17, 3
    %p171 = por %p169, %p170
    %p173 = scmp.ne.s32.totalorder %s156, %s172
    %p174 = scmp.eq.s32.totalorder %s17, 0
    %p175 = por %p173, %p174
    %p176 = scmp.le.s32.totalorder 1, %s11
    %p177 = scmp.lt.s32.totalorder %s11, 5
    %p178 = pnand %p176, %p177
    %p179 = pneg %p178
    // Predicated region
    $region9: #{generator_forward.10} parent=5 // pred_check
      _
    $region10: #{generator_forward.10} parent=5 // pred_check_branch
      %181 = sbr.rel (%p178) target = $region12
    $region11: #{generator_forward.10} parent=5 // pred_region
      %s182 = ssub.s32 %s11, 1
    $region12: #{generator_forward.10} parent=5 // pred_fallthru
      _
    %p183 = scmp.lt.s32.totalorder %s11, 4
    // Predicated region
    $region13: #{generator_forward.10} parent=5 // pred_check
      %p184 = pneg %p183
    $region14: #{generator_forward.10} parent=5 // pred_check_branch
      %186 = sbr.rel (%p184) target = $region16
    $region15: #{generator_forward.10} parent=5 // pred_region
      // Predicated region
      $region17: #{generator_forward.10} parent=15 // pred_check
        %p187 = pneg %p52
      $region18: #{generator_forward.10} parent=15 // pred_check_branch
        %189 = sbr.rel (%p187) target = $region20
      $region19: #{generator_forward.10} parent=15 // pred_region
        %s190 = smul.u32 4, %s20
        %p191 = scmp.lt.s32.totalorder %s19, 3
        %s192 = scalar_select %p191, %s19, 3
        %p193 = scmp.lt.s32.totalorder %s190, 3
        %s194 = scalar_select %p193, %s190, 3
        %s195 = smul.addr %s194, 8
        %s196 = smul.addr %s192, 32
        %s197 = sadd.s32 %s195, %s196
        %s198 = smul.addr %s197, 4
        %s199 = scalar_lea.vmem %s0, %s198
        %s200 = smul.u32 4, %s20
      $region20: #{generator_forward.10} parent=15 // pred_fallthru
        _
      // Predicated region
      $region21: #{generator_forward.10} parent=15 // pred_check
        %p201 = pneg %p80
      $region22: #{generator_forward.10} parent=15 // pred_check_branch
        %203 = sbr.rel (%p201) target = $region24
      $region23: #{generator_forward.10} parent=15 // pred_region
        %p204 = scmp.lt.s32.totalorder %s19, 3
        %s205 = scalar_select %p204, %s19, 3
        %p206 = scmp.lt.s32.totalorder %s18, 0
        %s207 = scalar_select %p206, %s18, 0
        %s208 = smul.addr %s205, 128
        %s209 = sadd.s32 %s207, %s208
        %s210 = smul.addr %s209, 4
        %s211 = scalar_lea.vmem %s1, %s210
      $region24: #{generator_forward.10} parent=15 // pred_fallthru
        _
    $region16: #{generator_forward.10} parent=5 // pred_fallthru
      _
    %p212 = scmp.le.s32.totalorder 1, %s11
    %p213 = scmp.lt.s32.totalorder %s11, 5
    %p214 = pnand %p212, %p213
    %p215 = pneg %p214
    // Predicated region
    $region25: #{generator_forward.10} parent=5 // pred_check
      _
    $region26: #{generator_forward.10} parent=5 // pred_check_branch
      %217 = sbr.rel (%p214) target = $region28
    $region27: #{generator_forward.10} parent=5 // pred_region
      %s218 = ssub.s32 %s11, 1
      %s219 = smul.u32 4, %s23
      %p220 = scmp.lt.s32.totalorder %s22, 3
      %s221 = scalar_select %p220, %s22, 3
      %p222 = scmp.lt.s32.totalorder %s219, 3
      %s223 = scalar_select %p222, %s219, 3
      %s224 = smul.addr %s223, 8
      %s225 = smul.addr %s221, 32
      %s226 = sadd.s32 %s224, %s225
      %s227 = smul.addr %s226, 4
      %s228 = scalar_lea.vmem %s0, %s227
      %p229 = pneg %p58
      %p230 = pneg %p55
      %p231 = scmp.lt.s32.totalorder %s22, 3
      %s232 = scalar_select %p231, %s22, 3
      %p233 = scmp.lt.s32.totalorder %s21, 0
      %s234 = scalar_select %p233, %s21, 0
      %s235 = smul.addr %s232, 128
      %s236 = sadd.s32 %s234, %s235
      %s237 = smul.addr %s236, 4
      %s238 = scalar_lea.vmem %s1, %s237
      %p239 = pneg %p86
      %p240 = pneg %p83
      %p241 = pneg %p116
      %p242 = pneg %p113
      %s243 = smul.u32 4, %s23
      %p244 = scmp.lt.s32.totalorder %s22, 3
      %s245 = scalar_select %p244, %s22, 3
      %p246 = scmp.lt.s32.totalorder %s243, 3
      %s247 = scalar_select %p246, %s243, 3
      %p248 = scmp.lt.s32.totalorder %s21, 0
      %s249 = scalar_select %p248, %s21, 0
      %s250 = sadd.s32 %s249, %s247
      %s251 = smul.addr %s245, 4
      %s252 = sadd.s32 %s250, %s251
      %s253 = smul.addr %s252, 8
      %s254 = scalar_lea.vmem %s2, %s253
      %p255 = pneg %p142
      %p256 = pneg %p139
      %p257 = scmp.lt.s32.totalorder %s21, 0
      %s258 = scalar_select %p257, %s21, 0
      %s259 = scalar_lea.vmem %s3, %s258
      %p260 = pneg %p168
      %p261 = pneg %p165
      %p262 = scmp.lt.s32.totalorder %s21, 0
      %s263 = scalar_select %p262, %s21, 0
      %s264 = scalar_lea.vmem %s4, %s263
      %s265 = smul.u32 4, %s23
      %p266 = scmp.lt.s32.totalorder %s22, 3
      %s267 = scalar_select %p266, %s22, 3
      %p268 = scmp.lt.s32.totalorder %s265, 3
      %s269 = scalar_select %p268, %s265, 3
      %s270 = smul.addr %s269, 8
      %s271 = smul.addr %s267, 32
      %s272 = sadd.s32 %s270, %s271
      %s273 = smul.addr %s272, 4
      %s274 = scalar_lea.vmem %s0, %s273
      %s275 = smul.u32 4, %s23
      %p276 = scmp.lt.s32.totalorder %s22, 3
      %s277 = scalar_select %p276, %s22, 3
      %p278 = scmp.lt.s32.totalorder %s21, 0
      %s279 = scalar_select %p278, %s21, 0
      %s280 = smul.addr %s277, 128
      %s281 = sadd.s32 %s279, %s280
      %s282 = smul.addr %s281, 4
      %s283 = scalar_lea.vmem %s1, %s282
      %s284 = smul.u32 4, %s23
      %p285 = scmp.lt.s32.totalorder %s22, 3
      %s286 = scalar_select %p285, %s22, 3
      %p287 = scmp.lt.s32.totalorder %s284, 3
      %s288 = scalar_select %p287, %s284, 3
      %p289 = scmp.lt.s32.totalorder %s21, 0
      %s290 = scalar_select %p289, %s21, 0
      %s291 = sadd.s32 %s290, %s288
      %s292 = smul.addr %s286, 4
      %s293 = sadd.s32 %s291, %s292
      %s294 = smul.addr %s293, 8
      %s295 = scalar_lea.vmem %s2, %s294
      %s296 = smul.u32 4, %s23
      %p297 = scmp.lt.s32.totalorder %s21, 0
      %s298 = scalar_select %p297, %s21, 0
      %s299 = scalar_lea.vmem %s3, %s298
      %p300 = scmp.lt.s32.totalorder %s21, 0
      %s301 = scalar_select %p300, %s21, 0
      %s302 = scalar_lea.vmem %s4, %s301
      %v304 = vld [vmem:[%s274] sm:$0xff]
      %v305 = vld [vmem:[%s274 + $0x8] sm:$0xff]
      %v306 = vld [vmem:[%s274 + $0x10] sm:$0xff]
      %v307 = vld [vmem:[%s274 + $0x18] sm:$0xff]
      %v308 = vld [vmem:[%s274 + $0x20] sm:$0xff]
      %v309 = vld [vmem:[%s274 + $0x28] sm:$0xff]
      %v310 = vld [vmem:[%s274 + $0x30] sm:$0xff]
      %v311 = vld [vmem:[%s274 + $0x38] sm:$0xff]
      %v312 = vld [vmem:[%s274 + $0x40] sm:$0xff]
      %v313 = vld [vmem:[%s274 + $0x48] sm:$0xff]
      %v314 = vld [vmem:[%s274 + $0x50] sm:$0xff]
      %v315 = vld [vmem:[%s274 + $0x58] sm:$0xff]
      %v316 = vld [vmem:[%s274 + $0x60] sm:$0xff]
      %v317 = vld [vmem:[%s274 + $0x68] sm:$0xff]
      %v318 = vld [vmem:[%s274 + $0x70] sm:$0xff]
      %v319 = vld [vmem:[%s274 + $0x78] sm:$0xff]
      %v320 = vld [vmem:[%s283] sm:$0xf]
      %v321 = vld [vmem:[%s283 + $0x4] sm:$0xf]
      %v322 = vld [vmem:[%s283 + $0x8] sm:$0xf]
      %v323 = vld [vmem:[%s283 + $0xc] sm:$0xf]
      %v324 = vld [vmem:[%s283 + $0x10] sm:$0xf]
      %v325 = vld [vmem:[%s283 + $0x14] sm:$0xf]
      %v326 = vld [vmem:[%s283 + $0x18] sm:$0xf]
      %v327 = vld [vmem:[%s283 + $0x1c] sm:$0xf]
      %v328 = vld [vmem:[%s283 + $0x20] sm:$0xf]
      %v329 = vld [vmem:[%s283 + $0x24] sm:$0xf]
      %v330 = vld [vmem:[%s283 + $0x28] sm:$0xf]
      %v331 = vld [vmem:[%s283 + $0x2c] sm:$0xf]
      %v332 = vld [vmem:[%s283 + $0x30] sm:$0xf]
      %v333 = vld [vmem:[%s283 + $0x34] sm:$0xf]
      %v334 = vld [vmem:[%s283 + $0x38] sm:$0xf]
      %v335 = vld [vmem:[%s283 + $0x3c] sm:$0xf]
      %v336 = vld [vmem:[%s283 + $0x40] sm:$0xf]
      %v337 = vld [vmem:[%s283 + $0x44] sm:$0xf]
      %v338 = vld [vmem:[%s283 + $0x48] sm:$0xf]
      %v339 = vld [vmem:[%s283 + $0x4c] sm:$0xf]
      %v340 = vld [vmem:[%s283 + $0x50] sm:$0xf]
      %v341 = vld [vmem:[%s283 + $0x54] sm:$0xf]
      %v342 = vld [vmem:[%s283 + $0x58] sm:$0xf]
      %v343 = vld [vmem:[%s283 + $0x5c] sm:$0xf]
      %v344 = vld [vmem:[%s283 + $0x60] sm:$0xf]
      %v345 = vld [vmem:[%s283 + $0x64] sm:$0xf]
      %v346 = vld [vmem:[%s283 + $0x68] sm:$0xf]
      %v347 = vld [vmem:[%s283 + $0x6c] sm:$0xf]
      %v348 = vld [vmem:[%s283 + $0x70] sm:$0xf]
      %v349 = vld [vmem:[%s283 + $0x74] sm:$0xf]
      %v350 = vld [vmem:[%s283 + $0x78] sm:$0xf]
      %v351 = vld [vmem:[%s283 + $0x7c] sm:$0xf]
      %v352 = vld [vmem:[%s283 + $0x80] sm:$0xf]
      %v353 = vld [vmem:[%s283 + $0x84] sm:$0xf]
      %v354 = vld [vmem:[%s283 + $0x88] sm:$0xf]
      %v355 = vld [vmem:[%s283 + $0x8c] sm:$0xf]
      %v356 = vld [vmem:[%s283 + $0x90] sm:$0xf]
      %v357 = vld [vmem:[%s283 + $0x94] sm:$0xf]
      %v358 = vld [vmem:[%s283 + $0x98] sm:$0xf]
      %v359 = vld [vmem:[%s283 + $0x9c] sm:$0xf]
      %v360 = vld [vmem:[%s283 + $0xa0] sm:$0xf]
      %v361 = vld [vmem:[%s283 + $0xa4] sm:$0xf]
      %v362 = vld [vmem:[%s283 + $0xa8] sm:$0xf]
      %v363 = vld [vmem:[%s283 + $0xac] sm:$0xf]
      %v364 = vld [vmem:[%s283 + $0xb0] sm:$0xf]
      %v365 = vld [vmem:[%s283 + $0xb4] sm:$0xf]
      %v366 = vld [vmem:[%s283 + $0xb8] sm:$0xf]
      %v367 = vld [vmem:[%s283 + $0xbc] sm:$0xf]
      %v368 = vld [vmem:[%s283 + $0xc0] sm:$0xf]
      %v369 = vld [vmem:[%s283 + $0xc4] sm:$0xf]
      %v370 = vld [vmem:[%s283 + $0xc8] sm:$0xf]
      %v371 = vld [vmem:[%s283 + $0xcc] sm:$0xf]
      %v372 = vld [vmem:[%s283 + $0xd0] sm:$0xf]
      %v373 = vld [vmem:[%s283 + $0xd4] sm:$0xf]
      %v374 = vld [vmem:[%s283 + $0xd8] sm:$0xf]
      %v375 = vld [vmem:[%s283 + $0xdc] sm:$0xf]
      %v376 = vld [vmem:[%s283 + $0xe0] sm:$0xf]
      %v377 = vld [vmem:[%s283 + $0xe4] sm:$0xf]
      %v378 = vld [vmem:[%s283 + $0xe8] sm:$0xf]
      %v379 = vld [vmem:[%s283 + $0xec] sm:$0xf]
      %v380 = vld [vmem:[%s283 + $0xf0] sm:$0xf]
      %v381 = vld [vmem:[%s283 + $0xf4] sm:$0xf]
      %v382 = vld [vmem:[%s283 + $0xf8] sm:$0xf]
      %v383 = vld [vmem:[%s283 + $0xfc] sm:$0xf]
      %v384 = vld [vmem:[%s283 + $0x100] sm:$0xf]
      %v385 = vld [vmem:[%s283 + $0x104] sm:$0xf]
      %v386 = vld [vmem:[%s283 + $0x108] sm:$0xf]
      %v387 = vld [vmem:[%s283 + $0x10c] sm:$0xf]
      %v388 = vld [vmem:[%s283 + $0x110] sm:$0xf]
      %v389 = vld [vmem:[%s283 + $0x114] sm:$0xf]
      %v390 = vld [vmem:[%s283 + $0x118] sm:$0xf]
      %v391 = vld [vmem:[%s283 + $0x11c] sm:$0xf]
      %v392 = vld [vmem:[%s283 + $0x120] sm:$0xf]
      %v393 = vld [vmem:[%s283 + $0x124] sm:$0xf]
      %v394 = vld [vmem:[%s283 + $0x128] sm:$0xf]
      %v395 = vld [vmem:[%s283 + $0x12c] sm:$0xf]
      %v396 = vld [vmem:[%s283 + $0x130] sm:$0xf]
      %v397 = vld [vmem:[%s283 + $0x134] sm:$0xf]
      %v398 = vld [vmem:[%s283 + $0x138] sm:$0xf]
      %v399 = vld [vmem:[%s283 + $0x13c] sm:$0xf]
      %v400 = vld [vmem:[%s283 + $0x140] sm:$0xf]
      %v401 = vld [vmem:[%s283 + $0x144] sm:$0xf]
      %v402 = vld [vmem:[%s283 + $0x148] sm:$0xf]
      %v403 = vld [vmem:[%s283 + $0x14c] sm:$0xf]
      %v404 = vld [vmem:[%s283 + $0x150] sm:$0xf]
      %v405 = vld [vmem:[%s283 + $0x154] sm:$0xf]
      %v406 = vld [vmem:[%s283 + $0x158] sm:$0xf]
      %v407 = vld [vmem:[%s283 + $0x15c] sm:$0xf]
      %v408 = vld [vmem:[%s283 + $0x160] sm:$0xf]
      %v409 = vld [vmem:[%s283 + $0x164] sm:$0xf]
      %v410 = vld [vmem:[%s283 + $0x168] sm:$0xf]
      %v411 = vld [vmem:[%s283 + $0x16c] sm:$0xf]
      %v412 = vld [vmem:[%s283 + $0x170] sm:$0xf]
      %v413 = vld [vmem:[%s283 + $0x174] sm:$0xf]
      %v414 = vld [vmem:[%s283 + $0x178] sm:$0xf]
      %v415 = vld [vmem:[%s283 + $0x17c] sm:$0xf]
      %v416 = vld [vmem:[%s283 + $0x180] sm:$0xf]
      %v417 = vld [vmem:[%s283 + $0x184] sm:$0xf]
      %v418 = vld [vmem:[%s283 + $0x188] sm:$0xf]
      %v419 = vld [vmem:[%s283 + $0x18c] sm:$0xf]
      %v420 = vld [vmem:[%s283 + $0x190] sm:$0xf]
      %v421 = vld [vmem:[%s283 + $0x194] sm:$0xf]
      %v422 = vld [vmem:[%s283 + $0x198] sm:$0xf]
      %v423 = vld [vmem:[%s283 + $0x19c] sm:$0xf]
      %v424 = vld [vmem:[%s283 + $0x1a0] sm:$0xf]
      %v425 = vld [vmem:[%s283 + $0x1a4] sm:$0xf]
      %v426 = vld [vmem:[%s283 + $0x1a8] sm:$0xf]
      %v427 = vld [vmem:[%s283 + $0x1ac] sm:$0xf]
      %v428 = vld [vmem:[%s283 + $0x1b0] sm:$0xf]
      %v429 = vld [vmem:[%s283 + $0x1b4] sm:$0xf]
      %v430 = vld [vmem:[%s283 + $0x1b8] sm:$0xf]
      %v431 = vld [vmem:[%s283 + $0x1bc] sm:$0xf]
      %v432 = vld [vmem:[%s283 + $0x1c0] sm:$0xf]
      %v433 = vld [vmem:[%s283 + $0x1c4] sm:$0xf]
      %v434 = vld [vmem:[%s283 + $0x1c8] sm:$0xf]
      %v435 = vld [vmem:[%s283 + $0x1cc] sm:$0xf]
      %v436 = vld [vmem:[%s283 + $0x1d0] sm:$0xf]
      %v437 = vld [vmem:[%s283 + $0x1d4] sm:$0xf]
      %v438 = vld [vmem:[%s283 + $0x1d8] sm:$0xf]
      %v439 = vld [vmem:[%s283 + $0x1dc] sm:$0xf]
      %v440 = vld [vmem:[%s283 + $0x1e0] sm:$0xf]
      %v441 = vld [vmem:[%s283 + $0x1e4] sm:$0xf]
      %v442 = vld [vmem:[%s283 + $0x1e8] sm:$0xf]
      %v443 = vld [vmem:[%s283 + $0x1ec] sm:$0xf]
      %v444 = vld [vmem:[%s283 + $0x1f0] sm:$0xf]
      %v445 = vld [vmem:[%s283 + $0x1f4] sm:$0xf]
      %v446 = vld [vmem:[%s283 + $0x1f8] sm:$0xf]
      %v447 = vld [vmem:[%s283 + $0x1fc] sm:$0xf]
      %v464 = vunpack.c.l.b16 %v304
      %v465 = vunpack.c.h.b16 %v304
      %v466 = vunpack.c.l.b16 %v305
      %v467 = vunpack.c.h.b16 %v305
      %v468 = vunpack.c.l.b16 %v306
      %v469 = vunpack.c.h.b16 %v306
      %v470 = vunpack.c.l.b16 %v307
      %v471 = vunpack.c.h.b16 %v307
      %v472 = vunpack.c.l.b16 %v308
      %v473 = vunpack.c.h.b16 %v308
      %v474 = vunpack.c.l.b16 %v309
      %v475 = vunpack.c.h.b16 %v309
      %v476 = vunpack.c.l.b16 %v310
      %v477 = vunpack.c.h.b16 %v310
      %v478 = vunpack.c.l.b16 %v311
      %v479 = vunpack.c.h.b16 %v311
      %v480 = vunpack.c.l.b16 %v312
      %v481 = vunpack.c.h.b16 %v312
      %v482 = vunpack.c.l.b16 %v313
      %v483 = vunpack.c.h.b16 %v313
      %v484 = vunpack.c.l.b16 %v314
      %v485 = vunpack.c.h.b16 %v314
      %v486 = vunpack.c.l.b16 %v315
      %v487 = vunpack.c.h.b16 %v315
      %v488 = vunpack.c.l.b16 %v316
      %v489 = vunpack.c.h.b16 %v316
      %v490 = vunpack.c.l.b16 %v317
      %v491 = vunpack.c.h.b16 %v317
      %v492 = vunpack.c.l.b16 %v318
      %v493 = vunpack.c.h.b16 %v318
      %v494 = vunpack.c.l.b16 %v319
      %v495 = vunpack.c.h.b16 %v319
      %v496 = vpack.c.b16 %v472, %v464
      %v497 = vpack.c.b16 %v473, %v465
      %v498 = vpack.c.b16 %v474, %v466
      %v499 = vpack.c.b16 %v475, %v467
      %v500 = vpack.c.b16 %v476, %v468
      %v501 = vpack.c.b16 %v477, %v469
      %v502 = vpack.c.b16 %v478, %v470
      %v503 = vpack.c.b16 %v479, %v471
      %v504 = vpack.c.b16 %v488, %v480
      %v505 = vpack.c.b16 %v489, %v481
      %v506 = vpack.c.b16 %v490, %v482
      %v507 = vpack.c.b16 %v491, %v483
      %v508 = vpack.c.b16 %v492, %v484
      %v509 = vpack.c.b16 %v493, %v485
      %v510 = vpack.c.b16 %v494, %v486
      %v511 = vpack.c.b16 %v495, %v487
      %v656 = vunpack.c.l.b16 %v320
      %v657 = vunpack.c.l.b16 %v321
      %v658 = vunpack.c.l.b16 %v322
      %v659 = vunpack.c.l.b16 %v323
      %v660 = vunpack.c.l.b16 %v324
      %v661 = vunpack.c.l.b16 %v325
      %v662 = vunpack.c.l.b16 %v326
      %v663 = vunpack.c.l.b16 %v327
      %v664 = vunpack.c.l.b16 %v328
      %v665 = vunpack.c.l.b16 %v329
      %v666 = vunpack.c.l.b16 %v330
      %v667 = vunpack.c.l.b16 %v331
      %v668 = vunpack.c.l.b16 %v332
      %v669 = vunpack.c.l.b16 %v333
      %v670 = vunpack.c.l.b16 %v334
      %v671 = vunpack.c.l.b16 %v335
      %v672 = vunpack.c.l.b16 %v336
      %v673 = vunpack.c.l.b16 %v337
      %v674 = vunpack.c.l.b16 %v338
      %v675 = vunpack.c.l.b16 %v339
      %v676 = vunpack.c.l.b16 %v340
      %v677 = vunpack.c.l.b16 %v341
      %v678 = vunpack.c.l.b16 %v342
      %v679 = vunpack.c.l.b16 %v343
      %v680 = vunpack.c.l.b16 %v344
      %v681 = vunpack.c.l.b16 %v345
      %v682 = vunpack.c.l.b16 %v346
      %v683 = vunpack.c.l.b16 %v347
      %v684 = vunpack.c.l.b16 %v348
      %v685 = vunpack.c.l.b16 %v349
      %v686 = vunpack.c.l.b16 %v350
      %v687 = vunpack.c.l.b16 %v351
      %v688 = vunpack.c.l.b16 %v352
      %v689 = vunpack.c.l.b16 %v353
      %v690 = vunpack.c.l.b16 %v354
      %v691 = vunpack.c.l.b16 %v355
      %v692 = vunpack.c.l.b16 %v356
      %v693 = vunpack.c.l.b16 %v357
      %v694 = vunpack.c.l.b16 %v358
      %v695 = vunpack.c.l.b16 %v359
      %v696 = vunpack.c.l.b16 %v360
      %v697 = vunpack.c.l.b16 %v361
      %v698 = vunpack.c.l.b16 %v362
      %v699 = vunpack.c.l.b16 %v363
      %v700 = vunpack.c.l.b16 %v364
      %v701 = vunpack.c.l.b16 %v365
      %v702 = vunpack.c.l.b16 %v366
      %v703 = vunpack.c.l.b16 %v367
      %v704 = vunpack.c.l.b16 %v368
      %v705 = vunpack.c.l.b16 %v369
      %v706 = vunpack.c.l.b16 %v370
      %v707 = vunpack.c.l.b16 %v371
      %v708 = vunpack.c.l.b16 %v372
      %v709 = vunpack.c.l.b16 %v373
      %v710 = vunpack.c.l.b16 %v374
      %v711 = vunpack.c.l.b16 %v375
      %v712 = vunpack.c.l.b16 %v376
      %v713 = vunpack.c.l.b16 %v377
      %v714 = vunpack.c.l.b16 %v378
      %v715 = vunpack.c.l.b16 %v379
      %v716 = vunpack.c.l.b16 %v380
      %v717 = vunpack.c.l.b16 %v381
      %v718 = vunpack.c.l.b16 %v382
      %v719 = vunpack.c.l.b16 %v383
      %v720 = vunpack.c.l.b16 %v384
      %v721 = vunpack.c.l.b16 %v385
      %v722 = vunpack.c.l.b16 %v386
      %v723 = vunpack.c.l.b16 %v387
      %v724 = vunpack.c.l.b16 %v388
      %v725 = vunpack.c.l.b16 %v389
      %v726 = vunpack.c.l.b16 %v390
      %v727 = vunpack.c.l.b16 %v391
      %v728 = vunpack.c.l.b16 %v392
      %v729 = vunpack.c.l.b16 %v393
      %v730 = vunpack.c.l.b16 %v394
      %v731 = vunpack.c.l.b16 %v395
      %v732 = vunpack.c.l.b16 %v396
      %v733 = vunpack.c.l.b16 %v397
      %v734 = vunpack.c.l.b16 %v398
      %v735 = vunpack.c.l.b16 %v399
      %v736 = vunpack.c.l.b16 %v400
      %v737 = vunpack.c.l.b16 %v401
      %v738 = vunpack.c.l.b16 %v402
      %v739 = vunpack.c.l.b16 %v403
      %v740 = vunpack.c.l.b16 %v404
      %v741 = vunpack.c.l.b16 %v405
      %v742 = vunpack.c.l.b16 %v406
      %v743 = vunpack.c.l.b16 %v407
      %v744 = vunpack.c.l.b16 %v408
      %v745 = vunpack.c.l.b16 %v409
      %v746 = vunpack.c.l.b16 %v410
      %v747 = vunpack.c.l.b16 %v411
      %v748 = vunpack.c.l.b16 %v412
      %v749 = vunpack.c.l.b16 %v413
      %v750 = vunpack.c.l.b16 %v414
      %v751 = vunpack.c.l.b16 %v415
      %v752 = vunpack.c.l.b16 %v416
      %v753 = vunpack.c.l.b16 %v417
      %v754 = vunpack.c.l.b16 %v418
      %v755 = vunpack.c.l.b16 %v419
      %v756 = vunpack.c.l.b16 %v420
      %v757 = vunpack.c.l.b16 %v421
      %v758 = vunpack.c.l.b16 %v422
      %v759 = vunpack.c.l.b16 %v423
      %v760 = vunpack.c.l.b16 %v424
      %v761 = vunpack.c.l.b16 %v425
      %v762 = vunpack.c.l.b16 %v426
      %v763 = vunpack.c.l.b16 %v427
      %v764 = vunpack.c.l.b16 %v428
      %v765 = vunpack.c.l.b16 %v429
      %v766 = vunpack.c.l.b16 %v430
      %v767 = vunpack.c.l.b16 %v431
      %v768 = vunpack.c.l.b16 %v432
      %v769 = vunpack.c.l.b16 %v433
      %v770 = vunpack.c.l.b16 %v434
      %v771 = vunpack.c.l.b16 %v435
      %v772 = vunpack.c.l.b16 %v436
      %v773 = vunpack.c.l.b16 %v437
      %v774 = vunpack.c.l.b16 %v438
      %v775 = vunpack.c.l.b16 %v439
      %v776 = vunpack.c.l.b16 %v440
      %v777 = vunpack.c.l.b16 %v441
      %v778 = vunpack.c.l.b16 %v442
      %v779 = vunpack.c.l.b16 %v443
      %v780 = vunpack.c.l.b16 %v444
      %v781 = vunpack.c.l.b16 %v445
      %v782 = vunpack.c.l.b16 %v446
      %v783 = vunpack.c.l.b16 %v447
      %v784 = vpack.c.b16 %v657, %v656
      %v785 = vpack.c.b16 %v659, %v658
      %v786 = vpack.c.b16 %v661, %v660
      %v787 = vpack.c.b16 %v663, %v662
      %v788 = vpack.c.b16 %v665, %v664
      %v789 = vpack.c.b16 %v667, %v666
      %v790 = vpack.c.b16 %v669, %v668
      %v791 = vpack.c.b16 %v671, %v670
      %v792 = vpack.c.b16 %v673, %v672
      %v793 = vpack.c.b16 %v675, %v674
      %v794 = vpack.c.b16 %v677, %v676
      %v795 = vpack.c.b16 %v679, %v678
      %v796 = vpack.c.b16 %v681, %v680
      %v797 = vpack.c.b16 %v683, %v682
      %v798 = vpack.c.b16 %v685, %v684
      %v799 = vpack.c.b16 %v687, %v686
      %v800 = vpack.c.b16 %v689, %v688
      %v801 = vpack.c.b16 %v691, %v690
      %v802 = vpack.c.b16 %v693, %v692
      %v803 = vpack.c.b16 %v695, %v694
      %v804 = vpack.c.b16 %v697, %v696
      %v805 = vpack.c.b16 %v699, %v698
      %v806 = vpack.c.b16 %v701, %v700
      %v807 = vpack.c.b16 %v703, %v702
      %v808 = vpack.c.b16 %v705, %v704
      %v809 = vpack.c.b16 %v707, %v706
      %v810 = vpack.c.b16 %v709, %v708
      %v811 = vpack.c.b16 %v711, %v710
      %v812 = vpack.c.b16 %v713, %v712
      %v813 = vpack.c.b16 %v715, %v714
      %v814 = vpack.c.b16 %v717, %v716
      %v815 = vpack.c.b16 %v719, %v718
      %v816 = vpack.c.b16 %v721, %v720
      %v817 = vpack.c.b16 %v723, %v722
      %v818 = vpack.c.b16 %v725, %v724
      %v819 = vpack.c.b16 %v727, %v726
      %v820 = vpack.c.b16 %v729, %v728
      %v821 = vpack.c.b16 %v731, %v730
      %v822 = vpack.c.b16 %v733, %v732
      %v823 = vpack.c.b16 %v735, %v734
      %v824 = vpack.c.b16 %v737, %v736
      %v825 = vpack.c.b16 %v739, %v738
      %v826 = vpack.c.b16 %v741, %v740
      %v827 = vpack.c.b16 %v743, %v742
      %v828 = vpack.c.b16 %v745, %v744
      %v829 = vpack.c.b16 %v747, %v746
      %v830 = vpack.c.b16 %v749, %v748
      %v831 = vpack.c.b16 %v751, %v750
      %v832 = vpack.c.b16 %v753, %v752
      %v833 = vpack.c.b16 %v755, %v754
      %v834 = vpack.c.b16 %v757, %v756
      %v835 = vpack.c.b16 %v759, %v758
      %v836 = vpack.c.b16 %v761, %v760
      %v837 = vpack.c.b16 %v763, %v762
      %v838 = vpack.c.b16 %v765, %v764
      %v839 = vpack.c.b16 %v767, %v766
      %v840 = vpack.c.b16 %v769, %v768
      %v841 = vpack.c.b16 %v771, %v770
      %v842 = vpack.c.b16 %v773, %v772
      %v843 = vpack.c.b16 %v775, %v774
      %v844 = vpack.c.b16 %v777, %v776
      %v845 = vpack.c.b16 %v779, %v778
      %v846 = vpack.c.b16 %v781, %v780
      %v847 = vpack.c.b16 %v783, %v782
      %912 = vmatprep.subr.bf16.mxu0 0
      %913 = vmatpush1.bf16.msra.mxu0 %v784
      %914 = vmatprep.subr.bf16.mxu0 0
      %915 = vmatpush1.bf16.msra.mxu0 %v785
      %916 = vmatprep.subr.bf16.mxu0 0
      %917 = vmatpush1.bf16.msra.mxu0 %v786
      %918 = vmatprep.subr.bf16.mxu0 0
      %919 = vmatpush1.bf16.msra.mxu0 %v787
      %920 = vmatprep.subr.bf16.mxu0 0
      %921 = vmatpush1.bf16.msra.mxu0 %v788
      %922 = vmatprep.subr.bf16.mxu0 0
      %923 = vmatpush1.bf16.msra.mxu0 %v789
      %924 = vmatprep.subr.bf16.mxu0 0
      %925 = vmatpush1.bf16.msra.mxu0 %v790
      %926 = vmatprep.subr.bf16.mxu0 0
      %927 = vmatpush1.bf16.msra.mxu0 %v791
      %928 = vmatprep.subr.bf16.mxu0 0
      %929 = vmatpush1.bf16.msra.mxu0 %v792
      %930 = vmatprep.subr.bf16.mxu0 0
      %931 = vmatpush1.bf16.msra.mxu0 %v793
      %932 = vmatprep.subr.bf16.mxu0 0
      %933 = vmatpush1.bf16.msra.mxu0 %v794
      %934 = vmatprep.subr.bf16.mxu0 0
      %935 = vmatpush1.bf16.msra.mxu0 %v795
      %936 = vmatprep.subr.bf16.mxu0 0
      %937 = vmatpush1.bf16.msra.mxu0 %v796
      %938 = vmatprep.subr.bf16.mxu0 0
      %939 = vmatpush1.bf16.msra.mxu0 %v797
      %940 = vmatprep.subr.bf16.mxu0 0
      %941 = vmatpush1.bf16.msra.mxu0 %v798
      %942 = vmatprep.subr.bf16.mxu0 0
      %943 = vmatpush1.bf16.msra.mxu0 %v799
      %944 = vmatprep.mubr.bf16.mxu0 %v497
      %945 = vmatmul.mubr.bf16.gmra.mrb[0].mxu0 %v496
      %v946 = vpop.f32.mrb[0].mxu0
      %v947 = vadd.f32 0.0, %v946
      %v948 = vpop.f32.mrb[0].mxu0
      %v949 = vpop.f32.mrb[0].mxu0
      %v950 = vadd.f32 0.0, %v949
      %v951 = vpop.f32.mrb[0].mxu0
      %952 = vmatprep.mubr.bf16.mxu0 %v505
      %953 = vmatmul.mubr.bf16.gmra.mrb[0].mxu0 %v504
      %v954 = vpop.f32.mrb[0].mxu0
      %v955 = vadd.f32 0.0, %v954
      %v956 = vpop.f32.mrb[0].mxu0
      %v957 = vpop.f32.mrb[0].mxu0
      %v958 = vadd.f32 0.0, %v957
      %v959 = vpop.f32.mrb[0].mxu0
      %960 = vdwg.mxu0
      %961 = vmatprep.subr.bf16.mxu0 0
      %962 = vmatpush1.bf16.msra.mxu0 %v800
      %963 = vmatprep.subr.bf16.mxu0 0
      %964 = vmatpush1.bf16.msra.mxu0 %v801
      %965 = vmatprep.subr.bf16.mxu0 0
      %966 = vmatpush1.bf16.msra.mxu0 %v802
      %967 = vmatprep.subr.bf16.mxu0 0
      %968 = vmatpush1.bf16.msra.mxu0 %v803
      %969 = vmatprep.subr.bf16.mxu0 0
      %970 = vmatpush1.bf16.msra.mxu0 %v804
      %971 = vmatprep.subr.bf16.mxu0 0
      %972 = vmatpush1.bf16.msra.mxu0 %v805
      %973 = vmatprep.subr.bf16.mxu0 0
      %974 = vmatpush1.bf16.msra.mxu0 %v806
      %975 = vmatprep.subr.bf16.mxu0 0
      %976 = vmatpush1.bf16.msra.mxu0 %v807
      %977 = vmatprep.subr.bf16.mxu0 0
      %978 = vmatpush1.bf16.msra.mxu0 %v808
      %979 = vmatprep.subr.bf16.mxu0 0
      %980 = vmatpush1.bf16.msra.mxu0 %v809
      %981 = vmatprep.subr.bf16.mxu0 0
      %982 = vmatpush1.bf16.msra.mxu0 %v810
      %983 = vmatprep.subr.bf16.mxu0 0
      %984 = vmatpush1.bf16.msra.mxu0 %v811
      %985 = vmatprep.subr.bf16.mxu0 0
      %986 = vmatpush1.bf16.msra.mxu0 %v812
      %987 = vmatprep.subr.bf16.mxu0 0
      %988 = vmatpush1.bf16.msra.mxu0 %v813
      %989 = vmatprep.subr.bf16.mxu0 0
      %990 = vmatpush1.bf16.msra.mxu0 %v814
      %991 = vmatprep.subr.bf16.mxu0 0
      %992 = vmatpush1.bf16.msra.mxu0 %v815
      %993 = vmatprep.mubr.bf16.mxu0 %v499
      %994 = vmatmul.mubr.bf16.gmra.mrb[0].mxu0 %v498
      %v995 = vpop.f32.mrb[0].mxu0
      %v996 = vadd.f32 %v947, %v995
      %v997 = vpop.f32.mrb[0].mxu0
      %v998 = vpop.f32.mrb[0].mxu0
      %v999 = vadd.f32 %v950, %v998
      %v1000 = vpop.f32.mrb[0].mxu0
      %1001 = vmatprep.mubr.bf16.mxu0 %v507
      %1002 = vmatmul.mubr.bf16.gmra.mrb[0].mxu0 %v506
      %v1003 = vpop.f32.mrb[0].mxu0
      %v1004 = vadd.f32 %v955, %v1003
      %v1005 = vpop.f32.mrb[0].mxu0
      %v1006 = vpop.f32.mrb[0].mxu0
      %v1007 = vadd.f32 %v958, %v1006
      %v1008 = vpop.f32.mrb[0].mxu0
      %1009 = vdwg.mxu0
      %1010 = vmatprep.subr.bf16.mxu0 0
      %1011 = vmatpush1.bf16.msra.mxu0 %v816
      %1012 = vmatprep.subr.bf16.mxu0 0
      %1013 = vmatpush1.bf16.msra.mxu0 %v817
      %1014 = vmatprep.subr.bf16.mxu0 0
      %1015 = vmatpush1.bf16.msra.mxu0 %v818
      %1016 = vmatprep.subr.bf16.mxu0 0
      %1017 = vmatpush1.bf16.msra.mxu0 %v819
      %1018 = vmatprep.subr.bf16.mxu0 0
      %1019 = vmatpush1.bf16.msra.mxu0 %v820
      %1020 = vmatprep.subr.bf16.mxu0 0
      %1021 = vmatpush1.bf16.msra.mxu0 %v821
      %1022 = vmatprep.subr.bf16.mxu0 0
      %1023 = vmatpush1.bf16.msra.mxu0 %v822
      %1024 = vmatprep.subr.bf16.mxu0 0
      %1025 = vmatpush1.bf16.msra.mxu0 %v823
      %1026 = vmatprep.subr.bf16.mxu0 0
      %1027 = vmatpush1.bf16.msra.mxu0 %v824
      %1028 = vmatprep.subr.bf16.mxu0 0
      %1029 = vmatpush1.bf16.msra.mxu0 %v825
      %1030 = vmatprep.subr.bf16.mxu0 0
      %1031 = vmatpush1.bf16.msra.mxu0 %v826
      %1032 = vmatprep.subr.bf16.mxu0 0
      %1033 = vmatpush1.bf16.msra.mxu0 %v827
      %1034 = vmatprep.subr.bf16.mxu0 0
      %1035 = vmatpush1.bf16.msra.mxu0 %v828
      %1036 = vmatprep.subr.bf16.mxu0 0
      %1037 = vmatpush1.bf16.msra.mxu0 %v829
      %1038 = vmatprep.subr.bf16.mxu0 0
      %1039 = vmatpush1.bf16.msra.mxu0 %v830
      %1040 = vmatprep.subr.bf16.mxu0 0
      %1041 = vmatpush1.bf16.msra.mxu0 %v831
      %1042 = vmatprep.mubr.bf16.mxu0 %v501
      %1043 = vmatmul.mubr.bf16.gmra.mrb[0].mxu0 %v500
      %v1044 = vpop.f32.mrb[0].mxu0
      %v1045 = vadd.f32 %v996, %v1044
      %v1046 = vpop.f32.mrb[0].mxu0
      %v1047 = vpop.f32.mrb[0].mxu0
      %v1048 = vadd.f32 %v999, %v1047
      %v1049 = vpop.f32.mrb[0].mxu0
      %1050 = vmatprep.mubr.bf16.mxu0 %v509
      %1051 = vmatmul.mubr.bf16.gmra.mrb[0].mxu0 %v508
      %v1052 = vpop.f32.mrb[0].mxu0
      %v1053 = vadd.f32 %v1004, %v1052
      %v1054 = vpop.f32.mrb[0].mxu0
      %v1055 = vpop.f32.mrb[0].mxu0
      %v1056 = vadd.f32 %v1007, %v1055
      %v1057 = vpop.f32.mrb[0].mxu0
      %1058 = vdwg.mxu0
      %1059 = vmatprep.subr.bf16.mxu0 0
      %1060 = vmatpush1.bf16.msra.mxu0 %v832
      %1061 = vmatprep.subr.bf16.mxu0 0
      %1062 = vmatpush1.bf16.msra.mxu0 %v833
      %1063 = vmatprep.subr.bf16.mxu0 0
      %1064 = vmatpush1.bf16.msra.mxu0 %v834
      %1065 = vmatprep.subr.bf16.mxu0 0
      %1066 = vmatpush1.bf16.msra.mxu0 %v835
      %1067 = vmatprep.subr.bf16.mxu0 0
      %1068 = vmatpush1.bf16.msra.mxu0 %v836
      %1069 = vmatprep.subr.bf16.mxu0 0
      %1070 = vmatpush1.bf16.msra.mxu0 %v837
      %1071 = vmatprep.subr.bf16.mxu0 0
      %1072 = vmatpush1.bf16.msra.mxu0 %v838
      %1073 = vmatprep.subr.bf16.mxu0 0
      %1074 = vmatpush1.bf16.msra.mxu0 %v839
      %1075 = vmatprep.subr.bf16.mxu0 0
      %1076 = vmatpush1.bf16.msra.mxu0 %v840
      %1077 = vmatprep.subr.bf16.mxu0 0
      %1078 = vmatpush1.bf16.msra.mxu0 %v841
      %1079 = vmatprep.subr.bf16.mxu0 0
      %1080 = vmatpush1.bf16.msra.mxu0 %v842
      %1081 = vmatprep.subr.bf16.mxu0 0
      %1082 = vmatpush1.bf16.msra.mxu0 %v843
      %1083 = vmatprep.subr.bf16.mxu0 0
      %1084 = vmatpush1.bf16.msra.mxu0 %v844
      %1085 = vmatprep.subr.bf16.mxu0 0
      %1086 = vmatpush1.bf16.msra.mxu0 %v845
      %1087 = vmatprep.subr.bf16.mxu0 0
      %1088 = vmatpush1.bf16.msra.mxu0 %v846
      %1089 = vmatprep.subr.bf16.mxu0 0
      %1090 = vmatpush1.bf16.msra.mxu0 %v847
      %1091 = vmatprep.mubr.bf16.mxu0 %v503
      %1092 = vmatmul.mubr.bf16.gmra.mrb[0].mxu0 %v502
      %v1093 = vpop.f32.mrb[0].mxu0
      %v1094 = vadd.f32 %v1045, %v1093
      %v1095 = vpop.f32.mrb[0].mxu0
      %v1096 = vpop.f32.mrb[0].mxu0
      %v1097 = vadd.f32 %v1048, %v1096
      %v1098 = vpop.f32.mrb[0].mxu0
      %1099 = vmatprep.mubr.bf16.mxu0 %v511
      %1100 = vmatmul.mubr.bf16.gmra.mrb[0].mxu0 %v510
      %v1101 = vpop.f32.mrb[0].mxu0
      %v1102 = vadd.f32 %v1053, %v1101
      %v1103 = vpop.f32.mrb[0].mxu0
      %v1104 = vpop.f32.mrb[0].mxu0
      %v1105 = vadd.f32 %v1056, %v1104
      %v1106 = vpop.f32.mrb[0].mxu0
      %1107 = vdwg.mxu0
      %1108 = vst [vmem:[%s295] sm:$0xff] %v1094
      %1109 = vst [vmem:[%s295 + $0x8] sm:$0xff] %v1097
      %1110 = vst [vmem:[%s295 + $0x10] sm:$0xff] %v1102
      %1111 = vst [vmem:[%s295 + $0x18] sm:$0xff] %v1105
      %p1112 = scmp.eq.s32.totalorder %s22, 0
      %p1113 = scmp.eq.s32.totalorder %s23, 0
      %p1114 = pnand %p1112, %p1113
      %p1115 = pneg %p1114
      // Predicated region
      $region29: #{generator_forward.10} parent=27 // pred_check
        _
      $region30: #{generator_forward.10} parent=27 // pred_check_branch
        %1117 = sbr.rel (%p1114) target = $region32
      $region31: #{generator_forward.10} parent=27 // pred_region
        %1118 = vst [vmem:[%s299] sm:$0x1] 0.0
        %1119 = vst [vmem:[%s302] sm:$0x1] 0.0
      $region32: #{generator_forward.10} parent=27 // pred_fallthru
        _
      %v1120 = vld [vmem:[%s299] sm:$0x1]
      %v1121 = vadd.f32 %v1094, %v1097
      %v1122 = vadd.f32 %v1121, %v1102
      %v1123 = vadd.f32 %v1122, %v1105
      %v1124 = vrot.slane %v1123, 4
      %v1125 = vadd.f32 %v1123, %v1124
      %v1126 = vrot.slane %v1125, 2
      %v1127 = vadd.f32 %v1125, %v1126
      %v1128 = vrot.slane %v1127, 1
      %v1129 = vadd.f32 %v1127, %v1128
      %v1130 = vadd.f32 %v1120, %v1129
      %1131 = vst [vmem:[%s299] sm:$0x1] %v1130
      %v1132 = vld [vmem:[%s302] sm:$0x1]
      %v1133 = vmul.f32 %v1094, %v1094
      %v1134 = vmul.f32 %v1097, %v1097
      %v1135 = vmul.f32 %v1102, %v1102
      %v1136 = vmul.f32 %v1105, %v1105
      %v1137 = vadd.f32 %v1133, %v1134
      %v1138 = vadd.f32 %v1137, %v1135
      %v1139 = vadd.f32 %v1138, %v1136
      %v1140 = vrot.slane %v1139, 4
      %v1141 = vadd.f32 %v1139, %v1140
      %v1142 = vrot.slane %v1141, 2
      %v1143 = vadd.f32 %v1141, %v1142
      %v1144 = vrot.slane %v1143, 1
      %v1145 = vadd.f32 %v1143, %v1144
      %v1146 = vadd.f32 %v1132, %v1145
      %1147 = vst [vmem:[%s302] sm:$0x1] %v1146
      %s1148 = smul.u32 4, %s23
      %p1149 = scmp.lt.s32.totalorder %s22, 3
      %s1150 = scalar_select %p1149, %s22, 3
      %p1151 = scmp.lt.s32.totalorder %s1148, 3
      %s1152 = scalar_select %p1151, %s1148, 3
      %p1153 = scmp.lt.s32.totalorder %s21, 0
      %s1154 = scalar_select %p1153, %s21, 0
      %s1155 = sadd.s32 %s1154, %s1152
      %s1156 = smul.addr %s1150, 4
      %s1157 = sadd.s32 %s1155, %s1156
      %s1158 = smul.addr %s1157, 8
      %s1159 = scalar_lea.vmem %s2, %s1158
      %p1160 = scmp.lt.s32.totalorder %s21, 0
      %s1161 = scalar_select %p1160, %s21, 0
      %s1162 = scalar_lea.vmem %s3, %s1161
      %p1163 = scmp.lt.s32.totalorder %s21, 0
      %s1164 = scalar_select %p1163, %s21, 0
      %s1165 = scalar_lea.vmem %s4, %s1164
      // Predicated region
      $region33: #{generator_forward.10} parent=27 // pred_check
        %p1166 = pneg %p113
      $region34: #{generator_forward.10} parent=27 // pred_check_branch
        %1168 = sbr.rel (%p1166) target = $region36
      $region35: #{generator_forward.10} parent=27 // pred_region
        %s1169 = smul.u32 4, %s23
      $region36: #{generator_forward.10} parent=27 // pred_fallthru
        _
      // Predicated region
      $region37: #{generator_forward.10} parent=27 // pred_check
        %p1170 = pneg %p139
      $region38: #{generator_forward.10} parent=27 // pred_check_branch
        %1172 = sbr.rel (%p1170) target = $region40
      $region39: #{generator_forward.10} parent=27 // pred_region
        _
      $region40: #{generator_forward.10} parent=27 // pred_fallthru
        _
      // Predicated region
      $region41: #{generator_forward.10} parent=27 // pred_check
        %p1173 = pneg %p165
      $region42: #{generator_forward.10} parent=27 // pred_check_branch
        %1175 = sbr.rel (%p1173) target = $region44
      $region43: #{generator_forward.10} parent=27 // pred_region
        _
      $region44: #{generator_forward.10} parent=27 // pred_fallthru
        _
      // Predicated region
      $region45: #{generator_forward.10} parent=27 // pred_check
        %p1176 = pneg %p139
      $region46: #{generator_forward.10} parent=27 // pred_check_branch
        %1178 = sbr.rel (%p1176) target = $region48
      $region47: #{generator_forward.10} parent=27 // pred_region
        %p1179 = scmp.lt.s32.totalorder %s21, 0
        %s1180 = scalar_select %p1179, %s21, 0
        %s1181 = scalar_lea.vmem %s3, %s1180
      $region48: #{generator_forward.10} parent=27 // pred_fallthru
        _
      // Predicated region
      $region49: #{generator_forward.10} parent=27 // pred_check
        %p1182 = pneg %p165
      $region50: #{generator_forward.10} parent=27 // pred_check_branch
        %1184 = sbr.rel (%p1182) target = $region52
      $region51: #{generator_forward.10} parent=27 // pred_region
        %p1185 = scmp.lt.s32.totalorder %s21, 0
        %s1186 = scalar_select %p1185, %s21, 0
        %s1187 = scalar_lea.vmem %s4, %s1186
      $region52: #{generator_forward.10} parent=27 // pred_fallthru
        _
    $region28: #{generator_forward.10} parent=5 // pred_fallthru
      _
    %p1188 = scmp.le.s32.totalorder 2, %s11
    // Predicated region
    $region53: #{generator_forward.10} parent=5 // pred_check
      %p1189 = pneg %p1188
    $region54: #{generator_forward.10} parent=5 // pred_check_branch
      %1191 = sbr.rel (%p1189) target = $region56
    $region55: #{generator_forward.10} parent=5 // pred_region
      %s1192 = ssub.s32 %s11, 2
      // Predicated region
      $region57: #{generator_forward.10} parent=55 // pred_check
        %p1193 = pneg %p119
      $region58: #{generator_forward.10} parent=55 // pred_check_branch
        %1195 = sbr.rel (%p1193) target = $region60
      $region59: #{generator_forward.10} parent=55 // pred_region
        %s1196 = smul.u32 4, %s26
        %p1197 = scmp.lt.s32.totalorder %s25, 3
        %s1198 = scalar_select %p1197, %s25, 3
        %p1199 = scmp.lt.s32.totalorder %s1196, 3
        %s1200 = scalar_select %p1199, %s1196, 3
        %p1201 = scmp.lt.s32.totalorder %s24, 0
        %s1202 = scalar_select %p1201, %s24, 0
        %s1203 = sadd.s32 %s1202, %s1200
        %s1204 = smul.addr %s1198, 4
        %s1205 = sadd.s32 %s1203, %s1204
        %s1206 = smul.addr %s1205, 8
        %s1207 = scalar_lea.vmem %s2, %s1206
      $region60: #{generator_forward.10} parent=55 // pred_fallthru
        _
    $region56: #{generator_forward.10} parent=5 // pred_fallthru
      _
  $region6: #{generator_forward.10} parent=0 // loop_footer
    %s15 = sadd.s32 1, %s11
  $region7: #{generator_forward.10} parent=0 // loop_footer_branch
    %10 = sbr.rel target = $region3
  $region8: #{generator_forward.10} parent=0 // loop_exit
    _

// kernel: generator_forward.11
$region0: #{generator_forward.11}
  #allocation0 [shape = 'u32[]', space=smem, size = 0x4, offset = 0x4, fixed_abs, tag = 'smem constant byte address 0x4 - core index']
  #allocation1 [shape = 'u32[144,128]{1,0:T(1,128)}', space=vmem, size = 0x12000, scoped, tag = 'internal scratch']
  %s0 = inlined_call_operand.vmem [shape: f32[128,128], index: 0, kind: input, shape index: {}]
  %s1 = inlined_call_operand.vmem [shape: f32[1,128], index: 1, kind: input, shape index: {}]
  %s2 = inlined_call_operand.vmem [shape: f32[1,128], index: 2, kind: input, shape index: {}]
  %s3 = inlined_call_operand.vmem [shape: bf16[128,128], index: 3, kind: output, shape index: {}]
  %s4 = sld [smem:[#allocation0]]
  $region22: #{generator_forward.11} parent=0
    _
  %s6 = ssub.s32 1, %s4
  %s7 = scalar_select 0, %s6, %s4
  // Predicated region
  $region2: #{generator_forward.11} parent=0 // pred_check
    _
  $region3: #{generator_forward.11} parent=0 // pred_check_branch
    %9 = sbr.rel (0) target = $region5
  $region4: #{generator_forward.11} parent=0 // pred_region
    _
  $region5: #{generator_forward.11} parent=0 // pred_fallthru
    _
  // Predicated region
  $region6: #{generator_forward.11} parent=0 // pred_check
    _
  $region7: #{generator_forward.11} parent=0 // pred_check_branch
    %11 = sbr.rel (0) target = $region9
  $region8: #{generator_forward.11} parent=0 // pred_region
    _
  $region9: #{generator_forward.11} parent=0 // pred_fallthru
    _
  // Predicated region
  $region10: #{generator_forward.11} parent=0 // pred_check
    _
  $region11: #{generator_forward.11} parent=0 // pred_check_branch
    %13 = sbr.rel (0) target = $region13
  $region12: #{generator_forward.11} parent=0 // pred_region
    _
  $region13: #{generator_forward.11} parent=0 // pred_fallthru
    _
  %v14 = vld [vmem:[%s0] sm:$0xff]
  %v15 = vld [vmem:[%s0 + $0x8] sm:$0xff]
  %v16 = vld [vmem:[%s0 + $0x10] sm:$0xff]
  %v17 = vld [vmem:[%s0 + $0x18] sm:$0xff]
  %v18 = vld [vmem:[%s0 + $0x20] sm:$0xff]
  %v19 = vld [vmem:[%s0 + $0x28] sm:$0xff]
  %v20 = vld [vmem:[%s0 + $0x30] sm:$0xff]
  %v21 = vld [vmem:[%s0 + $0x38] sm:$0xff]
  %v22 = vld [vmem:[%s0 + $0x40] sm:$0xff]
  %v23 = vld [vmem:[%s0 + $0x48] sm:$0xff]
  %v24 = vld [vmem:[%s0 + $0x50] sm:$0xff]
  %v25 = vld [vmem:[%s0 + $0x58] sm:$0xff]
  %v26 = vld [vmem:[%s0 + $0x60] sm:$0xff]
  %v27 = vld [vmem:[%s0 + $0x68] sm:$0xff]
  %v28 = vld [vmem:[%s0 + $0x70] sm:$0xff]
  %v29 = vld [vmem:[%s0 + $0x78] sm:$0xff]
  %v30 = vld [vmem:[%s1] sm:$0x1]
  %v32 = vlaneseq
  %v33 = vshrl.u32 %v32, 7
  %v34 = vsub.s32 0, %v33
  %v35 = vrot.slane %v30, %v34
  %v37 = vmul.f32 %v14, %v35
  %v38 = vmul.f32 %v15, %v35
  %v39 = vmul.f32 %v16, %v35
  %v40 = vmul.f32 %v17, %v35
  %v41 = vmul.f32 %v18, %v35
  %v42 = vmul.f32 %v19, %v35
  %v43 = vmul.f32 %v20, %v35
  %v44 = vmul.f32 %v21, %v35
  %v45 = vmul.f32 %v22, %v35
  %v46 = vmul.f32 %v23, %v35
  %v47 = vmul.f32 %v24, %v35
  %v48 = vmul.f32 %v25, %v35
  %v49 = vmul.f32 %v26, %v35
  %v50 = vmul.f32 %v27, %v35
  %v51 = vmul.f32 %v28, %v35
  %v52 = vmul.f32 %v29, %v35
  %v53 = vld [vmem:[%s2] sm:$0x1]
  %v55 = vlaneseq
  %v56 = vshrl.u32 %v55, 7
  %v57 = vsub.s32 0, %v56
  %v58 = vrot.slane %v53, %v57
  %v60 = vadd.f32 %v37, %v58
  %v61 = vadd.f32 %v38, %v58
  %v62 = vadd.f32 %v39, %v58
  %v63 = vadd.f32 %v40, %v58
  %v64 = vadd.f32 %v41, %v58
  %v65 = vadd.f32 %v42, %v58
  %v66 = vadd.f32 %v43, %v58
  %v67 = vadd.f32 %v44, %v58
  %v68 = vadd.f32 %v45, %v58
  %v69 = vadd.f32 %v46, %v58
  %v70 = vadd.f32 %v47, %v58
  %v71 = vadd.f32 %v48, %v58
  %v72 = vadd.f32 %v49, %v58
  %v73 = vadd.f32 %v50, %v58
  %v74 = vadd.f32 %v51, %v58
  %v75 = vadd.f32 %v52, %v58
  %v76 = vmax.f32 %v60, 0.0
  %v77 = vmax.f32 %v61, 0.0
  %v78 = vmax.f32 %v62, 0.0
  %v79 = vmax.f32 %v63, 0.0
  %v80 = vmax.f32 %v64, 0.0
  %v81 = vmax.f32 %v65, 0.0
  %v82 = vmax.f32 %v66, 0.0
  %v83 = vmax.f32 %v67, 0.0
  %v84 = vmax.f32 %v68, 0.0
  %v85 = vmax.f32 %v69, 0.0
  %v86 = vmax.f32 %v70, 0.0
  %v87 = vmax.f32 %v71, 0.0
  %v88 = vmax.f32 %v72, 0.0
  %v89 = vmax.f32 %v73, 0.0
  %v90 = vmax.f32 %v74, 0.0
  %v91 = vmax.f32 %v75, 0.0
  %v92 = vpack.c.bf16 %v77, %v76
  %v93 = vpack.c.bf16 %v79, %v78
  %v94 = vpack.c.bf16 %v81, %v80
  %v95 = vpack.c.bf16 %v83, %v82
  %v96 = vpack.c.bf16 %v85, %v84
  %v97 = vpack.c.bf16 %v87, %v86
  %v98 = vpack.c.bf16 %v89, %v88
  %v99 = vpack.c.bf16 %v91, %v90
  %v108 = vunpack.c.l.b16 %v92
  %v109 = vunpack.c.h.b16 %v92
  %v110 = vunpack.c.l.b16 %v93
  %v111 = vunpack.c.h.b16 %v93
  %v112 = vunpack.c.l.b16 %v94
  %v113 = vunpack.c.h.b16 %v94
  %v114 = vunpack.c.l.b16 %v95
  %v115 = vunpack.c.h.b16 %v95
  %v116 = vunpack.c.l.b16 %v96
  %v117 = vunpack.c.h.b16 %v96
  %v118 = vunpack.c.l.b16 %v97
  %v119 = vunpack.c.h.b16 %v97
  %v120 = vunpack.c.l.b16 %v98
  %v121 = vunpack.c.h.b16 %v98
  %v122 = vunpack.c.l.b16 %v99
  %v123 = vunpack.c.h.b16 %v99
  %v124 = vpack.c.b16 %v108, %v108
  %v125 = vpack.c.b16 %v109, %v109
  %v126 = vpack.c.b16 %v110, %v110
  %v127 = vpack.c.b16 %v111, %v111
  %v128 = vpack.c.b16 %v112, %v112
  %v129 = vpack.c.b16 %v113, %v113
  %v130 = vpack.c.b16 %v114, %v114
  %v131 = vpack.c.b16 %v115, %v115
  %v132 = vpack.c.b16 %v116, %v116
  %v133 = vpack.c.b16 %v117, %v117
  %v134 = vpack.c.b16 %v118, %v118
  %v135 = vpack.c.b16 %v119, %v119
  %v136 = vpack.c.b16 %v120, %v120
  %v137 = vpack.c.b16 %v121, %v121
  %v138 = vpack.c.b16 %v122, %v122
  %v139 = vpack.c.b16 %v123, %v123
  %156 = vst [vmem:[%s3] sm:$0xf] %v124
  %157 = vst [vmem:[%s3 + $0x4] sm:$0xf] %v125
  %158 = vst [vmem:[%s3 + $0x8] sm:$0xf] %v126
  %159 = vst [vmem:[%s3 + $0xc] sm:$0xf] %v127
  %160 = vst [vmem:[%s3 + $0x10] sm:$0xf] %v128
  %161 = vst [vmem:[%s3 + $0x14] sm:$0xf] %v129
  %162 = vst [vmem:[%s3 + $0x18] sm:$0xf] %v130
  %163 = vst [vmem:[%s3 + $0x1c] sm:$0xf] %v131
  %164 = vst [vmem:[%s3 + $0x20] sm:$0xf] %v132
  %165 = vst [vmem:[%s3 + $0x24] sm:$0xf] %v133
  %166 = vst [vmem:[%s3 + $0x28] sm:$0xf] %v134
  %167 = vst [vmem:[%s3 + $0x2c] sm:$0xf] %v135
  %168 = vst [vmem:[%s3 + $0x30] sm:$0xf] %v136
  %169 = vst [vmem:[%s3 + $0x34] sm:$0xf] %v137
  %170 = vst [vmem:[%s3 + $0x38] sm:$0xf] %v138
  %171 = vst [vmem:[%s3 + $0x3c] sm:$0xf] %v139
  // Predicated region
  $region14: #{generator_forward.11} parent=0 // pred_check
    _
  $region15: #{generator_forward.11} parent=0 // pred_check_branch
    %173 = sbr.rel (0) target = $region17
  $region16: #{generator_forward.11} parent=0 // pred_region
    _
  $region17: #{generator_forward.11} parent=0 // pred_fallthru
    _
  // Predicated region
  $region18: #{generator_forward.11} parent=0 // pred_check
    _
  $region19: #{generator_forward.11} parent=0 // pred_check_branch
    %175 = sbr.rel (0) target = $region21
  $region20: #{generator_forward.11} parent=0 // pred_region
    _
  $region21: #{generator_forward.11} parent=0 // pred_fallthru
    _

// kernel: generator_forward.12
$region0: #{generator_forward.12}
  #allocation0 [shape = 'u32[]', space=smem, size = 0x4, offset = 0x4, fixed_abs, tag = 'smem constant byte address 0x4 - core index']
  #allocation1 [shape = 'u32[144,128]{1,0:T(1,128)}', space=vmem, size = 0x12000, scoped, tag = 'internal scratch']
  %s0 = inlined_call_operand.vmem [shape: bf16[4,128,512], index: 0, kind: input, shape index: {}]
  %s1 = inlined_call_operand.vmem [shape: bf16[4,512,64], index: 1, kind: input, shape index: {}]
  %s2 = inlined_call_operand.vmem [shape: f32[4,128,64], index: 2, kind: output, shape index: {0}]
  %s3 = inlined_call_operand.vmem [shape: f32[1,64], index: 3, kind: output, shape index: {1}]
  %s4 = inlined_call_operand.vmem [shape: f32[1,64], index: 4, kind: output, shape index: {2}]
  %5 = xla_tuple %s2, %s3, %s4
  %s6 = sld [smem:[#allocation0]]
  $region61: #{generator_forward.12} parent=0
    _
  %s8 = ssub.s32 1, %s6
  %s9 = scalar_select 0, %s8, %s6
  loop: start=0, step=1, limit=6
  $region2: #{generator_forward.12} parent=0 // loop_pre_header
    _
  $region3: #{generator_forward.12} parent=0 // loop_header
    %s11 = sphi 0, %s15
    %p12 = scmp.ge.s32.totalorder %s11, 6
    %s18 = sphi 0, %s37
    %s19 = sphi 0, %s33
    %s20 = sphi 0, %s29
    %s21 = sphi 0, %s18
    %s22 = sphi 0, %s19
    %s23 = sphi 0, %s20
    %s24 = sphi 0, %s21
    %s25 = sphi 0, %s22
    %s26 = sphi 0, %s23
    %s42 = sphi 0, %s44
    %s45 = sphi 0, %s42
    %s46 = sphi 0, %s45
    %s62 = sphi 0, %s46
    %s70 = sphi 0, %s72
    %s73 = sphi 0, %s70
    %s74 = sphi 0, %s73
    %s90 = sphi 0, %s74
    %s100 = sphi 0, %s102
    %s103 = sphi 0, %s100
    %s104 = sphi 0, %s103
    %s120 = sphi 0, %s104
    %s126 = sphi 0, %s128
    %s129 = sphi 0, %s126
    %s130 = sphi 0, %s129
    %s146 = sphi 0, %s130
    %s152 = sphi 0, %s154
    %s155 = sphi 0, %s152
    %s156 = sphi 0, %s155
    %s172 = sphi 0, %s156
  $region4: #{generator_forward.12} parent=0 // loop_header_branch
    %14 = sbr.rel (%p12) target = $region8
  $region5: #{generator_forward.12} parent=0 // loop_body
    %s16 = ssub.s32 %s11, 1
    %s17 = ssub.s32 %s11, 2
    %s27 = sadd.s32 1, %s20
    %p28 = scmp.ge.s32.totalorder %s27, 1
    %s29 = scalar_select %p28, 0, %s27
    %s30 = sadd.s32 1, %s19
    %s31 = scalar_select %p28, %s30, %s19
    %p32 = scmp.ge.s32.totalorder %s31, 4
    %s33 = scalar_select %p32, 0, %s31
    %s34 = sadd.s32 1, %s18
    %s35 = scalar_select %p32, %s34, %s18
    %p36 = scmp.ge.s32.totalorder %s35, 1
    %s37 = scalar_select %p36, 0, %s35
    %s38 = ssub.s32 %s19, %s33
    %s39 = ssub.s32 %s20, %s29
    %s40 = sor.u32 %s38, %s39
    %p41 = scmp.eq.s32.totalorder %s40, 0
    %s43 = sadd.s32 %s42, 1
    %s44 = scalar_select %p41, %s42, %s43
    %p47 = pneg %p41
    %p48 = scmp.eq.s32.totalorder %s11, 3
    %p49 = por %p47, %p48
    %p50 = scmp.ne.s32.totalorder %s42, %s45
    %p51 = scmp.eq.s32.totalorder %s11, 0
    %p52 = por %p50, %p51
    %p53 = scmp.ne.s32.totalorder %s42, %s45
    %p54 = scmp.eq.s32.totalorder %s16, 3
    %p55 = por %p53, %p54
    %p56 = scmp.ne.s32.totalorder %s45, %s46
    %p57 = scmp.eq.s32.totalorder %s16, 0
    %p58 = por %p56, %p57
    %p59 = scmp.ne.s32.totalorder %s45, %s46
    %p60 = scmp.eq.s32.totalorder %s17, 3
    %p61 = por %p59, %p60
    %p63 = scmp.ne.s32.totalorder %s46, %s62
    %p64 = scmp.eq.s32.totalorder %s17, 0
    %p65 = por %p63, %p64
    %s66 = ssub.s32 %s19, %s33
    %s67 = ssub.s32 %s18, %s37
    %s68 = sor.u32 %s66, %s67
    %p69 = scmp.eq.s32.totalorder %s68, 0
    %s71 = sadd.s32 %s70, 1
    %s72 = scalar_select %p69, %s70, %s71
    %p75 = pneg %p69
    %p76 = scmp.eq.s32.totalorder %s11, 3
    %p77 = por %p75, %p76
    %p78 = scmp.ne.s32.totalorder %s70, %s73
    %p79 = scmp.eq.s32.totalorder %s11, 0
    %p80 = por %p78, %p79
    %p81 = scmp.ne.s32.totalorder %s70, %s73
    %p82 = scmp.eq.s32.totalorder %s16, 3
    %p83 = por %p81, %p82
    %p84 = scmp.ne.s32.totalorder %s73, %s74
    %p85 = scmp.eq.s32.totalorder %s16, 0
    %p86 = por %p84, %p85
    %p87 = scmp.ne.s32.totalorder %s73, %s74
    %p88 = scmp.eq.s32.totalorder %s17, 3
    %p89 = por %p87, %p88
    %p91 = scmp.ne.s32.totalorder %s74, %s90
    %p92 = scmp.eq.s32.totalorder %s17, 0
    %p93 = por %p91, %p92
    %s94 = ssub.s32 %s19, %s33
    %s95 = ssub.s32 %s20, %s29
    %s96 = sor.u32 %s94, %s95
    %s97 = ssub.s32 %s18, %s37
    %s98 = sor.u32 %s96, %s97
    %p99 = scmp.eq.s32.totalorder %s98, 0
    %s101 = sadd.s32 %s100, 1
    %s102 = scalar_select %p99, %s100, %s101
    %p105 = pneg %p99
    %p106 = scmp.eq.s32.totalorder %s11, 3
    %p107 = por %p105, %p106
    %p108 = scmp.ne.s32.totalorder %s100, %s103
    %p109 = scmp.eq.s32.totalorder %s11, 0
    %p110 = por %p108, %p109
    %p111 = scmp.ne.s32.totalorder %s100, %s103
    %p112 = scmp.eq.s32.totalorder %s16, 3
    %p113 = por %p111, %p112
    %p114 = scmp.ne.s32.totalorder %s103, %s104
    %p115 = scmp.eq.s32.totalorder %s16, 0
    %p116 = por %p114, %p115
    %p117 = scmp.ne.s32.totalorder %s103, %s104
    %p118 = scmp.eq.s32.totalorder %s17, 3
    %p119 = por %p117, %p118
    %p121 = scmp.ne.s32.totalorder %s104, %s120
    %p122 = scmp.eq.s32.totalorder %s17, 0
    %p123 = por %p121, %p122
    %s124 = ssub.s32 %s18, %s37
    %p125 = scmp.eq.s32.totalorder %s124, 0
    %s127 = sadd.s32 %s126, 1
    %s128 = scalar_select %p125, %s126, %s127
    %p131 = pneg %p125
    %p132 = scmp.eq.s32.totalorder %s11, 3
    %p133 = por %p131, %p132
    %p134 = scmp.ne.s32.totalorder %s126, %s129
    %p135 = scmp.eq.s32.totalorder %s11, 0
    %p136 = por %p134, %p135
    %p137 = scmp.ne.s32.totalorder %s126, %s129
    %p138 = scmp.eq.s32.totalorder %s16, 3
    %p139 = por %p137, %p138
    %p140 = scmp.ne.s32.totalorder %s129, %s130
    %p141 = scmp.eq.s32.totalorder %s16, 0
    %p142 = por %p140, %p141
    %p143 = scmp.ne.s32.totalorder %s129, %s130
    %p144 = scmp.eq.s32.totalorder %s17, 3
    %p145 = por %p143, %p144
    %p147 = scmp.ne.s32.totalorder %s130, %s146
    %p148 = scmp.eq.s32.totalorder %s17, 0
    %p149 = por %p147, %p148
    %s150 = ssub.s32 %s18, %s37
    %p151 = scmp.eq.s32.totalorder %s150, 0
    %s153 = sadd.s32 %s152, 1
    %s154 = scalar_select %p151, %s152, %s153
    %p157 = pneg %p151
    %p158 = scmp.eq.s32.totalorder %s11, 3
    %p159 = por %p157, %p158
    %p160 = scmp.ne.s32.totalorder %s152, %s155
    %p161 = scmp.eq.s32.totalorder %s11, 0
    %p162 = por %p160, %p161
    %p163 = scmp.ne.s32.totalorder %s152, %s155
    %p164 = scmp.eq.s32.totalorder %s16, 3
    %p165 = por %p163, %p164
    %p166 = scmp.ne.s32.totalorder %s155, %s156
    %p167 = scmp.eq.s32.totalorder %s16, 0
    %p168 = por %p166, %p167
    %p169 = scmp.ne.s32.totalorder %s155, %s156
    %p170 = scmp.eq.s32.totalorder %s17, 3
    %p171 = por %p169, %p170
    %p173 = scmp.ne.s32.totalorder %s156, %s172
    %p174 = scmp.eq.s32.totalorder %s17, 0
    %p175 = por %p173, %p174
    %p176 = scmp.le.s32.totalorder 1, %s11
    %p177 = scmp.lt.s32.totalorder %s11, 5
    %p178 = pnand %p176, %p177
    %p179 = pneg %p178
    // Predicated region
    $region9: #{generator_forward.12} parent=5 // pred_check
      _
    $region10: #{generator_forward.12} parent=5 // pred_check_branch
      %181 = sbr.rel (%p178) target = $region12
    $region11: #{generator_forward.12} parent=5 // pred_region
      %s182 = ssub.s32 %s11, 1
    $region12: #{generator_forward.12} parent=5 // pred_fallthru
      _
    %p183 = scmp.lt.s32.totalorder %s11, 4
    // Predicated region
    $region13: #{generator_forward.12} parent=5 // pred_check
      %p184 = pneg %p183
    $region14: #{generator_forward.12} parent=5 // pred_check_branch
      %186 = sbr.rel (%p184) target = $region16
    $region15: #{generator_forward.12} parent=5 // pred_region
      // Predicated region
      $region17: #{generator_forward.12} parent=15 // pred_check
        %p187 = pneg %p52
      $region18: #{generator_forward.12} parent=15 // pred_check_branch
        %189 = sbr.rel (%p187) target = $region20
      $region19: #{generator_forward.12} parent=15 // pred_region
        %s190 = smul.u32 16, %s20
        %p191 = scmp.lt.s32.totalorder %s19, 3
        %s192 = scalar_select %p191, %s19, 3
        %p193 = scmp.lt.s32.totalorder %s190, 15
        %s194 = scalar_select %p193, %s190, 15
        %s195 = smul.addr %s194, 4
        %s196 = smul.addr %s192, 64
        %s197 = sadd.s32 %s195, %s196
        %s198 = smul.addr %s197, 4
        %s199 = scalar_lea.vmem %s0, %s198
        %s200 = smul.u32 16, %s20
      $region20: #{generator_forward.12} parent=15 // pred_fallthru
        _
      // Predicated region
      $region21: #{generator_forward.12} parent=15 // pred_check
        %p201 = pneg %p80
      $region22: #{generator_forward.12} parent=15 // pred_check_branch
        %203 = sbr.rel (%p201) target = $region24
      $region23: #{generator_forward.12} parent=15 // pred_region
        %p204 = scmp.lt.s32.totalorder %s19, 3
        %s205 = scalar_select %p204, %s19, 3
        %p206 = scmp.lt.s32.totalorder %s18, 0
        %s207 = scalar_select %p206, %s18, 0
        %s208 = smul.addr %s205, 64
        %s209 = sadd.s32 %s207, %s208
        %s210 = smul.addr %s209, 4
        %s211 = scalar_lea.vmem %s1, %s210
      $region24: #{generator_forward.12} parent=15 // pred_fallthru
        _
    $region16: #{generator_forward.12} parent=5 // pred_fallthru
      _
    %p212 = scmp.le.s32.totalorder 1, %s11
    %p213 = scmp.lt.s32.totalorder %s11, 5
    %p214 = pnand %p212, %p213
    %p215 = pneg %p214
    // Predicated region
    $region25: #{generator_forward.12} parent=5 // pred_check
      _
    $region26: #{generator_forward.12} parent=5 // pred_check_branch
      %217 = sbr.rel (%p214) target = $region28
    $region27: #{generator_forward.12} parent=5 // pred_region
      %s218 = ssub.s32 %s11, 1
      %s219 = smul.u32 16, %s23
      %p220 = scmp.lt.s32.totalorder %s22, 3
      %s221 = scalar_select %p220, %s22, 3
      %p222 = scmp.lt.s32.totalorder %s219, 15
      %s223 = scalar_select %p222, %s219, 15
      %s224 = smul.addr %s223, 4
      %s225 = smul.addr %s221, 64
      %s226 = sadd.s32 %s224, %s225
      %s227 = smul.addr %s226, 4
      %s228 = scalar_lea.vmem %s0, %s227
      %p229 = pneg %p58
      %p230 = pneg %p55
      %p231 = scmp.lt.s32.totalorder %s22, 3
      %s232 = scalar_select %p231, %s22, 3
      %p233 = scmp.lt.s32.totalorder %s21, 0
      %s234 = scalar_select %p233, %s21, 0
      %s235 = smul.addr %s232, 64
      %s236 = sadd.s32 %s234, %s235
      %s237 = smul.addr %s236, 4
      %s238 = scalar_lea.vmem %s1, %s237
      %p239 = pneg %p86
      %p240 = pneg %p83
      %p241 = pneg %p116
      %p242 = pneg %p113
      %s243 = smul.u32 16, %s23
      %p244 = scmp.lt.s32.totalorder %s22, 3
      %s245 = scalar_select %p244, %s22, 3
      %p246 = scmp.lt.s32.totalorder %s243, 15
      %s247 = scalar_select %p246, %s243, 15
      %p248 = scmp.lt.s32.totalorder %s21, 0
      %s249 = scalar_select %p248, %s21, 0
      %s250 = sadd.s32 %s249, %s247
      %s251 = smul.addr %s245, 16
      %s252 = sadd.s32 %s250, %s251
      %s253 = smul.addr %s252, 8
      %s254 = scalar_lea.vmem %s2, %s253
      %p255 = pneg %p142
      %p256 = pneg %p139
      %p257 = scmp.lt.s32.totalorder %s21, 0
      %s258 = scalar_select %p257, %s21, 0
      %s259 = scalar_lea.vmem %s3, %s258
      %p260 = pneg %p168
      %p261 = pneg %p165
      %p262 = scmp.lt.s32.totalorder %s21, 0
      %s263 = scalar_select %p262, %s21, 0
      %s264 = scalar_lea.vmem %s4, %s263
      %s265 = smul.u32 16, %s23
      %p266 = scmp.lt.s32.totalorder %s22, 3
      %s267 = scalar_select %p266, %s22, 3
      %p268 = scmp.lt.s32.totalorder %s265, 15
      %s269 = scalar_select %p268, %s265, 15
      %s270 = smul.addr %s269, 4
      %s271 = smul.addr %s267, 64
      %s272 = sadd.s32 %s270, %s271
      %s273 = smul.addr %s272, 4
      %s274 = scalar_lea.vmem %s0, %s273
      %s275 = smul.u32 16, %s23
      %p276 = scmp.lt.s32.totalorder %s22, 3
      %s277 = scalar_select %p276, %s22, 3
      %p278 = scmp.lt.s32.totalorder %s21, 0
      %s279 = scalar_select %p278, %s21, 0
      %s280 = smul.addr %s277, 64
      %s281 = sadd.s32 %s279, %s280
      %s282 = smul.addr %s281, 4
      %s283 = scalar_lea.vmem %s1, %s282
      %s284 = smul.u32 16, %s23
      %p285 = scmp.lt.s32.totalorder %s22, 3
      %s286 = scalar_select %p285, %s22, 3
      %p287 = scmp.lt.s32.totalorder %s284, 15
      %s288 = scalar_select %p287, %s284, 15
      %p289 = scmp.lt.s32.totalorder %s21, 0
      %s290 = scalar_select %p289, %s21, 0
      %s291 = sadd.s32 %s290, %s288
      %s292 = smul.addr %s286, 16
      %s293 = sadd.s32 %s291, %s292
      %s294 = smul.addr %s293, 8
      %s295 = scalar_lea.vmem %s2, %s294
      %s296 = smul.u32 16, %s23
      %p297 = scmp.lt.s32.totalorder %s21, 0
      %s298 = scalar_select %p297, %s21, 0
      %s299 = scalar_lea.vmem %s3, %s298
      %p300 = scmp.lt.s32.totalorder %s21, 0
      %s301 = scalar_select %p300, %s21, 0
      %s302 = scalar_lea.vmem %s4, %s301
      %v304 = vld [vmem:[%s274] sm:$0xff]
      %v305 = vld [vmem:[%s274 + $0x8] sm:$0xff]
      %v306 = vld [vmem:[%s274 + $0x10] sm:$0xff]
      %v307 = vld [vmem:[%s274 + $0x18] sm:$0xff]
      %v308 = vld [vmem:[%s274 + $0x20] sm:$0xff]
      %v309 = vld [vmem:[%s274 + $0x28] sm:$0xff]
      %v310 = vld [vmem:[%s274 + $0x30] sm:$0xff]
      %v311 = vld [vmem:[%s274 + $0x38] sm:$0xff]
      %v312 = vld [vmem:[%s274 + $0x40] sm:$0xff]
      %v313 = vld [vmem:[%s274 + $0x48] sm:$0xff]
      %v314 = vld [vmem:[%s274 + $0x50] sm:$0xff]
      %v315 = vld [vmem:[%s274 + $0x58] sm:$0xff]
      %v316 = vld [vmem:[%s274 + $0x60] sm:$0xff]
      %v317 = vld [vmem:[%s274 + $0x68] sm:$0xff]
      %v318 = vld [vmem:[%s274 + $0x70] sm:$0xff]
      %v319 = vld [vmem:[%s274 + $0x78] sm:$0xff]
      %v320 = vld [vmem:[%s274 + $0x80] sm:$0xff]
      %v321 = vld [vmem:[%s274 + $0x88] sm:$0xff]
      %v322 = vld [vmem:[%s274 + $0x90] sm:$0xff]
      %v323 = vld [vmem:[%s274 + $0x98] sm:$0xff]
      %v324 = vld [vmem:[%s274 + $0xa0] sm:$0xff]
      %v325 = vld [vmem:[%s274 + $0xa8] sm:$0xff]
      %v326 = vld [vmem:[%s274 + $0xb0] sm:$0xff]
      %v327 = vld [vmem:[%s274 + $0xb8] sm:$0xff]
      %v328 = vld [vmem:[%s274 + $0xc0] sm:$0xff]
      %v329 = vld [vmem:[%s274 + $0xc8] sm:$0xff]
      %v330 = vld [vmem:[%s274 + $0xd0] sm:$0xff]
      %v331 = vld [vmem:[%s274 + $0xd8] sm:$0xff]
      %v332 = vld [vmem:[%s274 + $0xe0] sm:$0xff]
      %v333 = vld [vmem:[%s274 + $0xe8] sm:$0xff]
      %v334 = vld [vmem:[%s274 + $0xf0] sm:$0xff]
      %v335 = vld [vmem:[%s274 + $0xf8] sm:$0xff]
      %v336 = vld [vmem:[%s283] sm:$0xf]
      %v337 = vld [vmem:[%s283 + $0x4] sm:$0xf]
      %v338 = vld [vmem:[%s283 + $0x8] sm:$0xf]
      %v339 = vld [vmem:[%s283 + $0xc] sm:$0xf]
      %v340 = vld [vmem:[%s283 + $0x10] sm:$0xf]
      %v341 = vld [vmem:[%s283 + $0x14] sm:$0xf]
      %v342 = vld [vmem:[%s283 + $0x18] sm:$0xf]
      %v343 = vld [vmem:[%s283 + $0x1c] sm:$0xf]
      %v344 = vld [vmem:[%s283 + $0x20] sm:$0xf]
      %v345 = vld [vmem:[%s283 + $0x24] sm:$0xf]
      %v346 = vld [vmem:[%s283 + $0x28] sm:$0xf]
      %v347 = vld [vmem:[%s283 + $0x2c] sm:$0xf]
      %v348 = vld [vmem:[%s283 + $0x30] sm:$0xf]
      %v349 = vld [vmem:[%s283 + $0x34] sm:$0xf]
      %v350 = vld [vmem:[%s283 + $0x38] sm:$0xf]
      %v351 = vld [vmem:[%s283 + $0x3c] sm:$0xf]
      %v352 = vld [vmem:[%s283 + $0x40] sm:$0xf]
      %v353 = vld [vmem:[%s283 + $0x44] sm:$0xf]
      %v354 = vld [vmem:[%s283 + $0x48] sm:$0xf]
      %v355 = vld [vmem:[%s283 + $0x4c] sm:$0xf]
      %v356 = vld [vmem:[%s283 + $0x50] sm:$0xf]
      %v357 = vld [vmem:[%s283 + $0x54] sm:$0xf]
      %v358 = vld [vmem:[%s283 + $0x58] sm:$0xf]
      %v359 = vld [vmem:[%s283 + $0x5c] sm:$0xf]
      %v360 = vld [vmem:[%s283 + $0x60] sm:$0xf]
      %v361 = vld [vmem:[%s283 + $0x64] sm:$0xf]
      %v362 = vld [vmem:[%s283 + $0x68] sm:$0xf]
      %v363 = vld [vmem:[%s283 + $0x6c] sm:$0xf]
      %v364 = vld [vmem:[%s283 + $0x70] sm:$0xf]
      %v365 = vld [vmem:[%s283 + $0x74] sm:$0xf]
      %v366 = vld [vmem:[%s283 + $0x78] sm:$0xf]
      %v367 = vld [vmem:[%s283 + $0x7c] sm:$0xf]
      %v368 = vld [vmem:[%s283 + $0x80] sm:$0xf]
      %v369 = vld [vmem:[%s283 + $0x84] sm:$0xf]
      %v370 = vld [vmem:[%s283 + $0x88] sm:$0xf]
      %v371 = vld [vmem:[%s283 + $0x8c] sm:$0xf]
      %v372 = vld [vmem:[%s283 + $0x90] sm:$0xf]
      %v373 = vld [vmem:[%s283 + $0x94] sm:$0xf]
      %v374 = vld [vmem:[%s283 + $0x98] sm:$0xf]
      %v375 = vld [vmem:[%s283 + $0x9c] sm:$0xf]
      %v376 = vld [vmem:[%s283 + $0xa0] sm:$0xf]
      %v377 = vld [vmem:[%s283 + $0xa4] sm:$0xf]
      %v378 = vld [vmem:[%s283 + $0xa8] sm:$0xf]
      %v379 = vld [vmem:[%s283 + $0xac] sm:$0xf]
      %v380 = vld [vmem:[%s283 + $0xb0] sm:$0xf]
      %v381 = vld [vmem:[%s283 + $0xb4] sm:$0xf]
      %v382 = vld [vmem:[%s283 + $0xb8] sm:$0xf]
      %v383 = vld [vmem:[%s283 + $0xbc] sm:$0xf]
      %v384 = vld [vmem:[%s283 + $0xc0] sm:$0xf]
      %v385 = vld [vmem:[%s283 + $0xc4] sm:$0xf]
      %v386 = vld [vmem:[%s283 + $0xc8] sm:$0xf]
      %v387 = vld [vmem:[%s283 + $0xcc] sm:$0xf]
      %v388 = vld [vmem:[%s283 + $0xd0] sm:$0xf]
      %v389 = vld [vmem:[%s283 + $0xd4] sm:$0xf]
      %v390 = vld [vmem:[%s283 + $0xd8] sm:$0xf]
      %v391 = vld [vmem:[%s283 + $0xdc] sm:$0xf]
      %v392 = vld [vmem:[%s283 + $0xe0] sm:$0xf]
      %v393 = vld [vmem:[%s283 + $0xe4] sm:$0xf]
      %v394 = vld [vmem:[%s283 + $0xe8] sm:$0xf]
      %v395 = vld [vmem:[%s283 + $0xec] sm:$0xf]
      %v396 = vld [vmem:[%s283 + $0xf0] sm:$0xf]
      %v397 = vld [vmem:[%s283 + $0xf4] sm:$0xf]
      %v398 = vld [vmem:[%s283 + $0xf8] sm:$0xf]
      %v399 = vld [vmem:[%s283 + $0xfc] sm:$0xf]
      %v432 = vunpack.c.l.b16 %v304
      %v433 = vunpack.c.h.b16 %v304
      %v434 = vunpack.c.l.b16 %v305
      %v435 = vunpack.c.h.b16 %v305
      %v436 = vunpack.c.l.b16 %v306
      %v437 = vunpack.c.h.b16 %v306
      %v438 = vunpack.c.l.b16 %v307
      %v439 = vunpack.c.h.b16 %v307
      %v440 = vunpack.c.l.b16 %v308
      %v441 = vunpack.c.h.b16 %v308
      %v442 = vunpack.c.l.b16 %v309
      %v443 = vunpack.c.h.b16 %v309
      %v444 = vunpack.c.l.b16 %v310
      %v445 = vunpack.c.h.b16 %v310
      %v446 = vunpack.c.l.b16 %v311
      %v447 = vunpack.c.h.b16 %v311
      %v448 = vunpack.c.l.b16 %v312
      %v449 = vunpack.c.h.b16 %v312
      %v450 = vunpack.c.l.b16 %v313
      %v451 = vunpack.c.h.b16 %v313
      %v452 = vunpack.c.l.b16 %v314
      %v453 = vunpack.c.h.b16 %v314
      %v454 = vunpack.c.l.b16 %v315
      %v455 = vunpack.c.h.b16 %v315
      %v456 = vunpack.c.l.b16 %v316
      %v457 = vunpack.c.h.b16 %v316
      %v458 = vunpack.c.l.b16 %v317
      %v459 = vunpack.c.h.b16 %v317
      %v460 = vunpack.c.l.b16 %v318
      %v461 = vunpack.c.h.b16 %v318
      %v462 = vunpack.c.l.b16 %v319
      %v463 = vunpack.c.h.b16 %v319
      %v464 = vunpack.c.l.b16 %v320
      %v465 = vunpack.c.h.b16 %v320
      %v466 = vunpack.c.l.b16 %v321
      %v467 = vunpack.c.h.b16 %v321
      %v468 = vunpack.c.l.b16 %v322
      %v469 = vunpack.c.h.b16 %v322
      %v470 = vunpack.c.l.b16 %v323
      %v471 = vunpack.c.h.b16 %v323
      %v472 = vunpack.c.l.b16 %v324
      %v473 = vunpack.c.h.b16 %v324
      %v474 = vunpack.c.l.b16 %v325
      %v475 = vunpack.c.h.b16 %v325
      %v476 = vunpack.c.l.b16 %v326
      %v477 = vunpack.c.h.b16 %v326
      %v478 = vunpack.c.l.b16 %v327
      %v479 = vunpack.c.h.b16 %v327
      %v480 = vunpack.c.l.b16 %v328
      %v481 = vunpack.c.h.b16 %v328
      %v482 = vunpack.c.l.b16 %v329
      %v483 = vunpack.c.h.b16 %v329
      %v484 = vunpack.c.l.b16 %v330
      %v485 = vunpack.c.h.b16 %v330
      %v486 = vunpack.c.l.b16 %v331
      %v487 = vunpack.c.h.b16 %v331
      %v488 = vunpack.c.l.b16 %v332
      %v489 = vunpack.c.h.b16 %v332
      %v490 = vunpack.c.l.b16 %v333
      %v491 = vunpack.c.h.b16 %v333
      %v492 = vunpack.c.l.b16 %v334
      %v493 = vunpack.c.h.b16 %v334
      %v494 = vunpack.c.l.b16 %v335
      %v495 = vunpack.c.h.b16 %v335
      %v496 = vpack.c.b16 %v436, %v432
      %v497 = vpack.c.b16 %v437, %v433
      %v498 = vpack.c.b16 %v438, %v434
      %v499 = vpack.c.b16 %v439, %v435
      %v500 = vpack.c.b16 %v444, %v440
      %v501 = vpack.c.b16 %v445, %v441
      %v502 = vpack.c.b16 %v446, %v442
      %v503 = vpack.c.b16 %v447, %v443
      %v504 = vpack.c.b16 %v452, %v448
      %v505 = vpack.c.b16 %v453, %v449
      %v506 = vpack.c.b16 %v454, %v450
      %v507 = vpack.c.b16 %v455, %v451
      %v508 = vpack.c.b16 %v460, %v456
      %v509 = vpack.c.b16 %v461, %v457
      %v510 = vpack.c.b16 %v462, %v458
      %v511 = vpack.c.b16 %v463, %v459
      %v512 = vpack.c.b16 %v468, %v464
      %v513 = vpack.c.b16 %v469, %v465
      %v514 = vpack.c.b16 %v470, %v466
      %v515 = vpack.c.b16 %v471, %v467
      %v516 = vpack.c.b16 %v476, %v472
      %v517 = vpack.c.b16 %v477, %v473
      %v518 = vpack.c.b16 %v478, %v474
      %v519 = vpack.c.b16 %v479, %v475
      %v520 = vpack.c.b16 %v484, %v480
      %v521 = vpack.c.b16 %v485, %v481
      %v522 = vpack.c.b16 %v486, %v482
      %v523 = vpack.c.b16 %v487, %v483
      %v524 = vpack.c.b16 %v492, %v488
      %v525 = vpack.c.b16 %v493, %v489
      %v526 = vpack.c.b16 %v494, %v490
      %v527 = vpack.c.b16 %v495, %v491
      %v624 = vunpack.c.l.b16 %v336
      %v625 = vunpack.c.l.b16 %v337
      %v626 = vunpack.c.l.b16 %v338
      %v627 = vunpack.c.l.b16 %v339
      %v628 = vunpack.c.l.b16 %v340
      %v629 = vunpack.c.l.b16 %v341
      %v630 = vunpack.c.l.b16 %v342
      %v631 = vunpack.c.l.b16 %v343
      %v632 = vunpack.c.l.b16 %v344
      %v633 = vunpack.c.l.b16 %v345
      %v634 = vunpack.c.l.b16 %v346
      %v635 = vunpack.c.l.b16 %v347
      %v636 = vunpack.c.l.b16 %v348
      %v637 = vunpack.c.l.b16 %v349
      %v638 = vunpack.c.l.b16 %v350
      %v639 = vunpack.c.l.b16 %v351
      %v640 = vunpack.c.l.b16 %v352
      %v641 = vunpack.c.l.b16 %v353
      %v642 = vunpack.c.l.b16 %v354
      %v643 = vunpack.c.l.b16 %v355
      %v644 = vunpack.c.l.b16 %v356
      %v645 = vunpack.c.l.b16 %v357
      %v646 = vunpack.c.l.b16 %v358
      %v647 = vunpack.c.l.b16 %v359
      %v648 = vunpack.c.l.b16 %v360
      %v649 = vunpack.c.l.b16 %v361
      %v650 = vunpack.c.l.b16 %v362
      %v651 = vunpack.c.l.b16 %v363
      %v652 = vunpack.c.l.b16 %v364
      %v653 = vunpack.c.l.b16 %v365
      %v654 = vunpack.c.l.b16 %v366
      %v655 = vunpack.c.l.b16 %v367
      %v656 = vunpack.c.l.b16 %v368
      %v657 = vunpack.c.l.b16 %v369
      %v658 = vunpack.c.l.b16 %v370
      %v659 = vunpack.c.l.b16 %v371
      %v660 = vunpack.c.l.b16 %v372
      %v661 = vunpack.c.l.b16 %v373
      %v662 = vunpack.c.l.b16 %v374
      %v663 = vunpack.c.l.b16 %v375
      %v664 = vunpack.c.l.b16 %v376
      %v665 = vunpack.c.l.b16 %v377
      %v666 = vunpack.c.l.b16 %v378
      %v667 = vunpack.c.l.b16 %v379
      %v668 = vunpack.c.l.b16 %v380
      %v669 = vunpack.c.l.b16 %v381
      %v670 = vunpack.c.l.b16 %v382
      %v671 = vunpack.c.l.b16 %v383
      %v672 = vunpack.c.l.b16 %v384
      %v673 = vunpack.c.l.b16 %v385
      %v674 = vunpack.c.l.b16 %v386
      %v675 = vunpack.c.l.b16 %v387
      %v676 = vunpack.c.l.b16 %v388
      %v677 = vunpack.c.l.b16 %v389
      %v678 = vunpack.c.l.b16 %v390
      %v679 = vunpack.c.l.b16 %v391
      %v680 = vunpack.c.l.b16 %v392
      %v681 = vunpack.c.l.b16 %v393
      %v682 = vunpack.c.l.b16 %v394
      %v683 = vunpack.c.l.b16 %v395
      %v684 = vunpack.c.l.b16 %v396
      %v685 = vunpack.c.l.b16 %v397
      %v686 = vunpack.c.l.b16 %v398
      %v687 = vunpack.c.l.b16 %v399
      %v688 = vpack.c.b16 %v625, %v624
      %v689 = vpack.c.b16 %v627, %v626
      %v690 = vpack.c.b16 %v629, %v628
      %v691 = vpack.c.b16 %v631, %v630
      %v692 = vpack.c.b16 %v633, %v632
      %v693 = vpack.c.b16 %v635, %v634
      %v694 = vpack.c.b16 %v637, %v636
      %v695 = vpack.c.b16 %v639, %v638
      %v696 = vpack.c.b16 %v641, %v640
      %v697 = vpack.c.b16 %v643, %v642
      %v698 = vpack.c.b16 %v645, %v644
      %v699 = vpack.c.b16 %v647, %v646
      %v700 = vpack.c.b16 %v649, %v648
      %v701 = vpack.c.b16 %v651, %v650
      %v702 = vpack.c.b16 %v653, %v652
      %v703 = vpack.c.b16 %v655, %v654
      %v704 = vpack.c.b16 %v657, %v656
      %v705 = vpack.c.b16 %v659, %v658
      %v706 = vpack.c.b16 %v661, %v660
      %v707 = vpack.c.b16 %v663, %v662
      %v708 = vpack.c.b16 %v665, %v664
      %v709 = vpack.c.b16 %v667, %v666
      %v710 = vpack.c.b16 %v669, %v668
      %v711 = vpack.c.b16 %v671, %v670
      %v712 = vpack.c.b16 %v673, %v672
      %v713 = vpack.c.b16 %v675, %v674
      %v714 = vpack.c.b16 %v677, %v676
      %v715 = vpack.c.b16 %v679, %v678
      %v716 = vpack.c.b16 %v681, %v680
      %v717 = vpack.c.b16 %v683, %v682
      %v718 = vpack.c.b16 %v685, %v684
      %v719 = vpack.c.b16 %v687, %v686
      %752 = vmatprep.subr.bf16.mxu0 0
      %753 = vmatpush1.bf16.msra.mxu0 %v688
      %754 = vmatprep.subr.bf16.mxu0 0
      %755 = vmatpush1.bf16.msra.mxu0 %v689
      %756 = vmatprep.subr.bf16.mxu0 0
      %757 = vmatpush1.bf16.msra.mxu0 %v690
      %758 = vmatprep.subr.bf16.mxu0 0
      %759 = vmatpush1.bf16.msra.mxu0 %v691
      %760 = vmatprep.subr.bf16.mxu0 0
      %761 = vmatpush1.bf16.msra.mxu0 %v692
      %762 = vmatprep.subr.bf16.mxu0 0
      %763 = vmatpush1.bf16.msra.mxu0 %v693
      %764 = vmatprep.subr.bf16.mxu0 0
      %765 = vmatpush1.bf16.msra.mxu0 %v694
      %766 = vmatprep.subr.bf16.mxu0 0
      %767 = vmatpush1.bf16.msra.mxu0 %v695
      %768 = vmatprep.subr.bf16.mxu0 0
      %769 = vmatpush1.bf16.msra.mxu0 %v696
      %770 = vmatprep.subr.bf16.mxu0 0
      %771 = vmatpush1.bf16.msra.mxu0 %v697
      %772 = vmatprep.subr.bf16.mxu0 0
      %773 = vmatpush1.bf16.msra.mxu0 %v698
      %774 = vmatprep.subr.bf16.mxu0 0
      %775 = vmatpush1.bf16.msra.mxu0 %v699
      %776 = vmatprep.subr.bf16.mxu0 0
      %777 = vmatpush1.bf16.msra.mxu0 %v700
      %778 = vmatprep.subr.bf16.mxu0 0
      %779 = vmatpush1.bf16.msra.mxu0 %v701
      %780 = vmatprep.subr.bf16.mxu0 0
      %781 = vmatpush1.bf16.msra.mxu0 %v702
      %782 = vmatprep.subr.bf16.mxu0 0
      %783 = vmatpush1.bf16.msra.mxu0 %v703
      %784 = vmatprep.mubr.bf16.mxu0 %v497
      %785 = vmatmul.mubr.bf16.gmra.mrb[0].mxu0 %v496
      %v786 = vpop.f32.mrb[0].mxu0
      %v787 = vadd.f32 0.0, %v786
      %v788 = vpop.f32.mrb[0].mxu0
      %v789 = vpop.f32.mrb[0].mxu0
      %v790 = vadd.f32 0.0, %v789
      %v791 = vpop.f32.mrb[0].mxu0
      %792 = vmatprep.mubr.bf16.mxu0 %v501
      %793 = vmatmul.mubr.bf16.gmra.mrb[0].mxu0 %v500
      %v794 = vpop.f32.mrb[0].mxu0
      %v795 = vadd.f32 0.0, %v794
      %v796 = vpop.f32.mrb[0].mxu0
      %v797 = vpop.f32.mrb[0].mxu0
      %v798 = vadd.f32 0.0, %v797
      %v799 = vpop.f32.mrb[0].mxu0
      %800 = vmatprep.mubr.bf16.mxu0 %v505
      %801 = vmatmul.mubr.bf16.gmra.mrb[0].mxu0 %v504
      %v802 = vpop.f32.mrb[0].mxu0
      %v803 = vadd.f32 0.0, %v802
      %v804 = vpop.f32.mrb[0].mxu0
      %v805 = vpop.f32.mrb[0].mxu0
      %v806 = vadd.f32 0.0, %v805
      %v807 = vpop.f32.mrb[0].mxu0
      %808 = vmatprep.mubr.bf16.mxu0 %v509
      %809 = vmatmul.mubr.bf16.gmra.mrb[0].mxu0 %v508
      %v810 = vpop.f32.mrb[0].mxu0
      %v811 = vadd.f32 0.0, %v810
      %v812 = vpop.f32.mrb[0].mxu0
      %v813 = vpop.f32.mrb[0].mxu0
      %v814 = vadd.f32 0.0, %v813
      %v815 = vpop.f32.mrb[0].mxu0
      %816 = vmatprep.mubr.bf16.mxu0 %v513
      %817 = vmatmul.mubr.bf16.gmra.mrb[0].mxu0 %v512
      %v818 = vpop.f32.mrb[0].mxu0
      %v819 = vadd.f32 0.0, %v818
      %v820 = vpop.f32.mrb[0].mxu0
      %v821 = vpop.f32.mrb[0].mxu0
      %v822 = vadd.f32 0.0, %v821
      %v823 = vpop.f32.mrb[0].mxu0
      %824 = vmatprep.mubr.bf16.mxu0 %v517
      %825 = vmatmul.mubr.bf16.gmra.mrb[0].mxu0 %v516
      %v826 = vpop.f32.mrb[0].mxu0
      %v827 = vadd.f32 0.0, %v826
      %v828 = vpop.f32.mrb[0].mxu0
      %v829 = vpop.f32.mrb[0].mxu0
      %v830 = vadd.f32 0.0, %v829
      %v831 = vpop.f32.mrb[0].mxu0
      %832 = vmatprep.mubr.bf16.mxu0 %v521
      %833 = vmatmul.mubr.bf16.gmra.mrb[0].mxu0 %v520
      %v834 = vpop.f32.mrb[0].mxu0
      %v835 = vadd.f32 0.0, %v834
      %v836 = vpop.f32.mrb[0].mxu0
      %v837 = vpop.f32.mrb[0].mxu0
      %v838 = vadd.f32 0.0, %v837
      %v839 = vpop.f32.mrb[0].mxu0
      %840 = vmatprep.mubr.bf16.mxu0 %v525
      %841 = vmatmul.mubr.bf16.gmra.mrb[0].mxu0 %v524
      %v842 = vpop.f32.mrb[0].mxu0
      %v843 = vadd.f32 0.0, %v842
      %v844 = vpop.f32.mrb[0].mxu0
      %v845 = vpop.f32.mrb[0].mxu0
      %v846 = vadd.f32 0.0, %v845
      %v847 = vpop.f32.mrb[0].mxu0
      %848 = vdwg.mxu0
      %849 = vmatprep.subr.bf16.mxu0 0
      %850 = vmatpush1.bf16.msra.mxu0 %v704
      %851 = vmatprep.subr.bf16.mxu0 0
      %852 = vmatpush1.bf16.msra.mxu0 %v705
      %853 = vmatprep.subr.bf16.mxu0 0
      %854 = vmatpush1.bf16.msra.mxu0 %v706
      %855 = vmatprep.subr.bf16.mxu0 0
      %856 = vmatpush1.bf16.msra.mxu0 %v707
      %857 = vmatprep.subr.bf16.mxu0 0
      %858 = vmatpush1.bf16.msra.mxu0 %v708
      %859 = vmatprep.subr.bf16.mxu0 0
      %860 = vmatpush1.bf16.msra.mxu0 %v709
      %861 = vmatprep.subr.bf16.mxu0 0
      %862 = vmatpush1.bf16.msra.mxu0 %v710
      %863 = vmatprep.subr.bf16.mxu0 0
      %864 = vmatpush1.bf16.msra.mxu0 %v711
      %865 = vmatprep.subr.bf16.mxu0 0
      %866 = vmatpush1.bf16.msra.mxu0 %v712
      %867 = vmatprep.subr.bf16.mxu0 0
      %868 = vmatpush1.bf16.msra.mxu0 %v713
      %869 = vmatprep.subr.bf16.mxu0 0
      %870 = vmatpush1.bf16.msra.mxu0 %v714
      %871 = vmatprep.subr.bf16.mxu0 0
      %872 = vmatpush1.bf16.msra.mxu0 %v715
      %873 = vmatprep.subr.bf16.mxu0 0
      %874 = vmatpush1.bf16.msra.mxu0 %v716
      %875 = vmatprep.subr.bf16.mxu0 0
      %876 = vmatpush1.bf16.msra.mxu0 %v717
      %877 = vmatprep.subr.bf16.mxu0 0
      %878 = vmatpush1.bf16.msra.mxu0 %v718
      %879 = vmatprep.subr.bf16.mxu0 0
      %880 = vmatpush1.bf16.msra.mxu0 %v719
      %881 = vmatprep.mubr.bf16.mxu0 %v499
      %882 = vmatmul.mubr.bf16.gmra.mrb[0].mxu0 %v498
      %v883 = vpop.f32.mrb[0].mxu0
      %v884 = vadd.f32 %v787, %v883
      %v885 = vpop.f32.mrb[0].mxu0
      %v886 = vpop.f32.mrb[0].mxu0
      %v887 = vadd.f32 %v790, %v886
      %v888 = vpop.f32.mrb[0].mxu0
      %889 = vmatprep.mubr.bf16.mxu0 %v503
      %890 = vmatmul.mubr.bf16.gmra.mrb[0].mxu0 %v502
      %v891 = vpop.f32.mrb[0].mxu0
      %v892 = vadd.f32 %v795, %v891
      %v893 = vpop.f32.mrb[0].mxu0
      %v894 = vpop.f32.mrb[0].mxu0
      %v895 = vadd.f32 %v798, %v894
      %v896 = vpop.f32.mrb[0].mxu0
      %897 = vmatprep.mubr.bf16.mxu0 %v507
      %898 = vmatmul.mubr.bf16.gmra.mrb[0].mxu0 %v506
      %v899 = vpop.f32.mrb[0].mxu0
      %v900 = vadd.f32 %v803, %v899
      %v901 = vpop.f32.mrb[0].mxu0
      %v902 = vpop.f32.mrb[0].mxu0
      %v903 = vadd.f32 %v806, %v902
      %v904 = vpop.f32.mrb[0].mxu0
      %905 = vmatprep.mubr.bf16.mxu0 %v511
      %906 = vmatmul.mubr.bf16.gmra.mrb[0].mxu0 %v510
      %v907 = vpop.f32.mrb[0].mxu0
      %v908 = vadd.f32 %v811, %v907
      %v909 = vpop.f32.mrb[0].mxu0
      %v910 = vpop.f32.mrb[0].mxu0
      %v911 = vadd.f32 %v814, %v910
      %v912 = vpop.f32.mrb[0].mxu0
      %913 = vmatprep.mubr.bf16.mxu0 %v515
      %914 = vmatmul.mubr.bf16.gmra.mrb[0].mxu0 %v514
      %v915 = vpop.f32.mrb[0].mxu0
      %v916 = vadd.f32 %v819, %v915
      %v917 = vpop.f32.mrb[0].mxu0
      %v918 = vpop.f32.mrb[0].mxu0
      %v919 = vadd.f32 %v822, %v918
      %v920 = vpop.f32.mrb[0].mxu0
      %921 = vmatprep.mubr.bf16.mxu0 %v519
      %922 = vmatmul.mubr.bf16.gmra.mrb[0].mxu0 %v518
      %v923 = vpop.f32.mrb[0].mxu0
      %v924 = vadd.f32 %v827, %v923
      %v925 = vpop.f32.mrb[0].mxu0
      %v926 = vpop.f32.mrb[0].mxu0
      %v927 = vadd.f32 %v830, %v926
      %v928 = vpop.f32.mrb[0].mxu0
      %929 = vmatprep.mubr.bf16.mxu0 %v523
      %930 = vmatmul.mubr.bf16.gmra.mrb[0].mxu0 %v522
      %v931 = vpop.f32.mrb[0].mxu0
      %v932 = vadd.f32 %v835, %v931
      %v933 = vpop.f32.mrb[0].mxu0
      %v934 = vpop.f32.mrb[0].mxu0
      %v935 = vadd.f32 %v838, %v934
      %v936 = vpop.f32.mrb[0].mxu0
      %937 = vmatprep.mubr.bf16.mxu0 %v527
      %938 = vmatmul.mubr.bf16.gmra.mrb[0].mxu0 %v526
      %v939 = vpop.f32.mrb[0].mxu0
      %v940 = vadd.f32 %v843, %v939
      %v941 = vpop.f32.mrb[0].mxu0
      %v942 = vpop.f32.mrb[0].mxu0
      %v943 = vadd.f32 %v846, %v942
      %v944 = vpop.f32.mrb[0].mxu0
      %945 = vdwg.mxu0
      %vm946 = vcmask 523264
      %947 = vst.msk [vmem:[%s295] sm:$0xff] %vm946, %v884
      %948 = vst.msk [vmem:[%s295 + $0x8] sm:$0xff] %vm946, %v887
      %949 = vst.msk [vmem:[%s295 + $0x10] sm:$0xff] %vm946, %v892
      %950 = vst.msk [vmem:[%s295 + $0x18] sm:$0xff] %vm946, %v895
      %951 = vst.msk [vmem:[%s295 + $0x20] sm:$0xff] %vm946, %v900
      %952 = vst.msk [vmem:[%s295 + $0x28] sm:$0xff] %vm946, %v903
      %953 = vst.msk [vmem:[%s295 + $0x30] sm:$0xff] %vm946, %v908
      %954 = vst.msk [vmem:[%s295 + $0x38] sm:$0xff] %vm946, %v911
      %955 = vst.msk [vmem:[%s295 + $0x40] sm:$0xff] %vm946, %v916
      %956 = vst.msk [vmem:[%s295 + $0x48] sm:$0xff] %vm946, %v919
      %957 = vst.msk [vmem:[%s295 + $0x50] sm:$0xff] %vm946, %v924
      %958 = vst.msk [vmem:[%s295 + $0x58] sm:$0xff] %vm946, %v927
      %959 = vst.msk [vmem:[%s295 + $0x60] sm:$0xff] %vm946, %v932
      %960 = vst.msk [vmem:[%s295 + $0x68] sm:$0xff] %vm946, %v935
      %961 = vst.msk [vmem:[%s295 + $0x70] sm:$0xff] %vm946, %v940
      %962 = vst.msk [vmem:[%s295 + $0x78] sm:$0xff] %vm946, %v943
      %p963 = scmp.eq.s32.totalorder %s22, 0
      %p964 = scmp.eq.s32.totalorder %s23, 0
      %p965 = pnand %p963, %p964
      %p966 = pneg %p965
      // Predicated region
      $region29: #{generator_forward.12} parent=27 // pred_check
        _
      $region30: #{generator_forward.12} parent=27 // pred_check_branch
        %968 = sbr.rel (%p965) target = $region32
      $region31: #{generator_forward.12} parent=27 // pred_region
        %vm969 = vcmask 516096
        %970 = vst.msk [vmem:[%s299] sm:$0x1] %vm969, 0.0
        %971 = vst.msk [vmem:[%s302] sm:$0x1] %vm969, 0.0
      $region32: #{generator_forward.12} parent=27 // pred_fallthru
        _
      %v972 = vld [vmem:[%s299] sm:$0x1]
      %v973 = vsel %vm946, %v884, 0.0
      %v974 = vsel %vm946, %v887, 0.0
      %v975 = vadd.f32 %v973, %v974
      %v976 = vsel %vm946, %v892, 0.0
      %v977 = vadd.f32 %v975, %v976
      %v978 = vsel %vm946, %v895, 0.0
      %v979 = vadd.f32 %v977, %v978
      %v980 = vsel %vm946, %v900, 0.0
      %v981 = vadd.f32 %v979, %v980
      %v982 = vsel %vm946, %v903, 0.0
      %v983 = vadd.f32 %v981, %v982
      %v984 = vsel %vm946, %v908, 0.0
      %v985 = vadd.f32 %v983, %v984
      %v986 = vsel %vm946, %v911, 0.0
      %v987 = vadd.f32 %v985, %v986
      %v988 = vsel %vm946, %v916, 0.0
      %v989 = vadd.f32 %v987, %v988
      %v990 = vsel %vm946, %v919, 0.0
      %v991 = vadd.f32 %v989, %v990
      %v992 = vsel %vm946, %v924, 0.0
      %v993 = vadd.f32 %v991, %v992
      %v994 = vsel %vm946, %v927, 0.0
      %v995 = vadd.f32 %v993, %v994
      %v996 = vsel %vm946, %v932, 0.0
      %v997 = vadd.f32 %v995, %v996
      %v998 = vsel %vm946, %v935, 0.0
      %v999 = vadd.f32 %v997, %v998
      %v1000 = vsel %vm946, %v940, 0.0
      %v1001 = vadd.f32 %v999, %v1000
      %v1002 = vsel %vm946, %v943, 0.0
      %v1003 = vadd.f32 %v1001, %v1002
      %v1004 = vrot.slane %v1003, 4
      %v1005 = vadd.f32 %v1003, %v1004
      %v1006 = vrot.slane %v1005, 2
      %v1007 = vadd.f32 %v1005, %v1006
      %v1008 = vrot.slane %v1007, 1
      %v1009 = vadd.f32 %v1007, %v1008
      %v1010 = vadd.f32 %v972, %v1009
      %vm1011 = vcmask 516096
      %1012 = vst.msk [vmem:[%s299] sm:$0x1] %vm1011, %v1010
      %v1013 = vld [vmem:[%s302] sm:$0x1]
      %v1014 = vmul.f32 %v884, %v884
      %v1015 = vmul.f32 %v887, %v887
      %v1016 = vmul.f32 %v892, %v892
      %v1017 = vmul.f32 %v895, %v895
      %v1018 = vmul.f32 %v900, %v900
      %v1019 = vmul.f32 %v903, %v903
      %v1020 = vmul.f32 %v908, %v908
      %v1021 = vmul.f32 %v911, %v911
      %v1022 = vmul.f32 %v916, %v916
      %v1023 = vmul.f32 %v919, %v919
      %v1024 = vmul.f32 %v924, %v924
      %v1025 = vmul.f32 %v927, %v927
      %v1026 = vmul.f32 %v932, %v932
      %v1027 = vmul.f32 %v935, %v935
      %v1028 = vmul.f32 %v940, %v940
      %v1029 = vmul.f32 %v943, %v943
      %v1030 = vsel %vm946, %v1014, 0.0
      %v1031 = vsel %vm946, %v1015, 0.0
      %v1032 = vadd.f32 %v1030, %v1031
      %v1033 = vsel %vm946, %v1016, 0.0
      %v1034 = vadd.f32 %v1032, %v1033
      %v1035 = vsel %vm946, %v1017, 0.0
      %v1036 = vadd.f32 %v1034, %v1035
      %v1037 = vsel %vm946, %v1018, 0.0
      %v1038 = vadd.f32 %v1036, %v1037
      %v1039 = vsel %vm946, %v1019, 0.0
      %v1040 = vadd.f32 %v1038, %v1039
      %v1041 = vsel %vm946, %v1020, 0.0
      %v1042 = vadd.f32 %v1040, %v1041
      %v1043 = vsel %vm946, %v1021, 0.0
      %v1044 = vadd.f32 %v1042, %v1043
      %v1045 = vsel %vm946, %v1022, 0.0
      %v1046 = vadd.f32 %v1044, %v1045
      %v1047 = vsel %vm946, %v1023, 0.0
      %v1048 = vadd.f32 %v1046, %v1047
      %v1049 = vsel %vm946, %v1024, 0.0
      %v1050 = vadd.f32 %v1048, %v1049
      %v1051 = vsel %vm946, %v1025, 0.0
      %v1052 = vadd.f32 %v1050, %v1051
      %v1053 = vsel %vm946, %v1026, 0.0
      %v1054 = vadd.f32 %v1052, %v1053
      %v1055 = vsel %vm946, %v1027, 0.0
      %v1056 = vadd.f32 %v1054, %v1055
      %v1057 = vsel %vm946, %v1028, 0.0
      %v1058 = vadd.f32 %v1056, %v1057
      %v1059 = vsel %vm946, %v1029, 0.0
      %v1060 = vadd.f32 %v1058, %v1059
      %v1061 = vrot.slane %v1060, 4
      %v1062 = vadd.f32 %v1060, %v1061
      %v1063 = vrot.slane %v1062, 2
      %v1064 = vadd.f32 %v1062, %v1063
      %v1065 = vrot.slane %v1064, 1
      %v1066 = vadd.f32 %v1064, %v1065
      %v1067 = vadd.f32 %v1013, %v1066
      %1068 = vst.msk [vmem:[%s302] sm:$0x1] %vm1011, %v1067
      %s1069 = smul.u32 16, %s23
      %p1070 = scmp.lt.s32.totalorder %s22, 3
      %s1071 = scalar_select %p1070, %s22, 3
      %p1072 = scmp.lt.s32.totalorder %s1069, 15
      %s1073 = scalar_select %p1072, %s1069, 15
      %p1074 = scmp.lt.s32.totalorder %s21, 0
      %s1075 = scalar_select %p1074, %s21, 0
      %s1076 = sadd.s32 %s1075, %s1073
      %s1077 = smul.addr %s1071, 16
      %s1078 = sadd.s32 %s1076, %s1077
      %s1079 = smul.addr %s1078, 8
      %s1080 = scalar_lea.vmem %s2, %s1079
      %p1081 = scmp.lt.s32.totalorder %s21, 0
      %s1082 = scalar_select %p1081, %s21, 0
      %s1083 = scalar_lea.vmem %s3, %s1082
      %p1084 = scmp.lt.s32.totalorder %s21, 0
      %s1085 = scalar_select %p1084, %s21, 0
      %s1086 = scalar_lea.vmem %s4, %s1085
      // Predicated region
      $region33: #{generator_forward.12} parent=27 // pred_check
        %p1087 = pneg %p113
      $region34: #{generator_forward.12} parent=27 // pred_check_branch
        %1089 = sbr.rel (%p1087) target = $region36
      $region35: #{generator_forward.12} parent=27 // pred_region
        %s1090 = smul.u32 16, %s23
      $region36: #{generator_forward.12} parent=27 // pred_fallthru
        _
      // Predicated region
      $region37: #{generator_forward.12} parent=27 // pred_check
        %p1091 = pneg %p139
      $region38: #{generator_forward.12} parent=27 // pred_check_branch
        %1093 = sbr.rel (%p1091) target = $region40
      $region39: #{generator_forward.12} parent=27 // pred_region
        _
      $region40: #{generator_forward.12} parent=27 // pred_fallthru
        _
      // Predicated region
      $region41: #{generator_forward.12} parent=27 // pred_check
        %p1094 = pneg %p165
      $region42: #{generator_forward.12} parent=27 // pred_check_branch
        %1096 = sbr.rel (%p1094) target = $region44
      $region43: #{generator_forward.12} parent=27 // pred_region
        _
      $region44: #{generator_forward.12} parent=27 // pred_fallthru
        _
      // Predicated region
      $region45: #{generator_forward.12} parent=27 // pred_check
        %p1097 = pneg %p139
      $region46: #{generator_forward.12} parent=27 // pred_check_branch
        %1099 = sbr.rel (%p1097) target = $region48
      $region47: #{generator_forward.12} parent=27 // pred_region
        %p1100 = scmp.lt.s32.totalorder %s21, 0
        %s1101 = scalar_select %p1100, %s21, 0
        %s1102 = scalar_lea.vmem %s3, %s1101
      $region48: #{generator_forward.12} parent=27 // pred_fallthru
        _
      // Predicated region
      $region49: #{generator_forward.12} parent=27 // pred_check
        %p1103 = pneg %p165
      $region50: #{generator_forward.12} parent=27 // pred_check_branch
        %1105 = sbr.rel (%p1103) target = $region52
      $region51: #{generator_forward.12} parent=27 // pred_region
        %p1106 = scmp.lt.s32.totalorder %s21, 0
        %s1107 = scalar_select %p1106, %s21, 0
        %s1108 = scalar_lea.vmem %s4, %s1107
      $region52: #{generator_forward.12} parent=27 // pred_fallthru
        _
    $region28: #{generator_forward.12} parent=5 // pred_fallthru
      _
    %p1109 = scmp.le.s32.totalorder 2, %s11
    // Predicated region
    $region53: #{generator_forward.12} parent=5 // pred_check
      %p1110 = pneg %p1109
    $region54: #{generator_forward.12} parent=5 // pred_check_branch
      %1112 = sbr.rel (%p1110) target = $region56
    $region55: #{generator_forward.12} parent=5 // pred_region
      %s1113 = ssub.s32 %s11, 2
      // Predicated region
      $region57: #{generator_forward.12} parent=55 // pred_check
        %p1114 = pneg %p119
      $region58: #{generator_forward.12} parent=55 // pred_check_branch
        %1116 = sbr.rel (%p1114) target = $region60
      $region59: #{generator_forward.12} parent=55 // pred_region
        %s1117 = smul.u32 16, %s26
        %p1118 = scmp.lt.s32.totalorder %s25, 3
        %s1119 = scalar_select %p1118, %s25, 3
        %p1120 = scmp.lt.s32.totalorder %s1117, 15
        %s1121 = scalar_select %p1120, %s1117, 15
        %p1122 = scmp.lt.s32.totalorder %s24, 0
        %s1123 = scalar_select %p1122, %s24, 0
        %s1124 = sadd.s32 %s1123, %s1121
        %s1125 = smul.addr %s1119, 16
        %s1126 = sadd.s32 %s1124, %s1125
        %s1127 = smul.addr %s1126, 8
        %s1128 = scalar_lea.vmem %s2, %s1127
      $region60: #{generator_forward.12} parent=55 // pred_fallthru
        _
    $region56: #{generator_forward.12} parent=5 // pred_fallthru
      _
  $region6: #{generator_forward.12} parent=0 // loop_footer
    %s15 = sadd.s32 1, %s11
  $region7: #{generator_forward.12} parent=0 // loop_footer_branch
    %10 = sbr.rel target = $region3
  $region8: #{generator_forward.12} parent=0 // loop_exit
    _

// kernel: generator_forward.13
$region0: #{generator_forward.13}
  #allocation0 [shape = 'u32[]', space=smem, size = 0x4, offset = 0x4, fixed_abs, tag = 'smem constant byte address 0x4 - core index']
  #allocation1 [shape = 'u32[144,128]{1,0:T(1,128)}', space=vmem, size = 0x12000, scoped, tag = 'internal scratch']
  %s0 = inlined_call_operand.vmem [shape: f32[512,64], index: 0, kind: input, shape index: {}]
  %s1 = inlined_call_operand.vmem [shape: f32[1,64], index: 1, kind: input, shape index: {}]
  %s2 = inlined_call_operand.vmem [shape: f32[1,64], index: 2, kind: input, shape index: {}]
  %s3 = inlined_call_operand.vmem [shape: bf16[512,64], index: 3, kind: output, shape index: {}]
  %s4 = sld [smem:[#allocation0]]
  $region22: #{generator_forward.13} parent=0
    _
  %s6 = ssub.s32 1, %s4
  %s7 = scalar_select 0, %s6, %s4
  // Predicated region
  $region2: #{generator_forward.13} parent=0 // pred_check
    _
  $region3: #{generator_forward.13} parent=0 // pred_check_branch
    %9 = sbr.rel (0) target = $region5
  $region4: #{generator_forward.13} parent=0 // pred_region
    _
  $region5: #{generator_forward.13} parent=0 // pred_fallthru
    _
  // Predicated region
  $region6: #{generator_forward.13} parent=0 // pred_check
    _
  $region7: #{generator_forward.13} parent=0 // pred_check_branch
    %11 = sbr.rel (0) target = $region9
  $region8: #{generator_forward.13} parent=0 // pred_region
    _
  $region9: #{generator_forward.13} parent=0 // pred_fallthru
    _
  // Predicated region
  $region10: #{generator_forward.13} parent=0 // pred_check
    _
  $region11: #{generator_forward.13} parent=0 // pred_check_branch
    %13 = sbr.rel (0) target = $region13
  $region12: #{generator_forward.13} parent=0 // pred_region
    _
  $region13: #{generator_forward.13} parent=0 // pred_fallthru
    _
  %v14 = vld [vmem:[%s0] sm:$0xff]
  %v15 = vld [vmem:[%s0 + $0x8] sm:$0xff]
  %v16 = vld [vmem:[%s0 + $0x10] sm:$0xff]
  %v17 = vld [vmem:[%s0 + $0x18] sm:$0xff]
  %v18 = vld [vmem:[%s0 + $0x20] sm:$0xff]
  %v19 = vld [vmem:[%s0 + $0x28] sm:$0xff]
  %v20 = vld [vmem:[%s0 + $0x30] sm:$0xff]
  %v21 = vld [vmem:[%s0 + $0x38] sm:$0xff]
  %v22 = vld [vmem:[%s0 + $0x40] sm:$0xff]
  %v23 = vld [vmem:[%s0 + $0x48] sm:$0xff]
  %v24 = vld [vmem:[%s0 + $0x50] sm:$0xff]
  %v25 = vld [vmem:[%s0 + $0x58] sm:$0xff]
  %v26 = vld [vmem:[%s0 + $0x60] sm:$0xff]
  %v27 = vld [vmem:[%s0 + $0x68] sm:$0xff]
  %v28 = vld [vmem:[%s0 + $0x70] sm:$0xff]
  %v29 = vld [vmem:[%s0 + $0x78] sm:$0xff]
  %v30 = vld [vmem:[%s0 + $0x80] sm:$0xff]
  %v31 = vld [vmem:[%s0 + $0x88] sm:$0xff]
  %v32 = vld [vmem:[%s0 + $0x90] sm:$0xff]
  %v33 = vld [vmem:[%s0 + $0x98] sm:$0xff]
  %v34 = vld [vmem:[%s0 + $0xa0] sm:$0xff]
  %v35 = vld [vmem:[%s0 + $0xa8] sm:$0xff]
  %v36 = vld [vmem:[%s0 + $0xb0] sm:$0xff]
  %v37 = vld [vmem:[%s0 + $0xb8] sm:$0xff]
  %v38 = vld [vmem:[%s0 + $0xc0] sm:$0xff]
  %v39 = vld [vmem:[%s0 + $0xc8] sm:$0xff]
  %v40 = vld [vmem:[%s0 + $0xd0] sm:$0xff]
  %v41 = vld [vmem:[%s0 + $0xd8] sm:$0xff]
  %v42 = vld [vmem:[%s0 + $0xe0] sm:$0xff]
  %v43 = vld [vmem:[%s0 + $0xe8] sm:$0xff]
  %v44 = vld [vmem:[%s0 + $0xf0] sm:$0xff]
  %v45 = vld [vmem:[%s0 + $0xf8] sm:$0xff]
  %v46 = vld [vmem:[%s0 + $0x100] sm:$0xff]
  %v47 = vld [vmem:[%s0 + $0x108] sm:$0xff]
  %v48 = vld [vmem:[%s0 + $0x110] sm:$0xff]
  %v49 = vld [vmem:[%s0 + $0x118] sm:$0xff]
  %v50 = vld [vmem:[%s0 + $0x120] sm:$0xff]
  %v51 = vld [vmem:[%s0 + $0x128] sm:$0xff]
  %v52 = vld [vmem:[%s0 + $0x130] sm:$0xff]
  %v53 = vld [vmem:[%s0 + $0x138] sm:$0xff]
  %v54 = vld [vmem:[%s0 + $0x140] sm:$0xff]
  %v55 = vld [vmem:[%s0 + $0x148] sm:$0xff]
  %v56 = vld [vmem:[%s0 + $0x150] sm:$0xff]
  %v57 = vld [vmem:[%s0 + $0x158] sm:$0xff]
  %v58 = vld [vmem:[%s0 + $0x160] sm:$0xff]
  %v59 = vld [vmem:[%s0 + $0x168] sm:$0xff]
  %v60 = vld [vmem:[%s0 + $0x170] sm:$0xff]
  %v61 = vld [vmem:[%s0 + $0x178] sm:$0xff]
  %v62 = vld [vmem:[%s0 + $0x180] sm:$0xff]
  %v63 = vld [vmem:[%s0 + $0x188] sm:$0xff]
  %v64 = vld [vmem:[%s0 + $0x190] sm:$0xff]
  %v65 = vld [vmem:[%s0 + $0x198] sm:$0xff]
  %v66 = vld [vmem:[%s0 + $0x1a0] sm:$0xff]
  %v67 = vld [vmem:[%s0 + $0x1a8] sm:$0xff]
  %v68 = vld [vmem:[%s0 + $0x1b0] sm:$0xff]
  %v69 = vld [vmem:[%s0 + $0x1b8] sm:$0xff]
  %v70 = vld [vmem:[%s0 + $0x1c0] sm:$0xff]
  %v71 = vld [vmem:[%s0 + $0x1c8] sm:$0xff]
  %v72 = vld [vmem:[%s0 + $0x1d0] sm:$0xff]
  %v73 = vld [vmem:[%s0 + $0x1d8] sm:$0xff]
  %v74 = vld [vmem:[%s0 + $0x1e0] sm:$0xff]
  %v75 = vld [vmem:[%s0 + $0x1e8] sm:$0xff]
  %v76 = vld [vmem:[%s0 + $0x1f0] sm:$0xff]
  %v77 = vld [vmem:[%s0 + $0x1f8] sm:$0xff]
  %v78 = vld [vmem:[%s1] sm:$0x1]
  %v80 = vlaneseq
  %v81 = vshrl.u32 %v80, 7
  %v82 = vsub.s32 0, %v81
  %v83 = vrot.slane %v78, %v82
  %v85 = vmul.f32 %v14, %v83
  %v86 = vmul.f32 %v15, %v83
  %v87 = vmul.f32 %v16, %v83
  %v88 = vmul.f32 %v17, %v83
  %v89 = vmul.f32 %v18, %v83
  %v90 = vmul.f32 %v19, %v83
  %v91 = vmul.f32 %v20, %v83
  %v92 = vmul.f32 %v21, %v83
  %v93 = vmul.f32 %v22, %v83
  %v94 = vmul.f32 %v23, %v83
  %v95 = vmul.f32 %v24, %v83
  %v96 = vmul.f32 %v25, %v83
  %v97 = vmul.f32 %v26, %v83
  %v98 = vmul.f32 %v27, %v83
  %v99 = vmul.f32 %v28, %v83
  %v100 = vmul.f32 %v29, %v83
  %v101 = vmul.f32 %v30, %v83
  %v102 = vmul.f32 %v31, %v83
  %v103 = vmul.f32 %v32, %v83
  %v104 = vmul.f32 %v33, %v83
  %v105 = vmul.f32 %v34, %v83
  %v106 = vmul.f32 %v35, %v83
  %v107 = vmul.f32 %v36, %v83
  %v108 = vmul.f32 %v37, %v83
  %v109 = vmul.f32 %v38, %v83
  %v110 = vmul.f32 %v39, %v83
  %v111 = vmul.f32 %v40, %v83
  %v112 = vmul.f32 %v41, %v83
  %v113 = vmul.f32 %v42, %v83
  %v114 = vmul.f32 %v43, %v83
  %v115 = vmul.f32 %v44, %v83
  %v116 = vmul.f32 %v45, %v83
  %v117 = vmul.f32 %v46, %v83
  %v118 = vmul.f32 %v47, %v83
  %v119 = vmul.f32 %v48, %v83
  %v120 = vmul.f32 %v49, %v83
  %v121 = vmul.f32 %v50, %v83
  %v122 = vmul.f32 %v51, %v83
  %v123 = vmul.f32 %v52, %v83
  %v124 = vmul.f32 %v53, %v83
  %v125 = vmul.f32 %v54, %v83
  %v126 = vmul.f32 %v55, %v83
  %v127 = vmul.f32 %v56, %v83
  %v128 = vmul.f32 %v57, %v83
  %v129 = vmul.f32 %v58, %v83
  %v130 = vmul.f32 %v59, %v83
  %v131 = vmul.f32 %v60, %v83
  %v132 = vmul.f32 %v61, %v83
  %v133 = vmul.f32 %v62, %v83
  %v134 = vmul.f32 %v63, %v83
  %v135 = vmul.f32 %v64, %v83
  %v136 = vmul.f32 %v65, %v83
  %v137 = vmul.f32 %v66, %v83
  %v138 = vmul.f32 %v67, %v83
  %v139 = vmul.f32 %v68, %v83
  %v140 = vmul.f32 %v69, %v83
  %v141 = vmul.f32 %v70, %v83
  %v142 = vmul.f32 %v71, %v83
  %v143 = vmul.f32 %v72, %v83
  %v144 = vmul.f32 %v73, %v83
  %v145 = vmul.f32 %v74, %v83
  %v146 = vmul.f32 %v75, %v83
  %v147 = vmul.f32 %v76, %v83
  %v148 = vmul.f32 %v77, %v83
  %v149 = vld [vmem:[%s2] sm:$0x1]
  %v151 = vlaneseq
  %v152 = vshrl.u32 %v151, 7
  %v153 = vsub.s32 0, %v152
  %v154 = vrot.slane %v149, %v153
  %v156 = vadd.f32 %v85, %v154
  %v157 = vadd.f32 %v86, %v154
  %v158 = vadd.f32 %v87, %v154
  %v159 = vadd.f32 %v88, %v154
  %v160 = vadd.f32 %v89, %v154
  %v161 = vadd.f32 %v90, %v154
  %v162 = vadd.f32 %v91, %v154
  %v163 = vadd.f32 %v92, %v154
  %v164 = vadd.f32 %v93, %v154
  %v165 = vadd.f32 %v94, %v154
  %v166 = vadd.f32 %v95, %v154
  %v167 = vadd.f32 %v96, %v154
  %v168 = vadd.f32 %v97, %v154
  %v169 = vadd.f32 %v98, %v154
  %v170 = vadd.f32 %v99, %v154
  %v171 = vadd.f32 %v100, %v154
  %v172 = vadd.f32 %v101, %v154
  %v173 = vadd.f32 %v102, %v154
  %v174 = vadd.f32 %v103, %v154
  %v175 = vadd.f32 %v104, %v154
  %v176 = vadd.f32 %v105, %v154
  %v177 = vadd.f32 %v106, %v154
  %v178 = vadd.f32 %v107, %v154
  %v179 = vadd.f32 %v108, %v154
  %v180 = vadd.f32 %v109, %v154
  %v181 = vadd.f32 %v110, %v154
  %v182 = vadd.f32 %v111, %v154
  %v183 = vadd.f32 %v112, %v154
  %v184 = vadd.f32 %v113, %v154
  %v185 = vadd.f32 %v114, %v154
  %v186 = vadd.f32 %v115, %v154
  %v187 = vadd.f32 %v116, %v154
  %v188 = vadd.f32 %v117, %v154
  %v189 = vadd.f32 %v118, %v154
  %v190 = vadd.f32 %v119, %v154
  %v191 = vadd.f32 %v120, %v154
  %v192 = vadd.f32 %v121, %v154
  %v193 = vadd.f32 %v122, %v154
  %v194 = vadd.f32 %v123, %v154
  %v195 = vadd.f32 %v124, %v154
  %v196 = vadd.f32 %v125, %v154
  %v197 = vadd.f32 %v126, %v154
  %v198 = vadd.f32 %v127, %v154
  %v199 = vadd.f32 %v128, %v154
  %v200 = vadd.f32 %v129, %v154
  %v201 = vadd.f32 %v130, %v154
  %v202 = vadd.f32 %v131, %v154
  %v203 = vadd.f32 %v132, %v154
  %v204 = vadd.f32 %v133, %v154
  %v205 = vadd.f32 %v134, %v154
  %v206 = vadd.f32 %v135, %v154
  %v207 = vadd.f32 %v136, %v154
  %v208 = vadd.f32 %v137, %v154
  %v209 = vadd.f32 %v138, %v154
  %v210 = vadd.f32 %v139, %v154
  %v211 = vadd.f32 %v140, %v154
  %v212 = vadd.f32 %v141, %v154
  %v213 = vadd.f32 %v142, %v154
  %v214 = vadd.f32 %v143, %v154
  %v215 = vadd.f32 %v144, %v154
  %v216 = vadd.f32 %v145, %v154
  %v217 = vadd.f32 %v146, %v154
  %v218 = vadd.f32 %v147, %v154
  %v219 = vadd.f32 %v148, %v154
  %v220 = vmax.f32 %v156, 0.0
  %v221 = vmax.f32 %v157, 0.0
  %v222 = vmax.f32 %v158, 0.0
  %v223 = vmax.f32 %v159, 0.0
  %v224 = vmax.f32 %v160, 0.0
  %v225 = vmax.f32 %v161, 0.0
  %v226 = vmax.f32 %v162, 0.0
  %v227 = vmax.f32 %v163, 0.0
  %v228 = vmax.f32 %v164, 0.0
  %v229 = vmax.f32 %v165, 0.0
  %v230 = vmax.f32 %v166, 0.0
  %v231 = vmax.f32 %v167, 0.0
  %v232 = vmax.f32 %v168, 0.0
  %v233 = vmax.f32 %v169, 0.0
  %v234 = vmax.f32 %v170, 0.0
  %v235 = vmax.f32 %v171, 0.0
  %v236 = vmax.f32 %v172, 0.0
  %v237 = vmax.f32 %v173, 0.0
  %v238 = vmax.f32 %v174, 0.0
  %v239 = vmax.f32 %v175, 0.0
  %v240 = vmax.f32 %v176, 0.0
  %v241 = vmax.f32 %v177, 0.0
  %v242 = vmax.f32 %v178, 0.0
  %v243 = vmax.f32 %v179, 0.0
  %v244 = vmax.f32 %v180, 0.0
  %v245 = vmax.f32 %v181, 0.0
  %v246 = vmax.f32 %v182, 0.0
  %v247 = vmax.f32 %v183, 0.0
  %v248 = vmax.f32 %v184, 0.0
  %v249 = vmax.f32 %v185, 0.0
  %v250 = vmax.f32 %v186, 0.0
  %v251 = vmax.f32 %v187, 0.0
  %v252 = vmax.f32 %v188, 0.0
  %v253 = vmax.f32 %v189, 0.0
  %v254 = vmax.f32 %v190, 0.0
  %v255 = vmax.f32 %v191, 0.0
  %v256 = vmax.f32 %v192, 0.0
  %v257 = vmax.f32 %v193, 0.0
  %v258 = vmax.f32 %v194, 0.0
  %v259 = vmax.f32 %v195, 0.0
  %v260 = vmax.f32 %v196, 0.0
  %v261 = vmax.f32 %v197, 0.0
  %v262 = vmax.f32 %v198, 0.0
  %v263 = vmax.f32 %v199, 0.0
  %v264 = vmax.f32 %v200, 0.0
  %v265 = vmax.f32 %v201, 0.0
  %v266 = vmax.f32 %v202, 0.0
  %v267 = vmax.f32 %v203, 0.0
  %v268 = vmax.f32 %v204, 0.0
  %v269 = vmax.f32 %v205, 0.0
  %v270 = vmax.f32 %v206, 0.0
  %v271 = vmax.f32 %v207, 0.0
  %v272 = vmax.f32 %v208, 0.0
  %v273 = vmax.f32 %v209, 0.0
  %v274 = vmax.f32 %v210, 0.0
  %v275 = vmax.f32 %v211, 0.0
  %v276 = vmax.f32 %v212, 0.0
  %v277 = vmax.f32 %v213, 0.0
  %v278 = vmax.f32 %v214, 0.0
  %v279 = vmax.f32 %v215, 0.0
  %v280 = vmax.f32 %v216, 0.0
  %v281 = vmax.f32 %v217, 0.0
  %v282 = vmax.f32 %v218, 0.0
  %v283 = vmax.f32 %v219, 0.0
  %v284 = vpack.c.bf16 %v221, %v220
  %v285 = vpack.c.bf16 %v223, %v222
  %v286 = vpack.c.bf16 %v225, %v224
  %v287 = vpack.c.bf16 %v227, %v226
  %v288 = vpack.c.bf16 %v229, %v228
  %v289 = vpack.c.bf16 %v231, %v230
  %v290 = vpack.c.bf16 %v233, %v232
  %v291 = vpack.c.bf16 %v235, %v234
  %v292 = vpack.c.bf16 %v237, %v236
  %v293 = vpack.c.bf16 %v239, %v238
  %v294 = vpack.c.bf16 %v241, %v240
  %v295 = vpack.c.bf16 %v243, %v242
  %v296 = vpack.c.bf16 %v245, %v244
  %v297 = vpack.c.bf16 %v247, %v246
  %v298 = vpack.c.bf16 %v249, %v248
  %v299 = vpack.c.bf16 %v251, %v250
  %v300 = vpack.c.bf16 %v253, %v252
  %v301 = vpack.c.bf16 %v255, %v254
  %v302 = vpack.c.bf16 %v257, %v256
  %v303 = vpack.c.bf16 %v259, %v258
  %v304 = vpack.c.bf16 %v261, %v260
  %v305 = vpack.c.bf16 %v263, %v262
  %v306 = vpack.c.bf16 %v265, %v264
  %v307 = vpack.c.bf16 %v267, %v266
  %v308 = vpack.c.bf16 %v269, %v268
  %v309 = vpack.c.bf16 %v271, %v270
  %v310 = vpack.c.bf16 %v273, %v272
  %v311 = vpack.c.bf16 %v275, %v274
  %v312 = vpack.c.bf16 %v277, %v276
  %v313 = vpack.c.bf16 %v279, %v278
  %v314 = vpack.c.bf16 %v281, %v280
  %v315 = vpack.c.bf16 %v283, %v282
  %v348 = vunpack.c.l.b16 %v284
  %v349 = vunpack.c.h.b16 %v284
  %v350 = vunpack.c.l.b16 %v285
  %v351 = vunpack.c.h.b16 %v285
  %v352 = vunpack.c.l.b16 %v286
  %v353 = vunpack.c.h.b16 %v286
  %v354 = vunpack.c.l.b16 %v287
  %v355 = vunpack.c.h.b16 %v287
  %v356 = vunpack.c.l.b16 %v288
  %v357 = vunpack.c.h.b16 %v288
  %v358 = vunpack.c.l.b16 %v289
  %v359 = vunpack.c.h.b16 %v289
  %v360 = vunpack.c.l.b16 %v290
  %v361 = vunpack.c.h.b16 %v290
  %v362 = vunpack.c.l.b16 %v291
  %v363 = vunpack.c.h.b16 %v291
  %v364 = vunpack.c.l.b16 %v292
  %v365 = vunpack.c.h.b16 %v292
  %v366 = vunpack.c.l.b16 %v293
  %v367 = vunpack.c.h.b16 %v293
  %v368 = vunpack.c.l.b16 %v294
  %v369 = vunpack.c.h.b16 %v294
  %v370 = vunpack.c.l.b16 %v295
  %v371 = vunpack.c.h.b16 %v295
  %v372 = vunpack.c.l.b16 %v296
  %v373 = vunpack.c.h.b16 %v296
  %v374 = vunpack.c.l.b16 %v297
  %v375 = vunpack.c.h.b16 %v297
  %v376 = vunpack.c.l.b16 %v298
  %v377 = vunpack.c.h.b16 %v298
  %v378 = vunpack.c.l.b16 %v299
  %v379 = vunpack.c.h.b16 %v299
  %v380 = vunpack.c.l.b16 %v300
  %v381 = vunpack.c.h.b16 %v300
  %v382 = vunpack.c.l.b16 %v301
  %v383 = vunpack.c.h.b16 %v301
  %v384 = vunpack.c.l.b16 %v302
  %v385 = vunpack.c.h.b16 %v302
  %v386 = vunpack.c.l.b16 %v303
  %v387 = vunpack.c.h.b16 %v303
  %v388 = vunpack.c.l.b16 %v304
  %v389 = vunpack.c.h.b16 %v304
  %v390 = vunpack.c.l.b16 %v305
  %v391 = vunpack.c.h.b16 %v305
  %v392 = vunpack.c.l.b16 %v306
  %v393 = vunpack.c.h.b16 %v306
  %v394 = vunpack.c.l.b16 %v307
  %v395 = vunpack.c.h.b16 %v307
  %v396 = vunpack.c.l.b16 %v308
  %v397 = vunpack.c.h.b16 %v308
  %v398 = vunpack.c.l.b16 %v309
  %v399 = vunpack.c.h.b16 %v309
  %v400 = vunpack.c.l.b16 %v310
  %v401 = vunpack.c.h.b16 %v310
  %v402 = vunpack.c.l.b16 %v311
  %v403 = vunpack.c.h.b16 %v311
  %v404 = vunpack.c.l.b16 %v312
  %v405 = vunpack.c.h.b16 %v312
  %v406 = vunpack.c.l.b16 %v313
  %v407 = vunpack.c.h.b16 %v313
  %v408 = vunpack.c.l.b16 %v314
  %v409 = vunpack.c.h.b16 %v314
  %v410 = vunpack.c.l.b16 %v315
  %v411 = vunpack.c.h.b16 %v315
  %v412 = vpack.c.b16 %v348, %v348
  %v413 = vpack.c.b16 %v349, %v349
  %v414 = vpack.c.b16 %v350, %v350
  %v415 = vpack.c.b16 %v351, %v351
  %v416 = vpack.c.b16 %v352, %v352
  %v417 = vpack.c.b16 %v353, %v353
  %v418 = vpack.c.b16 %v354, %v354
  %v419 = vpack.c.b16 %v355, %v355
  %v420 = vpack.c.b16 %v356, %v356
  %v421 = vpack.c.b16 %v357, %v357
  %v422 = vpack.c.b16 %v358, %v358
  %v423 = vpack.c.b16 %v359, %v359
  %v424 = vpack.c.b16 %v360, %v360
  %v425 = vpack.c.b16 %v361, %v361
  %v426 = vpack.c.b16 %v362, %v362
  %v427 = vpack.c.b16 %v363, %v363
  %v428 = vpack.c.b16 %v364, %v364
  %v429 = vpack.c.b16 %v365, %v365
  %v430 = vpack.c.b16 %v366, %v366
  %v431 = vpack.c.b16 %v367, %v367
  %v432 = vpack.c.b16 %v368, %v368
  %v433 = vpack.c.b16 %v369, %v369
  %v434 = vpack.c.b16 %v370, %v370
  %v435 = vpack.c.b16 %v371, %v371
  %v436 = vpack.c.b16 %v372, %v372
  %v437 = vpack.c.b16 %v373, %v373
  %v438 = vpack.c.b16 %v374, %v374
  %v439 = vpack.c.b16 %v375, %v375
  %v440 = vpack.c.b16 %v376, %v376
  %v441 = vpack.c.b16 %v377, %v377
  %v442 = vpack.c.b16 %v378, %v378
  %v443 = vpack.c.b16 %v379, %v379
  %v444 = vpack.c.b16 %v380, %v380
  %v445 = vpack.c.b16 %v381, %v381
  %v446 = vpack.c.b16 %v382, %v382
  %v447 = vpack.c.b16 %v383, %v383
  %v448 = vpack.c.b16 %v384, %v384
  %v449 = vpack.c.b16 %v385, %v385
  %v450 = vpack.c.b16 %v386, %v386
  %v451 = vpack.c.b16 %v387, %v387
  %v452 = vpack.c.b16 %v388, %v388
  %v453 = vpack.c.b16 %v389, %v389
  %v454 = vpack.c.b16 %v390, %v390
  %v455 = vpack.c.b16 %v391, %v391
  %v456 = vpack.c.b16 %v392, %v392
  %v457 = vpack.c.b16 %v393, %v393
  %v458 = vpack.c.b16 %v394, %v394
  %v459 = vpack.c.b16 %v395, %v395
  %v460 = vpack.c.b16 %v396, %v396
  %v461 = vpack.c.b16 %v397, %v397
  %v462 = vpack.c.b16 %v398, %v398
  %v463 = vpack.c.b16 %v399, %v399
  %v464 = vpack.c.b16 %v400, %v400
  %v465 = vpack.c.b16 %v401, %v401
  %v466 = vpack.c.b16 %v402, %v402
  %v467 = vpack.c.b16 %v403, %v403
  %v468 = vpack.c.b16 %v404, %v404
  %v469 = vpack.c.b16 %v405, %v405
  %v470 = vpack.c.b16 %v406, %v406
  %v471 = vpack.c.b16 %v407, %v407
  %v472 = vpack.c.b16 %v408, %v408
  %v473 = vpack.c.b16 %v409, %v409
  %v474 = vpack.c.b16 %v410, %v410
  %v475 = vpack.c.b16 %v411, %v411
  %vm540 = vcmask 519168
  %541 = vst.msk [vmem:[%s3] sm:$0xf] %vm540, %v412
  %542 = vst.msk [vmem:[%s3 + $0x4] sm:$0xf] %vm540, %v413
  %543 = vst.msk [vmem:[%s3 + $0x8] sm:$0xf] %vm540, %v414
  %544 = vst.msk [vmem:[%s3 + $0xc] sm:$0xf] %vm540, %v415
  %545 = vst.msk [vmem:[%s3 + $0x10] sm:$0xf] %vm540, %v416
  %546 = vst.msk [vmem:[%s3 + $0x14] sm:$0xf] %vm540, %v417
  %547 = vst.msk [vmem:[%s3 + $0x18] sm:$0xf] %vm540, %v418
  %548 = vst.msk [vmem:[%s3 + $0x1c] sm:$0xf] %vm540, %v419
  %549 = vst.msk [vmem:[%s3 + $0x20] sm:$0xf] %vm540, %v420
  %550 = vst.msk [vmem:[%s3 + $0x24] sm:$0xf] %vm540, %v421
  %551 = vst.msk [vmem:[%s3 + $0x28] sm:$0xf] %vm540, %v422
  %552 = vst.msk [vmem:[%s3 + $0x2c] sm:$0xf] %vm540, %v423
  %553 = vst.msk [vmem:[%s3 + $0x30] sm:$0xf] %vm540, %v424
  %554 = vst.msk [vmem:[%s3 + $0x34] sm:$0xf] %vm540, %v425
  %555 = vst.msk [vmem:[%s3 + $0x38] sm:$0xf] %vm540, %v426
  %556 = vst.msk [vmem:[%s3 + $0x3c] sm:$0xf] %vm540, %v427
  %557 = vst.msk [vmem:[%s3 + $0x40] sm:$0xf] %vm540, %v428
  %558 = vst.msk [vmem:[%s3 + $0x44] sm:$0xf] %vm540, %v429
  %559 = vst.msk [vmem:[%s3 + $0x48] sm:$0xf] %vm540, %v430
  %560 = vst.msk [vmem:[%s3 + $0x4c] sm:$0xf] %vm540, %v431
  %561 = vst.msk [vmem:[%s3 + $0x50] sm:$0xf] %vm540, %v432
  %562 = vst.msk [vmem:[%s3 + $0x54] sm:$0xf] %vm540, %v433
  %563 = vst.msk [vmem:[%s3 + $0x58] sm:$0xf] %vm540, %v434
  %564 = vst.msk [vmem:[%s3 + $0x5c] sm:$0xf] %vm540, %v435
  %565 = vst.msk [vmem:[%s3 + $0x60] sm:$0xf] %vm540, %v436
  %566 = vst.msk [vmem:[%s3 + $0x64] sm:$0xf] %vm540, %v437
  %567 = vst.msk [vmem:[%s3 + $0x68] sm:$0xf] %vm540, %v438
  %568 = vst.msk [vmem:[%s3 + $0x6c] sm:$0xf] %vm540, %v439
  %569 = vst.msk [vmem:[%s3 + $0x70] sm:$0xf] %vm540, %v440
  %570 = vst.msk [vmem:[%s3 + $0x74] sm:$0xf] %vm540, %v441
  %571 = vst.msk [vmem:[%s3 + $0x78] sm:$0xf] %vm540, %v442
  %572 = vst.msk [vmem:[%s3 + $0x7c] sm:$0xf] %vm540, %v443
  %573 = vst.msk [vmem:[%s3 + $0x80] sm:$0xf] %vm540, %v444
  %574 = vst.msk [vmem:[%s3 + $0x84] sm:$0xf] %vm540, %v445
  %575 = vst.msk [vmem:[%s3 + $0x88] sm:$0xf] %vm540, %v446
  %576 = vst.msk [vmem:[%s3 + $0x8c] sm:$0xf] %vm540, %v447
  %577 = vst.msk [vmem:[%s3 + $0x90] sm:$0xf] %vm540, %v448
  %578 = vst.msk [vmem:[%s3 + $0x94] sm:$0xf] %vm540, %v449
  %579 = vst.msk [vmem:[%s3 + $0x98] sm:$0xf] %vm540, %v450
  %580 = vst.msk [vmem:[%s3 + $0x9c] sm:$0xf] %vm540, %v451
  %581 = vst.msk [vmem:[%s3 + $0xa0] sm:$0xf] %vm540, %v452
  %582 = vst.msk [vmem:[%s3 + $0xa4] sm:$0xf] %vm540, %v453
  %583 = vst.msk [vmem:[%s3 + $0xa8] sm:$0xf] %vm540, %v454
  %584 = vst.msk [vmem:[%s3 + $0xac] sm:$0xf] %vm540, %v455
  %585 = vst.msk [vmem:[%s3 + $0xb0] sm:$0xf] %vm540, %v456
  %586 = vst.msk [vmem:[%s3 + $0xb4] sm:$0xf] %vm540, %v457
  %587 = vst.msk [vmem:[%s3 + $0xb8] sm:$0xf] %vm540, %v458
  %588 = vst.msk [vmem:[%s3 + $0xbc] sm:$0xf] %vm540, %v459
  %589 = vst.msk [vmem:[%s3 + $0xc0] sm:$0xf] %vm540, %v460
  %590 = vst.msk [vmem:[%s3 + $0xc4] sm:$0xf] %vm540, %v461
  %591 = vst.msk [vmem:[%s3 + $0xc8] sm:$0xf] %vm540, %v462
  %592 = vst.msk [vmem:[%s3 + $0xcc] sm:$0xf] %vm540, %v463
  %593 = vst.msk [vmem:[%s3 + $0xd0] sm:$0xf] %vm540, %v464
  %594 = vst.msk [vmem:[%s3 + $0xd4] sm:$0xf] %vm540, %v465
  %595 = vst.msk [vmem:[%s3 + $0xd8] sm:$0xf] %vm540, %v466
  %596 = vst.msk [vmem:[%s3 + $0xdc] sm:$0xf] %vm540, %v467
  %597 = vst.msk [vmem:[%s3 + $0xe0] sm:$0xf] %vm540, %v468
  %598 = vst.msk [vmem:[%s3 + $0xe4] sm:$0xf] %vm540, %v469
  %599 = vst.msk [vmem:[%s3 + $0xe8] sm:$0xf] %vm540, %v470
  %600 = vst.msk [vmem:[%s3 + $0xec] sm:$0xf] %vm540, %v471
  %601 = vst.msk [vmem:[%s3 + $0xf0] sm:$0xf] %vm540, %v472
  %602 = vst.msk [vmem:[%s3 + $0xf4] sm:$0xf] %vm540, %v473
  %603 = vst.msk [vmem:[%s3 + $0xf8] sm:$0xf] %vm540, %v474
  %604 = vst.msk [vmem:[%s3 + $0xfc] sm:$0xf] %vm540, %v475
  // Predicated region
  $region14: #{generator_forward.13} parent=0 // pred_check
    _
  $region15: #{generator_forward.13} parent=0 // pred_check_branch
    %606 = sbr.rel (0) target = $region17
  $region16: #{generator_forward.13} parent=0 // pred_region
    _
  $region17: #{generator_forward.13} parent=0 // pred_fallthru
    _
  // Predicated region
  $region18: #{generator_forward.13} parent=0 // pred_check
    _
  $region19: #{generator_forward.13} parent=0 // pred_check_branch
    %608 = sbr.rel (0) target = $region21
  $region20: #{generator_forward.13} parent=0 // pred_region
    _
  $region21: #{generator_forward.13} parent=0 // pred_fallthru
    _

// kernel: generator_forward.14
$region0: #{generator_forward.14}
  #allocation0 [shape = 'u32[]', space=smem, size = 0x4, offset = 0x4, fixed_abs, tag = 'smem constant byte address 0x4 - core index']
  #allocation1 [shape = 'u32[144,128]{1,0:T(1,128)}', space=vmem, size = 0x12000, scoped, tag = 'internal scratch']
  %s0 = inlined_call_operand.vmem [shape: bf16[1,512,64], index: 0, kind: input, shape index: {}]
  %s1 = inlined_call_operand.vmem [shape: bf16[1,64,16], index: 1, kind: input, shape index: {}]
  %s2 = inlined_call_operand.vmem [shape: f32[1,512,16], index: 2, kind: output, shape index: {0}]
  %s3 = inlined_call_operand.hbm [shape: f32[1,16], index: 3, kind: output, shape index: {1}]
  %s4 = inlined_call_operand.hbm [shape: f32[1,16], index: 4, kind: output, shape index: {2}]
  %5 = xla_tuple %s2, %s3, %s4
  %s6 = sld [smem:[#allocation0]]
  $region61: #{generator_forward.14} parent=0
    _
  %s8 = ssub.s32 1, %s6
  %s9 = scalar_select 0, %s8, %s6
  $region1: #{generator_forward.14} parent=0
    #allocation2 [shape = 'u8[512]{0}', space=vmem, size = 0x400, scoped, tag = 'output window, operand 1, single buffered']
    #allocation3 [shape = 's32[2]{0}', space=sflag, size = 0x8, scoped, tag = 'scoped memory for generator_forward.14']
    #allocation4 [shape = 'u8[512]{0}', space=vmem, size = 0x400, scoped, tag = 'output window, operand 2, single buffered']
    #allocation5 [shape = 's32[1]{0}', space=sflag, size = 0x4, scoped, tag = 'scoped memory for generator_forward.14']
    %10 = vsyncpa [#allocation3], 0
    %11 = vsyncpa [#allocation5], 0
    loop: start=0, step=1, limit=4
    $region2: #{generator_forward.14} parent=1 // loop_pre_header
      _
    $region3: #{generator_forward.14} parent=1 // loop_header
      %s13 = sphi 0, %s17
      %p14 = scmp.ge.s32.totalorder %s13, 4
      %s20 = sphi 0, %s39
      %s21 = sphi 0, %s35
      %s22 = sphi 0, %s31
      %s23 = sphi 0, %s20
      %s24 = sphi 0, %s21
      %s25 = sphi 0, %s22
      %s26 = sphi 0, %s23
      %s27 = sphi 0, %s24
      %s28 = sphi 0, %s25
      %s44 = sphi 0, %s46
      %s47 = sphi 0, %s44
      %s48 = sphi 0, %s47
      %s64 = sphi 0, %s48
      %s72 = sphi 0, %s74
      %s75 = sphi 0, %s72
      %s76 = sphi 0, %s75
      %s92 = sphi 0, %s76
      %s102 = sphi 0, %s104
      %s105 = sphi 0, %s102
      %s106 = sphi 0, %s105
      %s122 = sphi 0, %s106
      %s128 = sphi 0, %s130
      %s131 = sphi 0, %s128
      %s132 = sphi 0, %s131
      %s148 = sphi 0, %s132
      %s154 = sphi 0, %s156
      %s157 = sphi 0, %s154
      %s158 = sphi 0, %s157
      %s174 = sphi 0, %s158
    $region4: #{generator_forward.14} parent=1 // loop_header_branch
      %16 = sbr.rel (%p14) target = $region8
    $region5: #{generator_forward.14} parent=1 // loop_body
      %s18 = ssub.s32 %s13, 1
      %s19 = ssub.s32 %s13, 2
      %s29 = sadd.s32 1, %s22
      %p30 = scmp.ge.s32.totalorder %s29, 2
      %s31 = scalar_select %p30, 0, %s29
      %s32 = sadd.s32 1, %s21
      %s33 = scalar_select %p30, %s32, %s21
      %p34 = scmp.ge.s32.totalorder %s33, 1
      %s35 = scalar_select %p34, 0, %s33
      %s36 = sadd.s32 1, %s20
      %s37 = scalar_select %p34, %s36, %s20
      %p38 = scmp.ge.s32.totalorder %s37, 1
      %s39 = scalar_select %p38, 0, %s37
      %s40 = ssub.s32 %s21, %s35
      %s41 = ssub.s32 %s22, %s31
      %s42 = sor.u32 %s40, %s41
      %p43 = scmp.eq.s32.totalorder %s42, 0
      %s45 = sadd.s32 %s44, 1
      %s46 = scalar_select %p43, %s44, %s45
      %p49 = pneg %p43
      %p50 = scmp.eq.s32.totalorder %s13, 1
      %p51 = por %p49, %p50
      %p52 = scmp.ne.s32.totalorder %s44, %s47
      %p53 = scmp.eq.s32.totalorder %s13, 0
      %p54 = por %p52, %p53
      %p55 = scmp.ne.s32.totalorder %s44, %s47
      %p56 = scmp.eq.s32.totalorder %s18, 1
      %p57 = por %p55, %p56
      %p58 = scmp.ne.s32.totalorder %s47, %s48
      %p59 = scmp.eq.s32.totalorder %s18, 0
      %p60 = por %p58, %p59
      %p61 = scmp.ne.s32.totalorder %s47, %s48
      %p62 = scmp.eq.s32.totalorder %s19, 1
      %p63 = por %p61, %p62
      %p65 = scmp.ne.s32.totalorder %s48, %s64
      %p66 = scmp.eq.s32.totalorder %s19, 0
      %p67 = por %p65, %p66
      %s68 = ssub.s32 %s21, %s35
      %s69 = ssub.s32 %s20, %s39
      %s70 = sor.u32 %s68, %s69
      %p71 = scmp.eq.s32.totalorder %s70, 0
      %s73 = sadd.s32 %s72, 1
      %s74 = scalar_select %p71, %s72, %s73
      %p77 = pneg %p71
      %p78 = scmp.eq.s32.totalorder %s13, 1
      %p79 = por %p77, %p78
      %p80 = scmp.ne.s32.totalorder %s72, %s75
      %p81 = scmp.eq.s32.totalorder %s13, 0
      %p82 = por %p80, %p81
      %p83 = scmp.ne.s32.totalorder %s72, %s75
      %p84 = scmp.eq.s32.totalorder %s18, 1
      %p85 = por %p83, %p84
      %p86 = scmp.ne.s32.totalorder %s75, %s76
      %p87 = scmp.eq.s32.totalorder %s18, 0
      %p88 = por %p86, %p87
      %p89 = scmp.ne.s32.totalorder %s75, %s76
      %p90 = scmp.eq.s32.totalorder %s19, 1
      %p91 = por %p89, %p90
      %p93 = scmp.ne.s32.totalorder %s76, %s92
      %p94 = scmp.eq.s32.totalorder %s19, 0
      %p95 = por %p93, %p94
      %s96 = ssub.s32 %s21, %s35
      %s97 = ssub.s32 %s22, %s31
      %s98 = sor.u32 %s96, %s97
      %s99 = ssub.s32 %s20, %s39
      %s100 = sor.u32 %s98, %s99
      %p101 = scmp.eq.s32.totalorder %s100, 0
      %s103 = sadd.s32 %s102, 1
      %s104 = scalar_select %p101, %s102, %s103
      %p107 = pneg %p101
      %p108 = scmp.eq.s32.totalorder %s13, 1
      %p109 = por %p107, %p108
      %p110 = scmp.ne.s32.totalorder %s102, %s105
      %p111 = scmp.eq.s32.totalorder %s13, 0
      %p112 = por %p110, %p111
      %p113 = scmp.ne.s32.totalorder %s102, %s105
      %p114 = scmp.eq.s32.totalorder %s18, 1
      %p115 = por %p113, %p114
      %p116 = scmp.ne.s32.totalorder %s105, %s106
      %p117 = scmp.eq.s32.totalorder %s18, 0
      %p118 = por %p116, %p117
      %p119 = scmp.ne.s32.totalorder %s105, %s106
      %p120 = scmp.eq.s32.totalorder %s19, 1
      %p121 = por %p119, %p120
      %p123 = scmp.ne.s32.totalorder %s106, %s122
      %p124 = scmp.eq.s32.totalorder %s19, 0
      %p125 = por %p123, %p124
      %s126 = ssub.s32 %s20, %s39
      %p127 = scmp.eq.s32.totalorder %s126, 0
      %s129 = sadd.s32 %s128, 1
      %s130 = scalar_select %p127, %s128, %s129
      %p133 = pneg %p127
      %p134 = scmp.eq.s32.totalorder %s13, 1
      %p135 = por %p133, %p134
      %p136 = scmp.ne.s32.totalorder %s128, %s131
      %p137 = scmp.eq.s32.totalorder %s13, 0
      %p138 = por %p136, %p137
      %p139 = scmp.ne.s32.totalorder %s128, %s131
      %p140 = scmp.eq.s32.totalorder %s18, 1
      %p141 = por %p139, %p140
      %p142 = scmp.ne.s32.totalorder %s131, %s132
      %p143 = scmp.eq.s32.totalorder %s18, 0
      %p144 = por %p142, %p143
      %p145 = scmp.ne.s32.totalorder %s131, %s132
      %p146 = scmp.eq.s32.totalorder %s19, 1
      %p147 = por %p145, %p146
      %p149 = scmp.ne.s32.totalorder %s132, %s148
      %p150 = scmp.eq.s32.totalorder %s19, 0
      %p151 = por %p149, %p150
      %s152 = ssub.s32 %s20, %s39
      %p153 = scmp.eq.s32.totalorder %s152, 0
      %s155 = sadd.s32 %s154, 1
      %s156 = scalar_select %p153, %s154, %s155
      %p159 = pneg %p153
      %p160 = scmp.eq.s32.totalorder %s13, 1
      %p161 = por %p159, %p160
      %p162 = scmp.ne.s32.totalorder %s154, %s157
      %p163 = scmp.eq.s32.totalorder %s13, 0
      %p164 = por %p162, %p163
      %p165 = scmp.ne.s32.totalorder %s154, %s157
      %p166 = scmp.eq.s32.totalorder %s18, 1
      %p167 = por %p165, %p166
      %p168 = scmp.ne.s32.totalorder %s157, %s158
      %p169 = scmp.eq.s32.totalorder %s18, 0
      %p170 = por %p168, %p169
      %p171 = scmp.ne.s32.totalorder %s157, %s158
      %p172 = scmp.eq.s32.totalorder %s19, 1
      %p173 = por %p171, %p172
      %p175 = scmp.ne.s32.totalorder %s158, %s174
      %p176 = scmp.eq.s32.totalorder %s19, 0
      %p177 = por %p175, %p176
      %p178 = scmp.le.s32.totalorder 1, %s13
      %p179 = scmp.lt.s32.totalorder %s13, 3
      %p180 = pnand %p178, %p179
      %p181 = pneg %p180
      // Predicated region
      $region9: #{generator_forward.14} parent=5 // pred_check
        _
      $region10: #{generator_forward.14} parent=5 // pred_check_branch
        %183 = sbr.rel (%p180) target = $region12
      $region11: #{generator_forward.14} parent=5 // pred_region
        %s184 = ssub.s32 %s13, 1
        // Predicated region
        $region13: #{generator_forward.14} parent=11 // pred_check
          %p185 = pneg %p88
        $region14: #{generator_forward.14} parent=11 // pred_check_branch
          %187 = sbr.rel (%p185) target = $region16
        $region15: #{generator_forward.14} parent=11 // pred_region
          %p188 = scmp.lt.s32.totalorder %s24, 0
          %s189 = scalar_select %p188, %s24, 0
          %p190 = scmp.lt.s32.totalorder %s23, 0
          %s191 = scalar_select %p190, %s23, 0
          %s192 = smul.addr %s189, 8
          %s193 = sadd.s32 %s191, %s192
          %s194 = smul.addr %s193, 4
          %s195 = scalar_lea.vmem %s1, %s194
        $region16: #{generator_forward.14} parent=11 // pred_fallthru
          _
      $region12: #{generator_forward.14} parent=5 // pred_fallthru
        _
      %p196 = scmp.lt.s32.totalorder %s13, 2
      // Predicated region
      $region17: #{generator_forward.14} parent=5 // pred_check
        %p197 = pneg %p196
      $region18: #{generator_forward.14} parent=5 // pred_check_branch
        %199 = sbr.rel (%p197) target = $region20
      $region19: #{generator_forward.14} parent=5 // pred_region
        // Predicated region
        $region21: #{generator_forward.14} parent=19 // pred_check
          %p200 = pneg %p54
        $region22: #{generator_forward.14} parent=19 // pred_check_branch
          %202 = sbr.rel (%p200) target = $region24
        $region23: #{generator_forward.14} parent=19 // pred_region
          %s203 = smul.u32 32, %s22
          %p204 = scmp.lt.s32.totalorder %s21, 0
          %s205 = scalar_select %p204, %s21, 0
          %p206 = scmp.lt.s32.totalorder %s203, 63
          %s207 = scalar_select %p206, %s203, 63
          %s208 = smul.addr %s205, 64
          %s209 = sadd.s32 %s207, %s208
          %s210 = smul.addr %s209, 4
          %s211 = scalar_lea.vmem %s0, %s210
          %s212 = smul.u32 32, %s22
        $region24: #{generator_forward.14} parent=19 // pred_fallthru
          _
      $region20: #{generator_forward.14} parent=5 // pred_fallthru
        _
      %p213 = scmp.le.s32.totalorder 1, %s13
      %p214 = scmp.lt.s32.totalorder %s13, 3
      %p215 = pnand %p213, %p214
      %p216 = pneg %p215
      // Predicated region
      $region25: #{generator_forward.14} parent=5 // pred_check
        _
      $region26: #{generator_forward.14} parent=5 // pred_check_branch
        %218 = sbr.rel (%p215) target = $region28
      $region27: #{generator_forward.14} parent=5 // pred_region
        %s219 = ssub.s32 %s13, 1
        %s220 = smul.u32 32, %s25
        %p221 = scmp.lt.s32.totalorder %s24, 0
        %s222 = scalar_select %p221, %s24, 0
        %p223 = scmp.lt.s32.totalorder %s220, 63
        %s224 = scalar_select %p223, %s220, 63
        %s225 = smul.addr %s222, 64
        %s226 = sadd.s32 %s224, %s225
        %s227 = smul.addr %s226, 4
        %s228 = scalar_lea.vmem %s0, %s227
        %p229 = pneg %p60
        %p230 = pneg %p57
        %p231 = scmp.lt.s32.totalorder %s24, 0
        %s232 = scalar_select %p231, %s24, 0
        %p233 = scmp.lt.s32.totalorder %s23, 0
        %s234 = scalar_select %p233, %s23, 0
        %s235 = smul.addr %s232, 8
        %s236 = sadd.s32 %s234, %s235
        %s237 = smul.addr %s236, 4
        %s238 = scalar_lea.vmem %s1, %s237
        %p239 = pneg %p88
        %p240 = pneg %p85
        %p241 = pneg %p118
        %p242 = pneg %p115
        %s243 = smul.u32 32, %s25
        %p244 = scmp.lt.s32.totalorder %s24, 0
        %s245 = scalar_select %p244, %s24, 0
        %p246 = scmp.lt.s32.totalorder %s243, 63
        %s247 = scalar_select %p246, %s243, 63
        %p248 = scmp.lt.s32.totalorder %s23, 0
        %s249 = scalar_select %p248, %s23, 0
        %s250 = sadd.s32 %s249, %s247
        %s251 = smul.addr %s245, 64
        %s252 = sadd.s32 %s250, %s251
        %s253 = smul.addr %s252, 8
        %s254 = scalar_lea.vmem %s2, %s253
        %p255 = pneg %p144
        %p256 = pneg %p141
        %p257 = pneg %p170
        %p258 = pneg %p167
        %s259 = smul.u32 32, %s25
        %p260 = scmp.lt.s32.totalorder %s24, 0
        %s261 = scalar_select %p260, %s24, 0
        %p262 = scmp.lt.s32.totalorder %s259, 63
        %s263 = scalar_select %p262, %s259, 63
        %s264 = smul.addr %s261, 64
        %s265 = sadd.s32 %s263, %s264
        %s266 = smul.addr %s265, 4
        %s267 = scalar_lea.vmem %s0, %s266
        %s268 = smul.u32 32, %s25
        %p269 = scmp.lt.s32.totalorder %s24, 0
        %s270 = scalar_select %p269, %s24, 0
        %p271 = scmp.lt.s32.totalorder %s23, 0
        %s272 = scalar_select %p271, %s23, 0
        %s273 = smul.addr %s270, 8
        %s274 = sadd.s32 %s272, %s273
        %s275 = smul.addr %s274, 4
        %s276 = scalar_lea.vmem %s1, %s275
        %s277 = smul.u32 32, %s25
        %p278 = scmp.lt.s32.totalorder %s24, 0
        %s279 = scalar_select %p278, %s24, 0
        %p280 = scmp.lt.s32.totalorder %s277, 63
        %s281 = scalar_select %p280, %s277, 63
        %p282 = scmp.lt.s32.totalorder %s23, 0
        %s283 = scalar_select %p282, %s23, 0
        %s284 = sadd.s32 %s283, %s281
        %s285 = smul.addr %s279, 64
        %s286 = sadd.s32 %s284, %s285
        %s287 = smul.addr %s286, 8
        %s288 = scalar_lea.vmem %s2, %s287
        %s289 = smul.u32 32, %s25
        %v291 = vld [vmem:[%s267] sm:$0xf]
        %v292 = vld [vmem:[%s267 + $0x4] sm:$0xf]
        %v293 = vld [vmem:[%s267 + $0x8] sm:$0xf]
        %v294 = vld [vmem:[%s267 + $0xc] sm:$0xf]
        %v295 = vld [vmem:[%s267 + $0x10] sm:$0xf]
        %v296 = vld [vmem:[%s267 + $0x14] sm:$0xf]
        %v297 = vld [vmem:[%s267 + $0x18] sm:$0xf]
        %v298 = vld [vmem:[%s267 + $0x1c] sm:$0xf]
        %v299 = vld [vmem:[%s267 + $0x20] sm:$0xf]
        %v300 = vld [vmem:[%s267 + $0x24] sm:$0xf]
        %v301 = vld [vmem:[%s267 + $0x28] sm:$0xf]
        %v302 = vld [vmem:[%s267 + $0x2c] sm:$0xf]
        %v303 = vld [vmem:[%s267 + $0x30] sm:$0xf]
        %v304 = vld [vmem:[%s267 + $0x34] sm:$0xf]
        %v305 = vld [vmem:[%s267 + $0x38] sm:$0xf]
        %v306 = vld [vmem:[%s267 + $0x3c] sm:$0xf]
        %v307 = vld [vmem:[%s267 + $0x40] sm:$0xf]
        %v308 = vld [vmem:[%s267 + $0x44] sm:$0xf]
        %v309 = vld [vmem:[%s267 + $0x48] sm:$0xf]
        %v310 = vld [vmem:[%s267 + $0x4c] sm:$0xf]
        %v311 = vld [vmem:[%s267 + $0x50] sm:$0xf]
        %v312 = vld [vmem:[%s267 + $0x54] sm:$0xf]
        %v313 = vld [vmem:[%s267 + $0x58] sm:$0xf]
        %v314 = vld [vmem:[%s267 + $0x5c] sm:$0xf]
        %v315 = vld [vmem:[%s267 + $0x60] sm:$0xf]
        %v316 = vld [vmem:[%s267 + $0x64] sm:$0xf]
        %v317 = vld [vmem:[%s267 + $0x68] sm:$0xf]
        %v318 = vld [vmem:[%s267 + $0x6c] sm:$0xf]
        %v319 = vld [vmem:[%s267 + $0x70] sm:$0xf]
        %v320 = vld [vmem:[%s267 + $0x74] sm:$0xf]
        %v321 = vld [vmem:[%s267 + $0x78] sm:$0xf]
        %v322 = vld [vmem:[%s267 + $0x7c] sm:$0xf]
        %v323 = vld [vmem:[%s276] sm:$0xf]
        %v324 = vld [vmem:[%s276 + $0x4] sm:$0xf]
        %v325 = vld [vmem:[%s276 + $0x8] sm:$0xf]
        %v326 = vld [vmem:[%s276 + $0xc] sm:$0xf]
        %v327 = vld [vmem:[%s276 + $0x10] sm:$0xf]
        %v328 = vld [vmem:[%s276 + $0x14] sm:$0xf]
        %v329 = vld [vmem:[%s276 + $0x18] sm:$0xf]
        %v330 = vld [vmem:[%s276 + $0x1c] sm:$0xf]
        %v363 = vunpack.c.l.b16 %v291
        %v364 = vunpack.c.l.b16 %v292
        %v365 = vunpack.c.l.b16 %v293
        %v366 = vunpack.c.l.b16 %v294
        %v367 = vunpack.c.l.b16 %v295
        %v368 = vunpack.c.l.b16 %v296
        %v369 = vunpack.c.l.b16 %v297
        %v370 = vunpack.c.l.b16 %v298
        %v371 = vunpack.c.l.b16 %v299
        %v372 = vunpack.c.l.b16 %v300
        %v373 = vunpack.c.l.b16 %v301
        %v374 = vunpack.c.l.b16 %v302
        %v375 = vunpack.c.l.b16 %v303
        %v376 = vunpack.c.l.b16 %v304
        %v377 = vunpack.c.l.b16 %v305
        %v378 = vunpack.c.l.b16 %v306
        %v379 = vunpack.c.l.b16 %v307
        %v380 = vunpack.c.l.b16 %v308
        %v381 = vunpack.c.l.b16 %v309
        %v382 = vunpack.c.l.b16 %v310
        %v383 = vunpack.c.l.b16 %v311
        %v384 = vunpack.c.l.b16 %v312
        %v385 = vunpack.c.l.b16 %v313
        %v386 = vunpack.c.l.b16 %v314
        %v387 = vunpack.c.l.b16 %v315
        %v388 = vunpack.c.l.b16 %v316
        %v389 = vunpack.c.l.b16 %v317
        %v390 = vunpack.c.l.b16 %v318
        %v391 = vunpack.c.l.b16 %v319
        %v392 = vunpack.c.l.b16 %v320
        %v393 = vunpack.c.l.b16 %v321
        %v394 = vunpack.c.l.b16 %v322
        %v395 = vpack.c.b16 %v364, %v363
        %v396 = vpack.c.b16 %v366, %v365
        %v397 = vpack.c.b16 %v368, %v367
        %v398 = vpack.c.b16 %v370, %v369
        %v399 = vpack.c.b16 %v372, %v371
        %v400 = vpack.c.b16 %v374, %v373
        %v401 = vpack.c.b16 %v376, %v375
        %v402 = vpack.c.b16 %v378, %v377
        %v403 = vpack.c.b16 %v380, %v379
        %v404 = vpack.c.b16 %v382, %v381
        %v405 = vpack.c.b16 %v384, %v383
        %v406 = vpack.c.b16 %v386, %v385
        %v407 = vpack.c.b16 %v388, %v387
        %v408 = vpack.c.b16 %v390, %v389
        %v409 = vpack.c.b16 %v392, %v391
        %v410 = vpack.c.b16 %v394, %v393
        %v419 = vunpack.c.l.b16 %v323
        %v420 = vunpack.c.l.b16 %v324
        %v421 = vunpack.c.l.b16 %v325
        %v422 = vunpack.c.l.b16 %v326
        %v423 = vunpack.c.l.b16 %v327
        %v424 = vunpack.c.l.b16 %v328
        %v425 = vunpack.c.l.b16 %v329
        %v426 = vunpack.c.l.b16 %v330
        %v427 = vpack.c.b16 %v420, %v419
        %v428 = vpack.c.b16 %v422, %v421
        %v429 = vpack.c.b16 %v424, %v423
        %v430 = vpack.c.b16 %v426, %v425
        %vm435 = vcmask 523264
        %v437 = vsel %vm435, %v395, 0
        %v440 = vsel %vm435, %v396, 0
        %v443 = vsel %vm435, %v397, 0
        %v446 = vsel %vm435, %v398, 0
        %v449 = vsel %vm435, %v399, 0
        %v452 = vsel %vm435, %v400, 0
        %v455 = vsel %vm435, %v401, 0
        %v458 = vsel %vm435, %v402, 0
        %v461 = vsel %vm435, %v403, 0
        %v464 = vsel %vm435, %v404, 0
        %v467 = vsel %vm435, %v405, 0
        %v470 = vsel %vm435, %v406, 0
        %v473 = vsel %vm435, %v407, 0
        %v476 = vsel %vm435, %v408, 0
        %v479 = vsel %vm435, %v409, 0
        %v482 = vsel %vm435, %v410, 0
        %484 = vmatprep.subr.bf16.mxu0 0
        %485 = vmatpush1.bf16.msra.mxu0 %v427
        %486 = vmatprep.subr.bf16.mxu0 0
        %487 = vmatpush1.bf16.msra.mxu0 %v428
        %488 = vmatprep.subr.bf16.mxu0 0
        %489 = vmatpush1.bf16.msra.mxu0 %v429
        %490 = vmatprep.subr.bf16.mxu0 0
        %491 = vmatpush1.bf16.msra.mxu0 %v430
        %492 = vmatprep.subr.bf16.mxu0 0
        %493 = vmatpush1.bf16.msra.mxu0 0
        %494 = vmatprep.subr.bf16.mxu0 0
        %495 = vmatpush1.bf16.msra.mxu0 0
        %496 = vmatprep.subr.bf16.mxu0 0
        %497 = vmatpush1.bf16.msra.mxu0 0
        %498 = vmatprep.subr.bf16.mxu0 0
        %499 = vmatpush1.bf16.msra.mxu0 0
        %500 = vmatprep.subr.bf16.mxu0 0
        %501 = vmatpush1.bf16.msra.mxu0 0
        %502 = vmatprep.subr.bf16.mxu0 0
        %503 = vmatpush1.bf16.msra.mxu0 0
        %504 = vmatprep.subr.bf16.mxu0 0
        %505 = vmatpush1.bf16.msra.mxu0 0
        %506 = vmatprep.subr.bf16.mxu0 0
        %507 = vmatpush1.bf16.msra.mxu0 0
        %508 = vmatprep.subr.bf16.mxu0 0
        %509 = vmatpush1.bf16.msra.mxu0 0
        %510 = vmatprep.subr.bf16.mxu0 0
        %511 = vmatpush1.bf16.msra.mxu0 0
        %512 = vmatprep.subr.bf16.mxu0 0
        %513 = vmatpush1.bf16.msra.mxu0 0
        %514 = vmatprep.subr.bf16.mxu0 0
        %515 = vmatpush1.bf16.msra.mxu0 0
        %516 = vmatprep.mubr.bf16.mxu0 0
        %517 = vmatmul.mubr.bf16.gmra.mrb[0].mxu0 %v437
        %v518 = vpop.f32.mrb[0].mxu0
        %v519 = vadd.f32 0.0, %v518
        %v520 = vpop.f32.mrb[0].mxu0
        %v521 = vpop.f32.mrb[0].mxu0
        %v522 = vadd.f32 0.0, %v521
        %v523 = vpop.f32.mrb[0].mxu0
        %524 = vmatprep.mubr.bf16.mxu0 0
        %525 = vmatmul.mubr.bf16.gmra.mrb[0].mxu0 %v440
        %v526 = vpop.f32.mrb[0].mxu0
        %v527 = vadd.f32 0.0, %v526
        %v528 = vpop.f32.mrb[0].mxu0
        %v529 = vpop.f32.mrb[0].mxu0
        %v530 = vadd.f32 0.0, %v529
        %v531 = vpop.f32.mrb[0].mxu0
        %532 = vmatprep.mubr.bf16.mxu0 0
        %533 = vmatmul.mubr.bf16.gmra.mrb[0].mxu0 %v443
        %v534 = vpop.f32.mrb[0].mxu0
        %v535 = vadd.f32 0.0, %v534
        %v536 = vpop.f32.mrb[0].mxu0
        %v537 = vpop.f32.mrb[0].mxu0
        %v538 = vadd.f32 0.0, %v537
        %v539 = vpop.f32.mrb[0].mxu0
        %540 = vmatprep.mubr.bf16.mxu0 0
        %541 = vmatmul.mubr.bf16.gmra.mrb[0].mxu0 %v446
        %v542 = vpop.f32.mrb[0].mxu0
        %v543 = vadd.f32 0.0, %v542
        %v544 = vpop.f32.mrb[0].mxu0
        %v545 = vpop.f32.mrb[0].mxu0
        %v546 = vadd.f32 0.0, %v545
        %v547 = vpop.f32.mrb[0].mxu0
        %548 = vmatprep.mubr.bf16.mxu0 0
        %549 = vmatmul.mubr.bf16.gmra.mrb[0].mxu0 %v449
        %v550 = vpop.f32.mrb[0].mxu0
        %v551 = vadd.f32 0.0, %v550
        %v552 = vpop.f32.mrb[0].mxu0
        %v553 = vpop.f32.mrb[0].mxu0
        %v554 = vadd.f32 0.0, %v553
        %v555 = vpop.f32.mrb[0].mxu0
        %556 = vmatprep.mubr.bf16.mxu0 0
        %557 = vmatmul.mubr.bf16.gmra.mrb[0].mxu0 %v452
        %v558 = vpop.f32.mrb[0].mxu0
        %v559 = vadd.f32 0.0, %v558
        %v560 = vpop.f32.mrb[0].mxu0
        %v561 = vpop.f32.mrb[0].mxu0
        %v562 = vadd.f32 0.0, %v561
        %v563 = vpop.f32.mrb[0].mxu0
        %564 = vmatprep.mubr.bf16.mxu0 0
        %565 = vmatmul.mubr.bf16.gmra.mrb[0].mxu0 %v455
        %v566 = vpop.f32.mrb[0].mxu0
        %v567 = vadd.f32 0.0, %v566
        %v568 = vpop.f32.mrb[0].mxu0
        %v569 = vpop.f32.mrb[0].mxu0
        %v570 = vadd.f32 0.0, %v569
        %v571 = vpop.f32.mrb[0].mxu0
        %572 = vmatprep.mubr.bf16.mxu0 0
        %573 = vmatmul.mubr.bf16.gmra.mrb[0].mxu0 %v458
        %v574 = vpop.f32.mrb[0].mxu0
        %v575 = vadd.f32 0.0, %v574
        %v576 = vpop.f32.mrb[0].mxu0
        %v577 = vpop.f32.mrb[0].mxu0
        %v578 = vadd.f32 0.0, %v577
        %v579 = vpop.f32.mrb[0].mxu0
        %580 = vmatprep.mubr.bf16.mxu0 0
        %581 = vmatmul.mubr.bf16.gmra.mrb[0].mxu0 %v461
        %v582 = vpop.f32.mrb[0].mxu0
        %v583 = vadd.f32 0.0, %v582
        %v584 = vpop.f32.mrb[0].mxu0
        %v585 = vpop.f32.mrb[0].mxu0
        %v586 = vadd.f32 0.0, %v585
        %v587 = vpop.f32.mrb[0].mxu0
        %588 = vmatprep.mubr.bf16.mxu0 0
        %589 = vmatmul.mubr.bf16.gmra.mrb[0].mxu0 %v464
        %v590 = vpop.f32.mrb[0].mxu0
        %v591 = vadd.f32 0.0, %v590
        %v592 = vpop.f32.mrb[0].mxu0
        %v593 = vpop.f32.mrb[0].mxu0
        %v594 = vadd.f32 0.0, %v593
        %v595 = vpop.f32.mrb[0].mxu0
        %596 = vmatprep.mubr.bf16.mxu0 0
        %597 = vmatmul.mubr.bf16.gmra.mrb[0].mxu0 %v467
        %v598 = vpop.f32.mrb[0].mxu0
        %v599 = vadd.f32 0.0, %v598
        %v600 = vpop.f32.mrb[0].mxu0
        %v601 = vpop.f32.mrb[0].mxu0
        %v602 = vadd.f32 0.0, %v601
        %v603 = vpop.f32.mrb[0].mxu0
        %604 = vmatprep.mubr.bf16.mxu0 0
        %605 = vmatmul.mubr.bf16.gmra.mrb[0].mxu0 %v470
        %v606 = vpop.f32.mrb[0].mxu0
        %v607 = vadd.f32 0.0, %v606
        %v608 = vpop.f32.mrb[0].mxu0
        %v609 = vpop.f32.mrb[0].mxu0
        %v610 = vadd.f32 0.0, %v609
        %v611 = vpop.f32.mrb[0].mxu0
        %612 = vmatprep.mubr.bf16.mxu0 0
        %613 = vmatmul.mubr.bf16.gmra.mrb[0].mxu0 %v473
        %v614 = vpop.f32.mrb[0].mxu0
        %v615 = vadd.f32 0.0, %v614
        %v616 = vpop.f32.mrb[0].mxu0
        %v617 = vpop.f32.mrb[0].mxu0
        %v618 = vadd.f32 0.0, %v617
        %v619 = vpop.f32.mrb[0].mxu0
        %620 = vmatprep.mubr.bf16.mxu0 0
        %621 = vmatmul.mubr.bf16.gmra.mrb[0].mxu0 %v476
        %v622 = vpop.f32.mrb[0].mxu0
        %v623 = vadd.f32 0.0, %v622
        %v624 = vpop.f32.mrb[0].mxu0
        %v625 = vpop.f32.mrb[0].mxu0
        %v626 = vadd.f32 0.0, %v625
        %v627 = vpop.f32.mrb[0].mxu0
        %628 = vmatprep.mubr.bf16.mxu0 0
        %629 = vmatmul.mubr.bf16.gmra.mrb[0].mxu0 %v479
        %v630 = vpop.f32.mrb[0].mxu0
        %v631 = vadd.f32 0.0, %v630
        %v632 = vpop.f32.mrb[0].mxu0
        %v633 = vpop.f32.mrb[0].mxu0
        %v634 = vadd.f32 0.0, %v633
        %v635 = vpop.f32.mrb[0].mxu0
        %636 = vmatprep.mubr.bf16.mxu0 0
        %637 = vmatmul.mubr.bf16.gmra.mrb[0].mxu0 %v482
        %v638 = vpop.f32.mrb[0].mxu0
        %v639 = vadd.f32 0.0, %v638
        %v640 = vpop.f32.mrb[0].mxu0
        %v641 = vpop.f32.mrb[0].mxu0
        %v642 = vadd.f32 0.0, %v641
        %v643 = vpop.f32.mrb[0].mxu0
        %644 = vdwg.mxu0
        %vm645 = vcmask 130048
        %646 = vst.msk [vmem:[%s288] sm:$0xff] %vm645, %v519
        %647 = vst.msk [vmem:[%s288 + $0x8] sm:$0xff] %vm645, %v522
        %648 = vst.msk [vmem:[%s288 + $0x10] sm:$0xff] %vm645, %v527
        %649 = vst.msk [vmem:[%s288 + $0x18] sm:$0xff] %vm645, %v530
        %650 = vst.msk [vmem:[%s288 + $0x20] sm:$0xff] %vm645, %v535
        %651 = vst.msk [vmem:[%s288 + $0x28] sm:$0xff] %vm645, %v538
        %652 = vst.msk [vmem:[%s288 + $0x30] sm:$0xff] %vm645, %v543
        %653 = vst.msk [vmem:[%s288 + $0x38] sm:$0xff] %vm645, %v546
        %654 = vst.msk [vmem:[%s288 + $0x40] sm:$0xff] %vm645, %v551
        %655 = vst.msk [vmem:[%s288 + $0x48] sm:$0xff] %vm645, %v554
        %656 = vst.msk [vmem:[%s288 + $0x50] sm:$0xff] %vm645, %v559
        %657 = vst.msk [vmem:[%s288 + $0x58] sm:$0xff] %vm645, %v562
        %658 = vst.msk [vmem:[%s288 + $0x60] sm:$0xff] %vm645, %v567
        %659 = vst.msk [vmem:[%s288 + $0x68] sm:$0xff] %vm645, %v570
        %660 = vst.msk [vmem:[%s288 + $0x70] sm:$0xff] %vm645, %v575
        %661 = vst.msk [vmem:[%s288 + $0x78] sm:$0xff] %vm645, %v578
        %662 = vst.msk [vmem:[%s288 + $0x80] sm:$0xff] %vm645, %v583
        %663 = vst.msk [vmem:[%s288 + $0x88] sm:$0xff] %vm645, %v586
        %664 = vst.msk [vmem:[%s288 + $0x90] sm:$0xff] %vm645, %v591
        %665 = vst.msk [vmem:[%s288 + $0x98] sm:$0xff] %vm645, %v594
        %666 = vst.msk [vmem:[%s288 + $0xa0] sm:$0xff] %vm645, %v599
        %667 = vst.msk [vmem:[%s288 + $0xa8] sm:$0xff] %vm645, %v602
        %668 = vst.msk [vmem:[%s288 + $0xb0] sm:$0xff] %vm645, %v607
        %669 = vst.msk [vmem:[%s288 + $0xb8] sm:$0xff] %vm645, %v610
        %670 = vst.msk [vmem:[%s288 + $0xc0] sm:$0xff] %vm645, %v615
        %671 = vst.msk [vmem:[%s288 + $0xc8] sm:$0xff] %vm645, %v618
        %672 = vst.msk [vmem:[%s288 + $0xd0] sm:$0xff] %vm645, %v623
        %673 = vst.msk [vmem:[%s288 + $0xd8] sm:$0xff] %vm645, %v626
        %674 = vst.msk [vmem:[%s288 + $0xe0] sm:$0xff] %vm645, %v631
        %675 = vst.msk [vmem:[%s288 + $0xe8] sm:$0xff] %vm645, %v634
        %676 = vst.msk [vmem:[%s288 + $0xf0] sm:$0xff] %vm645, %v639
        %677 = vst.msk [vmem:[%s288 + $0xf8] sm:$0xff] %vm645, %v642
        %p678 = scmp.eq.s32.totalorder %s24, 0
        %p679 = scmp.eq.s32.totalorder %s25, 0
        %p680 = pnand %p678, %p679
        %p681 = pneg %p680
        // Predicated region
        $region29: #{generator_forward.14} parent=27 // pred_check
          _
        $region30: #{generator_forward.14} parent=27 // pred_check_branch
          %683 = sbr.rel (%p680) target = $region32
        $region31: #{generator_forward.14} parent=27 // pred_region
          %vm684 = vcmask 122880
          %685 = vst.msk [vmem:[#allocation2] sm:$0x1] %vm684, 0.0
          %686 = vst.msk [vmem:[#allocation4] sm:$0x1] %vm684, 0.0
        $region32: #{generator_forward.14} parent=27 // pred_fallthru
          _
        %v687 = vld [vmem:[#allocation2] sm:$0x1]
        %v688 = vsel %vm645, %v519, 0.0
        %v689 = vsel %vm645, %v522, 0.0
        %v690 = vadd.f32 %v688, %v689
        %v691 = vsel %vm645, %v527, 0.0
        %v692 = vadd.f32 %v690, %v691
        %v693 = vsel %vm645, %v530, 0.0
        %v694 = vadd.f32 %v692, %v693
        %v695 = vsel %vm645, %v535, 0.0
        %v696 = vadd.f32 %v694, %v695
        %v697 = vsel %vm645, %v538, 0.0
        %v698 = vadd.f32 %v696, %v697
        %v699 = vsel %vm645, %v543, 0.0
        %v700 = vadd.f32 %v698, %v699
        %v701 = vsel %vm645, %v546, 0.0
        %v702 = vadd.f32 %v700, %v701
        %v703 = vsel %vm645, %v551, 0.0
        %v704 = vadd.f32 %v702, %v703
        %v705 = vsel %vm645, %v554, 0.0
        %v706 = vadd.f32 %v704, %v705
        %v707 = vsel %vm645, %v559, 0.0
        %v708 = vadd.f32 %v706, %v707
        %v709 = vsel %vm645, %v562, 0.0
        %v710 = vadd.f32 %v708, %v709
        %v711 = vsel %vm645, %v567, 0.0
        %v712 = vadd.f32 %v710, %v711
        %v713 = vsel %vm645, %v570, 0.0
        %v714 = vadd.f32 %v712, %v713
        %v715 = vsel %vm645, %v575, 0.0
        %v716 = vadd.f32 %v714, %v715
        %v717 = vsel %vm645, %v578, 0.0
        %v718 = vadd.f32 %v716, %v717
        %v719 = vsel %vm645, %v583, 0.0
        %v720 = vadd.f32 %v718, %v719
        %v721 = vsel %vm645, %v586, 0.0
        %v722 = vadd.f32 %v720, %v721
        %v723 = vsel %vm645, %v591, 0.0
        %v724 = vadd.f32 %v722, %v723
        %v725 = vsel %vm645, %v594, 0.0
        %v726 = vadd.f32 %v724, %v725
        %v727 = vsel %vm645, %v599, 0.0
        %v728 = vadd.f32 %v726, %v727
        %v729 = vsel %vm645, %v602, 0.0
        %v730 = vadd.f32 %v728, %v729
        %v731 = vsel %vm645, %v607, 0.0
        %v732 = vadd.f32 %v730, %v731
        %v733 = vsel %vm645, %v610, 0.0
        %v734 = vadd.f32 %v732, %v733
        %v735 = vsel %vm645, %v615, 0.0
        %v736 = vadd.f32 %v734, %v735
        %v737 = vsel %vm645, %v618, 0.0
        %v738 = vadd.f32 %v736, %v737
        %v739 = vsel %vm645, %v623, 0.0
        %v740 = vadd.f32 %v738, %v739
        %v741 = vsel %vm645, %v626, 0.0
        %v742 = vadd.f32 %v740, %v741
        %v743 = vsel %vm645, %v631, 0.0
        %v744 = vadd.f32 %v742, %v743
        %v745 = vsel %vm645, %v634, 0.0
        %v746 = vadd.f32 %v744, %v745
        %v747 = vsel %vm645, %v639, 0.0
        %v748 = vadd.f32 %v746, %v747
        %v749 = vsel %vm645, %v642, 0.0
        %v750 = vadd.f32 %v748, %v749
        %v751 = vrot.slane %v750, 4
        %v752 = vadd.f32 %v750, %v751
        %v753 = vrot.slane %v752, 2
        %v754 = vadd.f32 %v752, %v753
        %v755 = vrot.slane %v754, 1
        %v756 = vadd.f32 %v754, %v755
        %v757 = vadd.f32 %v687, %v756
        %vm758 = vcmask 122880
        %759 = vst.msk [vmem:[#allocation2] sm:$0x1] %vm758, %v757
        %v760 = vld [vmem:[#allocation4] sm:$0x1]
        %v761 = vmul.f32 %v519, %v519
        %v762 = vmul.f32 %v522, %v522
        %v763 = vmul.f32 %v527, %v527
        %v764 = vmul.f32 %v530, %v530
        %v765 = vmul.f32 %v535, %v535
        %v766 = vmul.f32 %v538, %v538
        %v767 = vmul.f32 %v543, %v543
        %v768 = vmul.f32 %v546, %v546
        %v769 = vmul.f32 %v551, %v551
        %v770 = vmul.f32 %v554, %v554
        %v771 = vmul.f32 %v559, %v559
        %v772 = vmul.f32 %v562, %v562
        %v773 = vmul.f32 %v567, %v567
        %v774 = vmul.f32 %v570, %v570
        %v775 = vmul.f32 %v575, %v575
        %v776 = vmul.f32 %v578, %v578
        %v777 = vmul.f32 %v583, %v583
        %v778 = vmul.f32 %v586, %v586
        %v779 = vmul.f32 %v591, %v591
        %v780 = vmul.f32 %v594, %v594
        %v781 = vmul.f32 %v599, %v599
        %v782 = vmul.f32 %v602, %v602
        %v783 = vmul.f32 %v607, %v607
        %v784 = vmul.f32 %v610, %v610
        %v785 = vmul.f32 %v615, %v615
        %v786 = vmul.f32 %v618, %v618
        %v787 = vmul.f32 %v623, %v623
        %v788 = vmul.f32 %v626, %v626
        %v789 = vmul.f32 %v631, %v631
        %v790 = vmul.f32 %v634, %v634
        %v791 = vmul.f32 %v639, %v639
        %v792 = vmul.f32 %v642, %v642
        %v793 = vsel %vm645, %v761, 0.0
        %v794 = vsel %vm645, %v762, 0.0
        %v795 = vadd.f32 %v793, %v794
        %v796 = vsel %vm645, %v763, 0.0
        %v797 = vadd.f32 %v795, %v796
        %v798 = vsel %vm645, %v764, 0.0
        %v799 = vadd.f32 %v797, %v798
        %v800 = vsel %vm645, %v765, 0.0
        %v801 = vadd.f32 %v799, %v800
        %v802 = vsel %vm645, %v766, 0.0
        %v803 = vadd.f32 %v801, %v802
        %v804 = vsel %vm645, %v767, 0.0
        %v805 = vadd.f32 %v803, %v804
        %v806 = vsel %vm645, %v768, 0.0
        %v807 = vadd.f32 %v805, %v806
        %v808 = vsel %vm645, %v769, 0.0
        %v809 = vadd.f32 %v807, %v808
        %v810 = vsel %vm645, %v770, 0.0
        %v811 = vadd.f32 %v809, %v810
        %v812 = vsel %vm645, %v771, 0.0
        %v813 = vadd.f32 %v811, %v812
        %v814 = vsel %vm645, %v772, 0.0
        %v815 = vadd.f32 %v813, %v814
        %v816 = vsel %vm645, %v773, 0.0
        %v817 = vadd.f32 %v815, %v816
        %v818 = vsel %vm645, %v774, 0.0
        %v819 = vadd.f32 %v817, %v818
        %v820 = vsel %vm645, %v775, 0.0
        %v821 = vadd.f32 %v819, %v820
        %v822 = vsel %vm645, %v776, 0.0
        %v823 = vadd.f32 %v821, %v822
        %v824 = vsel %vm645, %v777, 0.0
        %v825 = vadd.f32 %v823, %v824
        %v826 = vsel %vm645, %v778, 0.0
        %v827 = vadd.f32 %v825, %v826
        %v828 = vsel %vm645, %v779, 0.0
        %v829 = vadd.f32 %v827, %v828
        %v830 = vsel %vm645, %v780, 0.0
        %v831 = vadd.f32 %v829, %v830
        %v832 = vsel %vm645, %v781, 0.0
        %v833 = vadd.f32 %v831, %v832
        %v834 = vsel %vm645, %v782, 0.0
        %v835 = vadd.f32 %v833, %v834
        %v836 = vsel %vm645, %v783, 0.0
        %v837 = vadd.f32 %v835, %v836
        %v838 = vsel %vm645, %v784, 0.0
        %v839 = vadd.f32 %v837, %v838
        %v840 = vsel %vm645, %v785, 0.0
        %v841 = vadd.f32 %v839, %v840
        %v842 = vsel %vm645, %v786, 0.0
        %v843 = vadd.f32 %v841, %v842
        %v844 = vsel %vm645, %v787, 0.0
        %v845 = vadd.f32 %v843, %v844
        %v846 = vsel %vm645, %v788, 0.0
        %v847 = vadd.f32 %v845, %v846
        %v848 = vsel %vm645, %v789, 0.0
        %v849 = vadd.f32 %v847, %v848
        %v850 = vsel %vm645, %v790, 0.0
        %v851 = vadd.f32 %v849, %v850
        %v852 = vsel %vm645, %v791, 0.0
        %v853 = vadd.f32 %v851, %v852
        %v854 = vsel %vm645, %v792, 0.0
        %v855 = vadd.f32 %v853, %v854
        %v856 = vrot.slane %v855, 4
        %v857 = vadd.f32 %v855, %v856
        %v858 = vrot.slane %v857, 2
        %v859 = vadd.f32 %v857, %v858
        %v860 = vrot.slane %v859, 1
        %v861 = vadd.f32 %v859, %v860
        %v862 = vadd.f32 %v760, %v861
        %863 = vst.msk [vmem:[#allocation4] sm:$0x1] %vm758, %v862
        %s864 = smul.u32 32, %s25
        %p865 = scmp.lt.s32.totalorder %s24, 0
        %s866 = scalar_select %p865, %s24, 0
        %p867 = scmp.lt.s32.totalorder %s864, 63
        %s868 = scalar_select %p867, %s864, 63
        %p869 = scmp.lt.s32.totalorder %s23, 0
        %s870 = scalar_select %p869, %s23, 0
        %s871 = sadd.s32 %s870, %s868
        %s872 = smul.addr %s866, 64
        %s873 = sadd.s32 %s871, %s872
        %s874 = smul.addr %s873, 8
        %s875 = scalar_lea.vmem %s2, %s874
        // Predicated region
        $region33: #{generator_forward.14} parent=27 // pred_check
          %p876 = pneg %p115
        $region34: #{generator_forward.14} parent=27 // pred_check_branch
          %878 = sbr.rel (%p876) target = $region36
        $region35: #{generator_forward.14} parent=27 // pred_region
          %s879 = smul.u32 32, %s25
        $region36: #{generator_forward.14} parent=27 // pred_fallthru
          _
        // Predicated region
        $region37: #{generator_forward.14} parent=27 // pred_check
          %p880 = pneg %p141
        $region38: #{generator_forward.14} parent=27 // pred_check_branch
          %882 = sbr.rel (%p880) target = $region40
        $region39: #{generator_forward.14} parent=27 // pred_region
          %s884 = ssub.s32 16, 16
          %885 = vsyncadd [#allocation3], %s884
          %s886 = smul.addr %s23, 16
          %s887 = scalar_lea.hbm %s3, %s886
          %s889 = sshll.u32 [#allocation2], 4
          %s890 = int_to_ptr.vmem [resolvable:$true] %s889
          %892 = dma.vmem_to_hbm [thread:$0]  %s890, 16, %s887, [#allocation3]
        $region40: #{generator_forward.14} parent=27 // pred_fallthru
          _
        // Predicated region
        $region41: #{generator_forward.14} parent=27 // pred_check
          %p893 = pneg %p167
        $region42: #{generator_forward.14} parent=27 // pred_check_branch
          %895 = sbr.rel (%p893) target = $region44
        $region43: #{generator_forward.14} parent=27 // pred_region
          %s897 = ssub.s32 16, 16
          %898 = vsyncadd [#allocation5], %s897
          %s899 = smul.addr %s23, 16
          %s900 = scalar_lea.hbm %s4, %s899
          %s902 = sshll.u32 [#allocation4], 4
          %s903 = int_to_ptr.vmem [resolvable:$true] %s902
          %905 = dma.vmem_to_hbm [thread:$0]  %s903, 16, %s900, [#allocation5]
        $region44: #{generator_forward.14} parent=27 // pred_fallthru
          _
        // Predicated region
        $region45: #{generator_forward.14} parent=27 // pred_check
          %p906 = pneg %p141
        $region46: #{generator_forward.14} parent=27 // pred_check_branch
          %908 = sbr.rel (%p906) target = $region48
        $region47: #{generator_forward.14} parent=27 // pred_region
          %909 = dma.done [#allocation3], 16
        $region48: #{generator_forward.14} parent=27 // pred_fallthru
          _
        // Predicated region
        $region49: #{generator_forward.14} parent=27 // pred_check
          %p910 = pneg %p167
        $region50: #{generator_forward.14} parent=27 // pred_check_branch
          %912 = sbr.rel (%p910) target = $region52
        $region51: #{generator_forward.14} parent=27 // pred_region
          %913 = dma.done [#allocation5], 16
        $region52: #{generator_forward.14} parent=27 // pred_fallthru
          _
      $region28: #{generator_forward.14} parent=5 // pred_fallthru
        _
      %p914 = scmp.le.s32.totalorder 2, %s13
      // Predicated region
      $region53: #{generator_forward.14} parent=5 // pred_check
        %p915 = pneg %p914
      $region54: #{generator_forward.14} parent=5 // pred_check_branch
        %917 = sbr.rel (%p915) target = $region56
      $region55: #{generator_forward.14} parent=5 // pred_region
        %s918 = ssub.s32 %s13, 2
        // Predicated region
        $region57: #{generator_forward.14} parent=55 // pred_check
          %p919 = pneg %p121
        $region58: #{generator_forward.14} parent=55 // pred_check_branch
          %921 = sbr.rel (%p919) target = $region60
        $region59: #{generator_forward.14} parent=55 // pred_region
          %s922 = smul.u32 32, %s28
          %p923 = scmp.lt.s32.totalorder %s27, 0
          %s924 = scalar_select %p923, %s27, 0
          %p925 = scmp.lt.s32.totalorder %s922, 63
          %s926 = scalar_select %p925, %s922, 63
          %p927 = scmp.lt.s32.totalorder %s26, 0
          %s928 = scalar_select %p927, %s26, 0
          %s929 = sadd.s32 %s928, %s926
          %s930 = smul.addr %s924, 64
          %s931 = sadd.s32 %s929, %s930
          %s932 = smul.addr %s931, 8
          %s933 = scalar_lea.vmem %s2, %s932
        $region60: #{generator_forward.14} parent=55 // pred_fallthru
          _
      $region56: #{generator_forward.14} parent=5 // pred_fallthru
        _
    $region6: #{generator_forward.14} parent=1 // loop_footer
      %s17 = sadd.s32 1, %s13
    $region7: #{generator_forward.14} parent=1 // loop_footer_branch
      %12 = sbr.rel target = $region3
    $region8: #{generator_forward.14} parent=1 // loop_exit
      _
    %934 = vsyncpa [#allocation3], 1
    %s935 = scalar_lea.sflag [#allocation3], 1
    %936 = vsyncpa %s935, 1
    %937 = vsyncpa [#allocation5], 1

// kernel: generator_forward.15
$region0: #{generator_forward.15}
  #allocation0 [shape = 'u32[]', space=smem, size = 0x4, offset = 0x4, fixed_abs, tag = 'smem constant byte address 0x4 - core index']
  #allocation1 [shape = 'u32[144,128]{1,0:T(1,128)}', space=vmem, size = 0x12000, scoped, tag = 'internal scratch']
  %s0 = inlined_call_operand.vmem [shape: f32[16,128], index: 0, kind: input, shape index: {}]
  %s1 = inlined_call_operand.vmem [shape: f32[16,128], index: 1, kind: output, shape index: {}]
  %s2 = sld [smem:[#allocation0]]
  $region14: #{generator_forward.15} parent=0
    _
  %s4 = ssub.s32 1, %s2
  %s5 = scalar_select 0, %s4, %s2
  // Predicated region
  $region2: #{generator_forward.15} parent=0 // pred_check
    _
  $region3: #{generator_forward.15} parent=0 // pred_check_branch
    %7 = sbr.rel (0) target = $region5
  $region4: #{generator_forward.15} parent=0 // pred_region
    _
  $region5: #{generator_forward.15} parent=0 // pred_fallthru
    _
  %v8 = vld [vmem:[%s0] sm:$0xff]
  %v9 = vld [vmem:[%s0 + $0x8] sm:$0xff]
  %v10 = vtanh.pop %v8
  %v11 = vtanh.pop %v9
  %12 = vst [vmem:[%s1] sm:$0xff] %v10
  %13 = vst [vmem:[%s1 + $0x8] sm:$0xff] %v11
  // Predicated region
  $region6: #{generator_forward.15} parent=0 // pred_check
    _
  $region7: #{generator_forward.15} parent=0 // pred_check_branch
    %15 = sbr.rel (0) target = $region9
  $region8: #{generator_forward.15} parent=0 // pred_region
    _
  $region9: #{generator_forward.15} parent=0 // pred_fallthru
    _
  // Predicated region
  $region10: #{generator_forward.15} parent=0 // pred_check
    _
  $region11: #{generator_forward.15} parent=0 // pred_check_branch
    %17 = sbr.rel (0) target = $region13
  $region12: #{generator_forward.15} parent=0 // pred_region
    _
  $region13: #{generator_forward.15} parent=0 // pred_fallthru
    _

</llo_original>
